<compile_context>
chip_gen: v7x
topology: tpu7x:2x2x1
jax: 0.10.0
libtpu: 0.0.40
codegen_flags: <defaults>
</compile_context>

<pallas_src>
import jax
import jax.numpy as jnp
from jax import lax
from jax.experimental import pallas as pl
from jax.experimental.pallas import tpu as pltpu


# ---------------------------------------------------------------------------
# In-kernel helpers (pure jnp, lower to VPU/EUP/MXU/XLU)
# ---------------------------------------------------------------------------
def _mish_fast(x):
    # mish(x) = x * tanh(softplus(x)) = x * (u^2 - 1) / (u^2 + 1),  u = 1 + e^x.
    # Clamp at 20: e^40 still fits f32 and the rational factor is already 1.0.
    u = 1.0 + jnp.exp(jnp.minimum(x, 20.0))
    u2 = u * u
    return x * (u2 - 1.0) * pl.reciprocal(u2 + 1.0, approx=True)


def _group_norm(h3, gmat, gmat_t, gamma, beta, inv_n, eps):
    # h3: (Bt, T, C) f32; gmat: (C, G) one-hot group membership; gmat_t: (G, C).
    # Per-element, per-group stats: reduce T first, then one (Bt,C)@(C,G) matmul
    # (no lane-dim reshape). Two-pass variance (mean subtracted before squaring)
    # avoids E[x^2]-E[x]^2 cancellation.
    s1 = jnp.sum(h3, axis=1)                                                  # (Bt, C)
    mean_g = jnp.dot(s1, gmat, preferred_element_type=jnp.float32) * inv_n    # (Bt, G)
    mean_c = jnp.dot(mean_g, gmat_t, preferred_element_type=jnp.float32)      # (Bt, C)
    d = h3 - mean_c[:, None, :]                                               # (Bt, T, C)
    s2 = jnp.sum(d * d, axis=1)                                               # (Bt, C)
    var_g = jnp.dot(s2, gmat, preferred_element_type=jnp.float32) * inv_n     # (Bt, G)
    inv_g = lax.rsqrt(var_g + eps)                                            # (Bt, G)
    inv_c = jnp.dot(inv_g, gmat_t, preferred_element_type=jnp.float32)        # (Bt, C)
    a = inv_c * gamma                                                         # fused affine
    return d * a[:, None, :] + beta                                           # (Bt, T, C)


# ---------------------------------------------------------------------------
# Fused kernel: Bt batch elements per grid step, channels-last layout
# ---------------------------------------------------------------------------
def _make_kernel(*, n_groups, eps, compute_dtype, has_res):
    def kernel(x_ref, film_ref, w1_ref, w2_ref, *rest):
        if has_res:
            (wr_ref, vec_ref, gmat_ref, gmatt_ref,
             o_ref, xpad_ref, hpad_ref) = rest
        else:
            (vec_ref, gmat_ref, gmatt_ref,
             o_ref, xpad_ref, hpad_ref) = rest
            wr_ref = None

        Bt, T, C_in = x_ref.shape
        C_out = o_ref.shape[-1]
        K = w1_ref.shape[0]
        pad = K // 2
        inv_n = 1.0 / float(T * (C_out // n_groups))
        cd = compute_dtype

        # packed per-channel vectors: [b1, gn1_w, gn1_b, b2, gn2_w, gn2_b, br, 0]
        vec = vec_ref[...]                                  # (8, C_out) f32
        b1, g1, be1 = vec[0:1], vec[1:2], vec[2:3]
        b2, g2, be2 = vec[3:4], vec[4:5], vec[5:6]
        br = vec[6:7]
        gmat = gmat_ref[...]
        gmat_t = gmatt_ref[...]

        # ---- stage time-padded x in VMEM (no wrapper jnp.pad HBM pass) -------
        # Pad rows are re-zeroed every step: cheap (2*pad rows), and correct even
        # when the "parallel" batch axis is split across TensorCores (a core
        # whose first step has program_id != 0 would otherwise read garbage).
        x_f32 = x_ref[...].astype(jnp.float32)              # (Bt, T, C_in)
        x_cd = x_f32.astype(cd)                             # cast ONCE; reused below
        if pad > 0:
            zx = jnp.zeros((Bt, pad, C_in), cd)
            xpad_ref[:, pl.ds(0, pad), :] = zx
            xpad_ref[:, pl.ds(T + pad, pad), :] = zx
        xpad_ref[:, pl.ds(pad, T), :] = x_cd

        # ---- Conv1dBlock #1: conv(k, pad) -> GroupNorm -> Mish ----------------
        acc = jnp.zeros((Bt * T, C_out), jnp.float32)
        for k in range(K):                                  # K shifted taps, M = Bt*T
            xk = xpad_ref[:, pl.ds(k, T), :].reshape(Bt * T, C_in)
            acc = acc + jnp.dot(xk, w1_ref[k], preferred_element_type=jnp.float32)
        h = (acc + b1).reshape(Bt, T, C_out)
        h = _group_norm(h, gmat, gmat_t, g1, be1, inv_n, eps)
        h = _mish_fast(h)

        # ---- FiLM (linear part precomputed in the wrapper as one XLA GEMM) ----
        film = film_ref[...]                                # (Bt, 2, C_out) f32
        h = film[:, 0:1, :] * h + film[:, 1:2, :]

        # ---- Conv1dBlock #2 (padded intermediate in compute_dtype VMEM) -------
        if pad > 0:
            zh = jnp.zeros((Bt, pad, C_out), cd)
            hpad_ref[:, pl.ds(0, pad), :] = zh
            hpad_ref[:, pl.ds(T + pad, pad), :] = zh
        hpad_ref[:, pl.ds(pad, T), :] = h.astype(cd)
        acc2 = jnp.zeros((Bt * T, C_out), jnp.float32)
        for k in range(K):
            hk = hpad_ref[:, pl.ds(k, T), :].reshape(Bt * T, C_out)
            acc2 = acc2 + jnp.dot(hk, w2_ref[k], preferred_element_type=jnp.float32)
        h2 = (acc2 + b2).reshape(Bt, T, C_out)
        h2 = _group_norm(h2, gmat, gmat_t, g2, be2, inv_n, eps)
        h2 = _mish_fast(h2)

        # ---- residual ----------------------------------------------------------
        if has_res:
            res = jnp.dot(x_cd.reshape(Bt * T, C_in), wr_ref[...],
                          preferred_element_type=jnp.float32)
            out = h2 + (res.reshape(Bt, T, C_out) + br)
        else:
            out = h2 + x_f32        # identity skip: exact f32 add, no matmul

        o_ref[...] = out.astype(o_ref.dtype)

    return kernel


# ---------------------------------------------------------------------------
# Wrappers
# ---------------------------------------------------------------------------
def _pick_batch_tile(n, t, max_rows=1024):
    """Largest divisor Bt of n with Bt*t <= max_rows, keeping grid >= 2 when
    n >= 2 so the 'parallel' batch axis can split across v7x's two TensorCores."""
    best = 1
    for bt in range(1, n + 1):
        if n % bt:
            continue
        if bt * t > max_rows:
            break
        if n >= 2 and n // bt < 2:
            continue
        best = bt
    return best


def conditional_residual_block_1d_nwc(x_nwc, cond, params, *, n_groups=8, eps=1e-5,
                                      compute_dtype=jnp.float32, batch_tile=None):
    """Channels-last core: x_nwc (N, T, C_in) -> (N, T, C_out)."""
    N, T, C_in = x_nwc.shape
    C_out, _, K = params["w1"].shape
    pad = K // 2
    assert C_out % n_groups == 0, "GroupNorm requires C_out % n_groups == 0"
    f32 = jnp.float32

    has_res = params.get("res_w") is not None
    if not has_res:
        assert C_in == C_out, "identity residual requires in_channels == out_channels"

    Bt = batch_tile if batch_tile is not None else _pick_batch_tile(N, T)
    assert N % Bt == 0, (N, Bt)

    # FiLM hoisted out of the kernel: one (N, cond_dim)@(cond_dim, 2*C_out) GEMM.
    cond_f = cond.astype(f32)
    cond_m = cond_f * jnp.tanh(jax.nn.softplus(cond_f))
    emb = jnp.dot(cond_m, params["cond_w"].astype(f32).T,
                  precision=jax.lax.Precision.HIGHEST) + params["cond_b"].astype(f32)
    film = jnp.stack([emb[:, :C_out], emb[:, C_out:]], axis=1)         # (N, 2, C_out)

    # conv weights (C_out, C_in, K) -> (K, C_in, C_out), pre-cast to compute_dtype.
    w1 = jnp.transpose(params["w1"], (2, 1, 0)).astype(compute_dtype)
    w2 = jnp.transpose(params["w2"], (2, 1, 0)).astype(compute_dtype)

    # pack the (1, C_out) vectors into one (8, C_out) block (one DMA, one buffer).
    zc = jnp.zeros((C_out,), f32)
    br = params["res_b"].astype(f32) if has_res else zc
    vec = jnp.stack([params["b1"].astype(f32), params["gn1_w"].astype(f32),
                     params["gn1_b"].astype(f32), params["b2"].astype(f32),
                     params["gn2_w"].astype(f32), params["gn2_b"].astype(f32),
                     br, zc], axis=0)                                   # (8, C_out)

    # group-membership one-hot (C_out, G) and its transpose.
    grp = jnp.arange(C_out) // (C_out // n_groups)
    gmat = (grp[:, None] == jnp.arange(n_groups)[None, :]).astype(f32)
    gmat_t = jnp.transpose(gmat)

    operands = [x_nwc, film, w1, w2]
    if has_res:
        operands.append(jnp.transpose(params["res_w"][:, :, 0]).astype(compute_dtype))
    operands += [vec, gmat, gmat_t]

    kernel = _make_kernel(n_groups=n_groups, eps=eps,
                          compute_dtype=compute_dtype, has_res=has_res)

    def _call(single_buffer):
        def const_spec(shape):
            nd = len(shape)

            def idx(n):
                return (0,) * nd

            if single_buffer:
                # constant-index blocks never change across grid steps:
                # single-buffer them so they are not doubled in VMEM (v7x budget).
                return pl.BlockSpec(shape, idx, pipeline_mode=pl.Buffered(1))
            return pl.BlockSpec(shape, idx)

        in_specs = [
            pl.BlockSpec((Bt, T, C_in), lambda n: (n, 0, 0)),           # x
            pl.BlockSpec((Bt, 2, C_out), lambda n: (n, 0, 0)),          # FiLM scale/bias
            const_spec((K, C_in, C_out)),                               # w1
            const_spec((K, C_out, C_out)),                              # w2
        ]
        if has_res:
            in_specs.append(const_spec((C_in, C_out)))                  # wr (1x1 conv)
        in_specs += [const_spec((8, C_out)),                            # packed vectors
                     const_spec((C_out, n_groups)),                     # gmat
                     const_spec((n_groups, C_out))]                     # gmat_t

        return pl.pallas_call(
            kernel,
            out_shape=jax.ShapeDtypeStruct((N, T, C_out), x_nwc.dtype),
            grid_spec=pltpu.PrefetchScalarGridSpec(
                num_scalar_prefetch=0,
                grid=(N // Bt,),
                in_specs=in_specs,
                out_specs=pl.BlockSpec((Bt, T, C_out), lambda n: (n, 0, 0)),
                scratch_shapes=[
                    pltpu.VMEM((Bt, T + 2 * pad, C_in), compute_dtype),   # padded x
                    pltpu.VMEM((Bt, T + 2 * pad, C_out), compute_dtype),  # padded h
                ],
            ),
            compiler_params=pltpu.CompilerParams(
                dimension_semantics=("parallel",),      # batch -> 2 TCs on v7x
                vmem_limit_bytes=48 * 1024 * 1024,
            ),
        )(*operands)

    try:
        return _call(single_buffer=True)
    except Exception:
        # pl.Buffered(1) not supported on this jax/libtpu combo -> fall back to
        # the default double-buffered pipeline (correctness identical).
        return _call(single_buffer=False)


def conditional_residual_block_1d(x, cond, params, **kwargs):
    """PyTorch-layout entry point: x (N, C_in, T), cond (N, cond_dim) -> (N, C_out, T).

    In a full network keep activations channels-last end-to-end and call
    conditional_residual_block_1d_nwc directly; the two transposes here are
    pure layout plumbing for the NCW module interface.
    """
    x_nwc = jnp.transpose(x, (0, 2, 1))
    out_nwc = conditional_residual_block_1d_nwc(x_nwc, cond, params, **kwargs)
    return jnp.transpose(out_nwc, (0, 2, 1))


# ---------------------------------------------------------------------------
# Pure-JAX reference (mirrors the PyTorch module op-for-op)
# ---------------------------------------------------------------------------
def _mish_ref(x):
    return x * jnp.tanh(jax.nn.softplus(x))


def _conv1d_ncw_ref(x, w, b, padding):
    y = jax.lax.conv_general_dilated(
        x, w, window_strides=(1,), padding=((padding, padding),),
        dimension_numbers=("NCH", "OIH", "NCH"),
        precision=jax.lax.Precision.HIGHEST)
    return y + b[None, :, None]


def _group_norm_ref(x, gamma, beta, n_groups, eps=1e-5):
    N, C, T = x.shape
    xg = x.reshape(N, n_groups, C // n_groups, T)
    mean = xg.mean(axis=(2, 3), keepdims=True)
    var = xg.var(axis=(2, 3), keepdims=True)
    xn = ((xg - mean) / jnp.sqrt(var + eps)).reshape(N, C, T)
    return xn * gamma[None, :, None] + beta[None, :, None]


def conditional_residual_block_1d_ref(x, cond, p, n_groups=8):
    C_out = p["w1"].shape[0]
    h = _conv1d_ncw_ref(x, p["w1"], p["b1"], p["w1"].shape[-1] // 2)
    h = _mish_ref(_group_norm_ref(h, p["gn1_w"], p["gn1_b"], n_groups))
    emb = jnp.dot(_mish_ref(cond), p["cond_w"].T,
                  precision=jax.lax.Precision.HIGHEST) + p["cond_b"]
    scale = emb[:, :C_out][:, :, None]
    bias = emb[:, C_out:][:, :, None]
    h = scale * h + bias
    h = _conv1d_ncw_ref(h, p["w2"], p["b2"], p["w2"].shape[-1] // 2)
    h = _mish_ref(_group_norm_ref(h, p["gn2_w"], p["gn2_b"], n_groups))
    res = x if p.get("res_w") is None else _conv1d_ncw_ref(x, p["res_w"], p["res_b"], 0)
    return h + res


if __name__ == "__main__":
    def make_params(key, c_in, c_out, cond_dim, k=3, with_res=True):
        ks = jax.random.split(key, 12)
        p = {
            "w1": 0.1 * jax.random.normal(ks[0], (c_out, c_in, k), jnp.float32),
            "b1": 0.1 * jax.random.normal(ks[1], (c_out,), jnp.float32),
            "gn1_w": 1.0 + 0.1 * jax.random.normal(ks[2], (c_out,), jnp.float32),
            "gn1_b": 0.1 * jax.random.normal(ks[3], (c_out,), jnp.float32),
            "w2": 0.1 * jax.random.normal(ks[4], (c_out, c_out, k), jnp.float32),
            "b2": 0.1 * jax.random.normal(ks[5], (c_out,), jnp.float32),
            "gn2_w": 1.0 + 0.1 * jax.random.normal(ks[6], (c_out,), jnp.float32),
            "gn2_b": 0.1 * jax.random.normal(ks[7], (c_out,), jnp.float32),
            "cond_w": 0.1 * jax.random.normal(ks[8], (2 * c_out, cond_dim), jnp.float32),
            "cond_b": 0.1 * jax.random.normal(ks[9], (2 * c_out,), jnp.float32),
        }
        if with_res:
            p["res_w"] = 0.1 * jax.random.normal(ks[10], (c_out, c_in, 1), jnp.float32)
            p["res_b"] = 0.1 * jax.random.normal(ks[11], (c_out,), jnp.float32)
        else:
            p["res_w"] = None
        return p

    # Small, module-consistent shapes. (Real model widths — C_out a multiple of
    # 128 — hit the lane-dense regime the kernel is designed for.)
    N, C_in, C_out, T, cond_dim, G = 8, 16, 32, 16, 32, 8
    key = jax.random.PRNGKey(0)
    kx, kc, kp1, kp2 = jax.random.split(key, 4)
    x = jax.random.normal(kx, (N, C_in, T), jnp.float32)
    cond = jax.random.normal(kc, (N, cond_dim), jnp.float32)

    # 1) real 1x1 residual conv path (C_in != C_out), f32 compute
    p = make_params(kp1, C_in, C_out, cond_dim, with_res=True)
    out = jax.block_until_ready(conditional_residual_block_1d(x, cond, p, n_groups=G))
    assert out.shape == (N, C_out, T), out.shape
    ref = jax.block_until_ready(conditional_residual_block_1d_ref(x, cond, p, n_groups=G))
    assert jnp.allclose(out, ref, atol=1e-2, rtol=1e-2), (
        float(jnp.max(jnp.abs(out - ref))))

    # 2) identity residual path (C_in == C_out), exact f32 skip add
    p2 = make_params(kp2, C_out, C_out, cond_dim, with_res=False)
    x2 = jax.random.normal(kx, (N, C_out, T), jnp.float32)
    out2 = jax.block_until_ready(conditional_residual_block_1d(x2, cond, p2, n_groups=G))
    ref2 = jax.block_until_ready(conditional_residual_block_1d_ref(x2, cond, p2, n_groups=G))
    assert jnp.allclose(out2, ref2, atol=1e-2, rtol=1e-2), (
        float(jnp.max(jnp.abs(out2 - ref2))))

    # 3) bf16 matmul operands + f32 accumulation (v6e/v7x MXU-peak path)
    out_bf = jax.block_until_ready(conditional_residual_block_1d(
        x, cond, p, n_groups=G, compute_dtype=jnp.bfloat16))
    assert jnp.allclose(out_bf, ref, atol=1e-1, rtol=1e-1), (
        float(jnp.max(jnp.abs(out_bf - ref))))

    print("KERNEL_OK")
</pallas_src>

<mosaic_0001>
module attributes {stable_mosaic.version = 11 : i64} {
  func.func @kernel(%arg0: i32, %arg1: memref<4x16x16xf32, #tpu.memory_space<vmem>>, %arg2: memref<4x2x32xf32, #tpu.memory_space<vmem>>, %arg3: memref<3x16x32xf32, #tpu.memory_space<vmem>>, %arg4: memref<3x32x32xf32, #tpu.memory_space<vmem>>, %arg5: memref<16x32xf32, #tpu.memory_space<vmem>>, %arg6: memref<8x32xf32, #tpu.memory_space<vmem>>, %arg7: memref<32x8xf32, #tpu.memory_space<vmem>>, %arg8: memref<8x32xf32, #tpu.memory_space<vmem>>, %arg9: memref<4x16x32xf32, #tpu.memory_space<vmem>>, %arg10: memref<4x18x16xf32, #tpu.memory_space<vmem>>, %arg11: memref<4x18x32xf32, #tpu.memory_space<vmem>>) attributes {dimension_semantics = [#tpu.dimension_semantics<parallel>], iteration_bounds = array<i64: 2>, scalar_prefetch = 0 : i64, scratch_operands = 2 : i64, tpu.core_type = #tpu.core_type<tc>, window_params = [{transform_indices = @transform_0, window_bounds = array<i64: 4, 16, 16>}, {transform_indices = @transform_1, window_bounds = array<i64: 4, 2, 32>}, {pipeline_mode = #tpu.pipeline_mode<synchronous>, transform_indices = @transform_2, window_bounds = array<i64: 3, 16, 32>}, {pipeline_mode = #tpu.pipeline_mode<synchronous>, transform_indices = @transform_3, window_bounds = array<i64: 3, 32, 32>}, {pipeline_mode = #tpu.pipeline_mode<synchronous>, transform_indices = @transform_4, window_bounds = array<i64: 16, 32>}, {pipeline_mode = #tpu.pipeline_mode<synchronous>, transform_indices = @transform_5, window_bounds = array<i64: 8, 32>}, {pipeline_mode = #tpu.pipeline_mode<synchronous>, transform_indices = @transform_6, window_bounds = array<i64: 32, 8>}, {pipeline_mode = #tpu.pipeline_mode<synchronous>, transform_indices = @transform_7, window_bounds = array<i64: 8, 32>}, {transform_indices = @transform_8, window_bounds = array<i64: 4, 16, 32>}]} {
    %c0 = arith.constant 0 : index
    %c0_0 = arith.constant 0 : index
    %0 = vector.load %arg6[%c0, %c0_0] : memref<8x32xf32, #tpu.memory_space<vmem>>, vector<8x32xf32>
    %1 = vector.extract_strided_slice %0 {offsets = [0, 0], sizes = [1, 32], strides = [1, 1]} : vector<8x32xf32> to vector<1x32xf32>
    %2 = vector.extract_strided_slice %0 {offsets = [1, 0], sizes = [1, 32], strides = [1, 1]} : vector<8x32xf32> to vector<1x32xf32>
    %3 = vector.extract_strided_slice %0 {offsets = [2, 0], sizes = [1, 32], strides = [1, 1]} : vector<8x32xf32> to vector<1x32xf32>
    %4 = vector.extract_strided_slice %0 {offsets = [3, 0], sizes = [1, 32], strides = [1, 1]} : vector<8x32xf32> to vector<1x32xf32>
    %5 = vector.extract_strided_slice %0 {offsets = [4, 0], sizes = [1, 32], strides = [1, 1]} : vector<8x32xf32> to vector<1x32xf32>
    %6 = vector.extract_strided_slice %0 {offsets = [5, 0], sizes = [1, 32], strides = [1, 1]} : vector<8x32xf32> to vector<1x32xf32>
    %7 = vector.extract_strided_slice %0 {offsets = [6, 0], sizes = [1, 32], strides = [1, 1]} : vector<8x32xf32> to vector<1x32xf32>
    %c0_1 = arith.constant 0 : index
    %c0_2 = arith.constant 0 : index
    %8 = vector.load %arg7[%c0_1, %c0_2] : memref<32x8xf32, #tpu.memory_space<vmem>>, vector<32x8xf32>
    %c0_3 = arith.constant 0 : index
    %c0_4 = arith.constant 0 : index
    %9 = vector.load %arg8[%c0_3, %c0_4] : memref<8x32xf32, #tpu.memory_space<vmem>>, vector<8x32xf32>
    %c0_5 = arith.constant 0 : index
    %c0_6 = arith.constant 0 : index
    %c0_7 = arith.constant 0 : index
    %10 = vector.load %arg1[%c0_5, %c0_6, %c0_7] : memref<4x16x16xf32, #tpu.memory_space<vmem>>, vector<4x16x16xf32>
    %cst = arith.constant 0.000000e+00 : f32
    %11 = vector.broadcast %cst : f32 to vector<4x1x16xf32>
    %c0_8 = arith.constant 0 : index
    %c0_9 = arith.constant 0 : index
    %c0_10 = arith.constant 0 : index
    %12 = vector.load %arg10[%c0_8, %c0_9, %c0_10] : memref<4x18x16xf32, #tpu.memory_space<vmem>>, vector<4x1x16xf32>
    tpu.vector_store %arg10[%c0_8, %c0_9, %c0_10], %11 {strides = array<i32>} : memref<4x18x16xf32, #tpu.memory_space<vmem>>, vector<4x1x16xf32>,
    %c0_11 = arith.constant 0 : index
    %c17 = arith.constant 17 : index
    %c0_12 = arith.constant 0 : index
    %13 = vector.load %arg10[%c0_11, %c17, %c0_12] : memref<4x18x16xf32, #tpu.memory_space<vmem>>, vector<4x1x16xf32>
    tpu.vector_store %arg10[%c0_11, %c17, %c0_12], %11 {strides = array<i32>} : memref<4x18x16xf32, #tpu.memory_space<vmem>>, vector<4x1x16xf32>,
    %c0_13 = arith.constant 0 : index
    %c1 = arith.constant 1 : index
    %c0_14 = arith.constant 0 : index
    %14 = vector.load %arg10[%c0_13, %c1, %c0_14] : memref<4x18x16xf32, #tpu.memory_space<vmem>>, vector<4x16x16xf32>
    tpu.vector_store %arg10[%c0_13, %c1, %c0_14], %10 {strides = array<i32>} : memref<4x18x16xf32, #tpu.memory_space<vmem>>, vector<4x16x16xf32>,
    %cst_15 = arith.constant 0.000000e+00 : f32
    %15 = vector.broadcast %cst_15 : f32 to vector<64x32xf32>
    %c0_16 = arith.constant 0 : index
    %c0_17 = arith.constant 0 : index
    %c0_18 = arith.constant 0 : index
    %16 = vector.load %arg10[%c0_16, %c0_17, %c0_18] : memref<4x18x16xf32, #tpu.memory_space<vmem>>, vector<4x16x16xf32>
    %17 = vector.shape_cast %16 : vector<4x16x16xf32> to vector<64x16xf32>
    %c0_19 = arith.constant 0 : index
    %c0_20 = arith.constant 0 : index
    %c0_21 = arith.constant 0 : index
    %18 = vector.load %arg3[%c0_19, %c0_20, %c0_21] : memref<3x16x32xf32, #tpu.memory_space<vmem>>, vector<1x16x32xf32>
    %19 = vector.shape_cast %18 : vector<1x16x32xf32> to vector<16x32xf32>
    %cst_22 = arith.constant dense<0.000000e+00> : vector<64x32xf32>
    %20 = tpu.matmul %17, %19, %cst_22 {dimension_numbers = #tpu.dot_dimension_numbers<[1], [0], [0], [1], [0, 0, 1, 1], [], []>} : vector<64x16xf32>, vector<16x32xf32>, vector<64x32xf32> -> vector<64x32xf32>
    %21 = arith.addf %15, %20 : vector<64x32xf32>
    %c0_23 = arith.constant 0 : index
    %c1_24 = arith.constant 1 : index
    %c0_25 = arith.constant 0 : index
    %22 = vector.load %arg10[%c0_23, %c1_24, %c0_25] : memref<4x18x16xf32, #tpu.memory_space<vmem>>, vector<4x16x16xf32>
    %23 = vector.shape_cast %22 : vector<4x16x16xf32> to vector<64x16xf32>
    %c1_26 = arith.constant 1 : index
    %c0_27 = arith.constant 0 : index
    %c0_28 = arith.constant 0 : index
    %24 = vector.load %arg3[%c1_26, %c0_27, %c0_28] : memref<3x16x32xf32, #tpu.memory_space<vmem>>, vector<1x16x32xf32>
    %25 = vector.shape_cast %24 : vector<1x16x32xf32> to vector<16x32xf32>
    %cst_29 = arith.constant dense<0.000000e+00> : vector<64x32xf32>
    %26 = tpu.matmul %23, %25, %cst_29 {dimension_numbers = #tpu.dot_dimension_numbers<[1], [0], [0], [1], [0, 0, 1, 1], [], []>} : vector<64x16xf32>, vector<16x32xf32>, vector<64x32xf32> -> vector<64x32xf32>
    %27 = arith.addf %21, %26 : vector<64x32xf32>
    %c0_30 = arith.constant 0 : index
    %c2 = arith.constant 2 : index
    %c0_31 = arith.constant 0 : index
    %28 = vector.load %arg10[%c0_30, %c2, %c0_31] : memref<4x18x16xf32, #tpu.memory_space<vmem>>, vector<4x16x16xf32>
    %29 = vector.shape_cast %28 : vector<4x16x16xf32> to vector<64x16xf32>
    %c2_32 = arith.constant 2 : index
    %c0_33 = arith.constant 0 : index
    %c0_34 = arith.constant 0 : index
    %30 = vector.load %arg3[%c2_32, %c0_33, %c0_34] : memref<3x16x32xf32, #tpu.memory_space<vmem>>, vector<1x16x32xf32>
    %31 = vector.shape_cast %30 : vector<1x16x32xf32> to vector<16x32xf32>
    %cst_35 = arith.constant dense<0.000000e+00> : vector<64x32xf32>
    %32 = tpu.matmul %29, %31, %cst_35 {dimension_numbers = #tpu.dot_dimension_numbers<[1], [0], [0], [1], [0, 0, 1, 1], [], []>} : vector<64x16xf32>, vector<16x32xf32>, vector<64x32xf32> -> vector<64x32xf32>
    %33 = arith.addf %27, %32 : vector<64x32xf32>
    %34 = vector.broadcast %1 : vector<1x32xf32> to vector<64x32xf32>
    %35 = arith.addf %33, %34 : vector<64x32xf32>
    %36 = vector.shape_cast %35 : vector<64x32xf32> to vector<4x16x32xf32>
    %cst_36 = arith.constant dense<0.000000e+00> : vector<4x32xf32>
    %37 = vector.multi_reduction <add>, %36, %cst_36 [1] : vector<4x16x32xf32> to vector<4x32xf32>
    %cst_37 = arith.constant dense<0.000000e+00> : vector<4x8xf32>
    %38 = tpu.matmul %37, %8, %cst_37 {dimension_numbers = #tpu.dot_dimension_numbers<[1], [0], [0], [1], [0, 0, 1, 1], [], []>} : vector<4x32xf32>, vector<32x8xf32>, vector<4x8xf32> -> vector<4x8xf32>
    %cst_38 = arith.constant 1.562500e-02 : f32
    %39 = vector.broadcast %cst_38 : f32 to vector<4x8xf32>
    %40 = arith.mulf %38, %39 : vector<4x8xf32>
    %cst_39 = arith.constant dense<0.000000e+00> : vector<4x32xf32>
    %41 = tpu.matmul %40, %9, %cst_39 {dimension_numbers = #tpu.dot_dimension_numbers<[1], [0], [0], [1], [0, 0, 1, 1], [], []>} : vector<4x8xf32>, vector<8x32xf32>, vector<4x32xf32> -> vector<4x32xf32>
    %42 = vector.shape_cast %41 : vector<4x32xf32> to vector<4x1x32xf32>
    %43 = vector.broadcast %42 : vector<4x1x32xf32> to vector<4x16x32xf32>
    %44 = arith.subf %36, %43 : vector<4x16x32xf32>
    %45 = arith.mulf %44, %44 : vector<4x16x32xf32>
    %cst_40 = arith.constant dense<0.000000e+00> : vector<4x32xf32>
    %46 = vector.multi_reduction <add>, %45, %cst_40 [1] : vector<4x16x32xf32> to vector<4x32xf32>
    %cst_41 = arith.constant dense<0.000000e+00> : vector<4x8xf32>
    %47 = tpu.matmul %46, %8, %cst_41 {dimension_numbers = #tpu.dot_dimension_numbers<[1], [0], [0], [1], [0, 0, 1, 1], [], []>} : vector<4x32xf32>, vector<32x8xf32>, vector<4x8xf32> -> vector<4x8xf32>
    %cst_42 = arith.constant 1.562500e-02 : f32
    %48 = vector.broadcast %cst_42 : f32 to vector<4x8xf32>
    %49 = arith.mulf %47, %48 : vector<4x8xf32>
    %cst_43 = arith.constant 9.99999974E-6 : f32
    %50 = vector.broadcast %cst_43 : f32 to vector<4x8xf32>
    %51 = arith.addf %49, %50 : vector<4x8xf32>
    %52 = math.rsqrt %51 : vector<4x8xf32>
    %cst_44 = arith.constant dense<0.000000e+00> : vector<4x32xf32>
    %53 = tpu.matmul %52, %9, %cst_44 {dimension_numbers = #tpu.dot_dimension_numbers<[1], [0], [0], [1], [0, 0, 1, 1], [], []>} : vector<4x8xf32>, vector<8x32xf32>, vector<4x32xf32> -> vector<4x32xf32>
    %54 = vector.broadcast %2 : vector<1x32xf32> to vector<4x32xf32>
    %55 = arith.mulf %53, %54 : vector<4x32xf32>
    %56 = vector.shape_cast %55 : vector<4x32xf32> to vector<4x1x32xf32>
    %57 = vector.broadcast %56 : vector<4x1x32xf32> to vector<4x16x32xf32>
    %58 = arith.mulf %44, %57 : vector<4x16x32xf32>
    %59 = vector.shape_cast %3 : vector<1x32xf32> to vector<1x1x32xf32>
    %60 = vector.broadcast %59 : vector<1x1x32xf32> to vector<4x16x32xf32>
    %61 = arith.addf %58, %60 : vector<4x16x32xf32>
    %cst_45 = arith.constant 2.000000e+01 : f32
    %62 = vector.broadcast %cst_45 : f32 to vector<4x16x32xf32>
    %63 = arith.minimumf %61, %62 : vector<4x16x32xf32>
    %64 = math.exp %63 : vector<4x16x32xf32>
    %cst_46 = arith.constant 1.000000e+00 : f32
    %65 = vector.broadcast %cst_46 : f32 to vector<4x16x32xf32>
    %66 = arith.addf %65, %64 : vector<4x16x32xf32>
    %67 = arith.mulf %66, %66 : vector<4x16x32xf32>
    %cst_47 = arith.constant 1.000000e+00 : f32
    %68 = vector.broadcast %cst_47 : f32 to vector<4x16x32xf32>
    %69 = arith.subf %67, %68 : vector<4x16x32xf32>
    %70 = arith.mulf %61, %69 : vector<4x16x32xf32>
    %cst_48 = arith.constant 1.000000e+00 : f32
    %71 = vector.broadcast %cst_48 : f32 to vector<4x16x32xf32>
    %72 = arith.addf %67, %71 : vector<4x16x32xf32>
    %73 = tpu.reciprocal %72 {approx = true} : vector<4x16x32xf32> -> vector<4x16x32xf32>
    %74 = arith.mulf %70, %73 : vector<4x16x32xf32>
    %c0_49 = arith.constant 0 : index
    %c0_50 = arith.constant 0 : index
    %c0_51 = arith.constant 0 : index
    %75 = vector.load %arg2[%c0_49, %c0_50, %c0_51] : memref<4x2x32xf32, #tpu.memory_space<vmem>>, vector<4x2x32xf32>
    %76 = vector.extract_strided_slice %75 {offsets = [0, 0, 0], sizes = [4, 1, 32], strides = [1, 1, 1]} : vector<4x2x32xf32> to vector<4x1x32xf32>
    %77 = vector.broadcast %76 : vector<4x1x32xf32> to vector<4x16x32xf32>
    %78 = arith.mulf %77, %74 : vector<4x16x32xf32>
    %79 = vector.extract_strided_slice %75 {offsets = [0, 1, 0], sizes = [4, 1, 32], strides = [1, 1, 1]} : vector<4x2x32xf32> to vector<4x1x32xf32>
    %80 = vector.broadcast %79 : vector<4x1x32xf32> to vector<4x16x32xf32>
    %81 = arith.addf %78, %80 : vector<4x16x32xf32>
    %cst_52 = arith.constant 0.000000e+00 : f32
    %82 = vector.broadcast %cst_52 : f32 to vector<4x1x32xf32>
    %c0_53 = arith.constant 0 : index
    %c0_54 = arith.constant 0 : index
    %c0_55 = arith.constant 0 : index
    %83 = vector.load %arg11[%c0_53, %c0_54, %c0_55] : memref<4x18x32xf32, #tpu.memory_space<vmem>>, vector<4x1x32xf32>
    tpu.vector_store %arg11[%c0_53, %c0_54, %c0_55], %82 {strides = array<i32>} : memref<4x18x32xf32, #tpu.memory_space<vmem>>, vector<4x1x32xf32>,
    %c0_56 = arith.constant 0 : index
    %c17_57 = arith.constant 17 : index
    %c0_58 = arith.constant 0 : index
    %84 = vector.load %arg11[%c0_56, %c17_57, %c0_58] : memref<4x18x32xf32, #tpu.memory_space<vmem>>, vector<4x1x32xf32>
    tpu.vector_store %arg11[%c0_56, %c17_57, %c0_58], %82 {strides = array<i32>} : memref<4x18x32xf32, #tpu.memory_space<vmem>>, vector<4x1x32xf32>,
    %c0_59 = arith.constant 0 : index
    %c1_60 = arith.constant 1 : index
    %c0_61 = arith.constant 0 : index
    %85 = vector.load %arg11[%c0_59, %c1_60, %c0_61] : memref<4x18x32xf32, #tpu.memory_space<vmem>>, vector<4x16x32xf32>
    tpu.vector_store %arg11[%c0_59, %c1_60, %c0_61], %81 {strides = array<i32>} : memref<4x18x32xf32, #tpu.memory_space<vmem>>, vector<4x16x32xf32>,
    %cst_62 = arith.constant 0.000000e+00 : f32
    %86 = vector.broadcast %cst_62 : f32 to vector<64x32xf32>
    %c0_63 = arith.constant 0 : index
    %c0_64 = arith.constant 0 : index
    %c0_65 = arith.constant 0 : index
    %87 = vector.load %arg11[%c0_63, %c0_64, %c0_65] : memref<4x18x32xf32, #tpu.memory_space<vmem>>, vector<4x16x32xf32>
    %88 = vector.shape_cast %87 : vector<4x16x32xf32> to vector<64x32xf32>
    %c0_66 = arith.constant 0 : index
    %c0_67 = arith.constant 0 : index
    %c0_68 = arith.constant 0 : index
    %89 = vector.load %arg4[%c0_66, %c0_67, %c0_68] : memref<3x32x32xf32, #tpu.memory_space<vmem>>, vector<1x32x32xf32>
    %90 = vector.shape_cast %89 : vector<1x32x32xf32> to vector<32x32xf32>
    %cst_69 = arith.constant dense<0.000000e+00> : vector<64x32xf32>
    %91 = tpu.matmul %88, %90, %cst_69 {dimension_numbers = #tpu.dot_dimension_numbers<[1], [0], [0], [1], [0, 0, 1, 1], [], []>} : vector<64x32xf32>, vector<32x32xf32>, vector<64x32xf32> -> vector<64x32xf32>
    %92 = arith.addf %86, %91 : vector<64x32xf32>
    %c0_70 = arith.constant 0 : index
    %c1_71 = arith.constant 1 : index
    %c0_72 = arith.constant 0 : index
    %93 = vector.load %arg11[%c0_70, %c1_71, %c0_72] : memref<4x18x32xf32, #tpu.memory_space<vmem>>, vector<4x16x32xf32>
    %94 = vector.shape_cast %93 : vector<4x16x32xf32> to vector<64x32xf32>
    %c1_73 = arith.constant 1 : index
    %c0_74 = arith.constant 0 : index
    %c0_75 = arith.constant 0 : index
    %95 = vector.load %arg4[%c1_73, %c0_74, %c0_75] : memref<3x32x32xf32, #tpu.memory_space<vmem>>, vector<1x32x32xf32>
    %96 = vector.shape_cast %95 : vector<1x32x32xf32> to vector<32x32xf32>
    %cst_76 = arith.constant dense<0.000000e+00> : vector<64x32xf32>
    %97 = tpu.matmul %94, %96, %cst_76 {dimension_numbers = #tpu.dot_dimension_numbers<[1], [0], [0], [1], [0, 0, 1, 1], [], []>} : vector<64x32xf32>, vector<32x32xf32>, vector<64x32xf32> -> vector<64x32xf32>
    %98 = arith.addf %92, %97 : vector<64x32xf32>
    %c0_77 = arith.constant 0 : index
    %c2_78 = arith.constant 2 : index
    %c0_79 = arith.constant 0 : index
    %99 = vector.load %arg11[%c0_77, %c2_78, %c0_79] : memref<4x18x32xf32, #tpu.memory_space<vmem>>, vector<4x16x32xf32>
    %100 = vector.shape_cast %99 : vector<4x16x32xf32> to vector<64x32xf32>
    %c2_80 = arith.constant 2 : index
    %c0_81 = arith.constant 0 : index
    %c0_82 = arith.constant 0 : index
    %101 = vector.load %arg4[%c2_80, %c0_81, %c0_82] : memref<3x32x32xf32, #tpu.memory_space<vmem>>, vector<1x32x32xf32>
    %102 = vector.shape_cast %101 : vector<1x32x32xf32> to vector<32x32xf32>
    %cst_83 = arith.constant dense<0.000000e+00> : vector<64x32xf32>
    %103 = tpu.matmul %100, %102, %cst_83 {dimension_numbers = #tpu.dot_dimension_numbers<[1], [0], [0], [1], [0, 0, 1, 1], [], []>} : vector<64x32xf32>, vector<32x32xf32>, vector<64x32xf32> -> vector<64x32xf32>
    %104 = arith.addf %98, %103 : vector<64x32xf32>
    %105 = vector.broadcast %4 : vector<1x32xf32> to vector<64x32xf32>
    %106 = arith.addf %104, %105 : vector<64x32xf32>
    %107 = vector.shape_cast %106 : vector<64x32xf32> to vector<4x16x32xf32>
    %cst_84 = arith.constant dense<0.000000e+00> : vector<4x32xf32>
    %108 = vector.multi_reduction <add>, %107, %cst_84 [1] : vector<4x16x32xf32> to vector<4x32xf32>
    %cst_85 = arith.constant dense<0.000000e+00> : vector<4x8xf32>
    %109 = tpu.matmul %108, %8, %cst_85 {dimension_numbers = #tpu.dot_dimension_numbers<[1], [0], [0], [1], [0, 0, 1, 1], [], []>} : vector<4x32xf32>, vector<32x8xf32>, vector<4x8xf32> -> vector<4x8xf32>
    %cst_86 = arith.constant 1.562500e-02 : f32
    %110 = vector.broadcast %cst_86 : f32 to vector<4x8xf32>
    %111 = arith.mulf %109, %110 : vector<4x8xf32>
    %cst_87 = arith.constant dense<0.000000e+00> : vector<4x32xf32>
    %112 = tpu.matmul %111, %9, %cst_87 {dimension_numbers = #tpu.dot_dimension_numbers<[1], [0], [0], [1], [0, 0, 1, 1], [], []>} : vector<4x8xf32>, vector<8x32xf32>, vector<4x32xf32> -> vector<4x32xf32>
    %113 = vector.shape_cast %112 : vector<4x32xf32> to vector<4x1x32xf32>
    %114 = vector.broadcast %113 : vector<4x1x32xf32> to vector<4x16x32xf32>
    %115 = arith.subf %107, %114 : vector<4x16x32xf32>
    %116 = arith.mulf %115, %115 : vector<4x16x32xf32>
    %cst_88 = arith.constant dense<0.000000e+00> : vector<4x32xf32>
    %117 = vector.multi_reduction <add>, %116, %cst_88 [1] : vector<4x16x32xf32> to vector<4x32xf32>
    %cst_89 = arith.constant dense<0.000000e+00> : vector<4x8xf32>
    %118 = tpu.matmul %117, %8, %cst_89 {dimension_numbers = #tpu.dot_dimension_numbers<[1], [0], [0], [1], [0, 0, 1, 1], [], []>} : vector<4x32xf32>, vector<32x8xf32>, vector<4x8xf32> -> vector<4x8xf32>
    %cst_90 = arith.constant 1.562500e-02 : f32
    %119 = vector.broadcast %cst_90 : f32 to vector<4x8xf32>
    %120 = arith.mulf %118, %119 : vector<4x8xf32>
    %cst_91 = arith.constant 9.99999974E-6 : f32
    %121 = vector.broadcast %cst_91 : f32 to vector<4x8xf32>
    %122 = arith.addf %120, %121 : vector<4x8xf32>
    %123 = math.rsqrt %122 : vector<4x8xf32>
    %cst_92 = arith.constant dense<0.000000e+00> : vector<4x32xf32>
    %124 = tpu.matmul %123, %9, %cst_92 {dimension_numbers = #tpu.dot_dimension_numbers<[1], [0], [0], [1], [0, 0, 1, 1], [], []>} : vector<4x8xf32>, vector<8x32xf32>, vector<4x32xf32> -> vector<4x32xf32>
    %125 = vector.broadcast %5 : vector<1x32xf32> to vector<4x32xf32>
    %126 = arith.mulf %124, %125 : vector<4x32xf32>
    %127 = vector.shape_cast %126 : vector<4x32xf32> to vector<4x1x32xf32>
    %128 = vector.broadcast %127 : vector<4x1x32xf32> to vector<4x16x32xf32>
    %129 = arith.mulf %115, %128 : vector<4x16x32xf32>
    %130 = vector.shape_cast %6 : vector<1x32xf32> to vector<1x1x32xf32>
    %131 = vector.broadcast %130 : vector<1x1x32xf32> to vector<4x16x32xf32>
    %132 = arith.addf %129, %131 : vector<4x16x32xf32>
    %cst_93 = arith.constant 2.000000e+01 : f32
    %133 = vector.broadcast %cst_93 : f32 to vector<4x16x32xf32>
    %134 = arith.minimumf %132, %133 : vector<4x16x32xf32>
    %135 = math.exp %134 : vector<4x16x32xf32>
    %cst_94 = arith.constant 1.000000e+00 : f32
    %136 = vector.broadcast %cst_94 : f32 to vector<4x16x32xf32>
    %137 = arith.addf %136, %135 : vector<4x16x32xf32>
    %138 = arith.mulf %137, %137 : vector<4x16x32xf32>
    %cst_95 = arith.constant 1.000000e+00 : f32
    %139 = vector.broadcast %cst_95 : f32 to vector<4x16x32xf32>
    %140 = arith.subf %138, %139 : vector<4x16x32xf32>
    %141 = arith.mulf %132, %140 : vector<4x16x32xf32>
    %cst_96 = arith.constant 1.000000e+00 : f32
    %142 = vector.broadcast %cst_96 : f32 to vector<4x16x32xf32>
    %143 = arith.addf %138, %142 : vector<4x16x32xf32>
    %144 = tpu.reciprocal %143 {approx = true} : vector<4x16x32xf32> -> vector<4x16x32xf32>
    %145 = arith.mulf %141, %144 : vector<4x16x32xf32>
    %146 = vector.shape_cast %10 : vector<4x16x16xf32> to vector<64x16xf32>
    %c0_97 = arith.constant 0 : index
    %c0_98 = arith.constant 0 : index
    %147 = vector.load %arg5[%c0_97, %c0_98] : memref<16x32xf32, #tpu.memory_space<vmem>>, vector<16x32xf32>
    %cst_99 = arith.constant dense<0.000000e+00> : vector<64x32xf32>
    %148 = tpu.matmul %146, %147, %cst_99 {dimension_numbers = #tpu.dot_dimension_numbers<[1], [0], [0], [1], [0, 0, 1, 1], [], []>} : vector<64x16xf32>, vector<16x32xf32>, vector<64x32xf32> -> vector<64x32xf32>
    %149 = vector.shape_cast %148 : vector<64x32xf32> to vector<4x16x32xf32>
    %150 = vector.shape_cast %7 : vector<1x32xf32> to vector<1x1x32xf32>
    %151 = vector.broadcast %150 : vector<1x1x32xf32> to vector<4x16x32xf32>
    %152 = arith.addf %149, %151 : vector<4x16x32xf32>
    %153 = arith.addf %145, %152 : vector<4x16x32xf32>
    %c0_100 = arith.constant 0 : index
    %c0_101 = arith.constant 0 : index
    %c0_102 = arith.constant 0 : index
    %154 = vector.load %arg9[%c0_100, %c0_101, %c0_102] : memref<4x16x32xf32, #tpu.memory_space<vmem>>, vector<4x16x32xf32>
    tpu.vector_store %arg9[%c0_100, %c0_101, %c0_102], %153 {strides = array<i32>} : memref<4x16x32xf32, #tpu.memory_space<vmem>>, vector<4x16x32xf32>,
    return
  }
  func.func @transform_0(%arg0: i32) -> (i32, i32, i32) {
    %c0_i32 = arith.constant 0 : i32
    %c0_i32_0 = arith.constant 0 : i32
    %c0_i32_1 = arith.constant 0 : i32
    return %arg0, %c0_i32, %c0_i32_0 : i32, i32, i32
  }
  func.func @transform_1(%arg0: i32) -> (i32, i32, i32) {
    %c0_i32 = arith.constant 0 : i32
    %c0_i32_0 = arith.constant 0 : i32
    %c0_i32_1 = arith.constant 0 : i32
    return %arg0, %c0_i32, %c0_i32_0 : i32, i32, i32
  }
  func.func @transform_2(%arg0: i32) -> (i32, i32, i32) {
    %c0_i32 = arith.constant 0 : i32
    %c0_i32_0 = arith.constant 0 : i32
    %c0_i32_1 = arith.constant 0 : i32
    %c0_i32_2 = arith.constant 0 : i32
    return %c0_i32, %c0_i32_0, %c0_i32_1 : i32, i32, i32
  }
  func.func @transform_3(%arg0: i32) -> (i32, i32, i32) {
    %c0_i32 = arith.constant 0 : i32
    %c0_i32_0 = arith.constant 0 : i32
    %c0_i32_1 = arith.constant 0 : i32
    %c0_i32_2 = arith.constant 0 : i32
    return %c0_i32, %c0_i32_0, %c0_i32_1 : i32, i32, i32
  }
  func.func @transform_4(%arg0: i32) -> (i32, i32) {
    %c0_i32 = arith.constant 0 : i32
    %c0_i32_0 = arith.constant 0 : i32
    %c0_i32_1 = arith.constant 0 : i32
    return %c0_i32, %c0_i32_0 : i32, i32
  }
  func.func @transform_5(%arg0: i32) -> (i32, i32) {
    %c0_i32 = arith.constant 0 : i32
    %c0_i32_0 = arith.constant 0 : i32
    %c0_i32_1 = arith.constant 0 : i32
    return %c0_i32, %c0_i32_0 : i32, i32
  }
  func.func @transform_6(%arg0: i32) -> (i32, i32) {
    %c0_i32 = arith.constant 0 : i32
    %c0_i32_0 = arith.constant 0 : i32
    %c0_i32_1 = arith.constant 0 : i32
    return %c0_i32, %c0_i32_0 : i32, i32
  }
  func.func @transform_7(%arg0: i32) -> (i32, i32) {
    %c0_i32 = arith.constant 0 : i32
    %c0_i32_0 = arith.constant 0 : i32
    %c0_i32_1 = arith.constant 0 : i32
    return %c0_i32, %c0_i32_0 : i32, i32
  }
  func.func @transform_8(%arg0: i32) -> (i32, i32, i32) {
    %c0_i32 = arith.constant 0 : i32
    %c0_i32_0 = arith.constant 0 : i32
    %c0_i32_1 = arith.constant 0 : i32
    return %arg0, %c0_i32, %c0_i32_0 : i32, i32, i32
  }
}

module attributes {stable_mosaic.version = 11 : i64} {
  func.func @kernel(%arg0: i32, %arg1: memref<4x16x16xf32, #tpu.memory_space<vmem>>, %arg2: memref<4x2x32xf32, #tpu.memory_space<vmem>>, %arg3: memref<3x16x32xf32, #tpu.memory_space<vmem>>, %arg4: memref<3x32x32xf32, #tpu.memory_space<vmem>>, %arg5: memref<16x32xf32, #tpu.memory_space<vmem>>, %arg6: memref<8x32xf32, #tpu.memory_space<vmem>>, %arg7: memref<32x8xf32, #tpu.memory_space<vmem>>, %arg8: memref<8x32xf32, #tpu.memory_space<vmem>>, %arg9: memref<4x16x32xf32, #tpu.memory_space<vmem>>, %arg10: memref<4x18x16xf32, #tpu.memory_space<vmem>>, %arg11: memref<4x18x32xf32, #tpu.memory_space<vmem>>) attributes {dimension_semantics = [#tpu.dimension_semantics<parallel>], iteration_bounds = array<i64: 2>, scalar_prefetch = 0 : i64, scratch_operands = 2 : i64, tpu.core_type = #tpu.core_type<tc>, window_params = [{transform_indices = @transform_0, window_bounds = array<i64: 4, 16, 16>}, {transform_indices = @transform_1, window_bounds = array<i64: 4, 2, 32>}, {pipeline_mode = #tpu.pipeline_mode<synchronous>, transform_indices = @transform_2, window_bounds = array<i64: 3, 16, 32>}, {pipeline_mode = #tpu.pipeline_mode<synchronous>, transform_indices = @transform_3, window_bounds = array<i64: 3, 32, 32>}, {pipeline_mode = #tpu.pipeline_mode<synchronous>, transform_indices = @transform_4, window_bounds = array<i64: 16, 32>}, {pipeline_mode = #tpu.pipeline_mode<synchronous>, transform_indices = @transform_5, window_bounds = array<i64: 8, 32>}, {pipeline_mode = #tpu.pipeline_mode<synchronous>, transform_indices = @transform_6, window_bounds = array<i64: 32, 8>}, {pipeline_mode = #tpu.pipeline_mode<synchronous>, transform_indices = @transform_7, window_bounds = array<i64: 8, 32>}, {transform_indices = @transform_8, window_bounds = array<i64: 4, 16, 32>}]} {
    %c0 = arith.constant 0 : index
    %c0_0 = arith.constant 0 : index
    %0 = vector.load %arg6[%c0, %c0_0] : memref<8x32xf32, #tpu.memory_space<vmem>>, vector<8x32xf32>
    %1 = vector.extract_strided_slice %0 {offsets = [0, 0], sizes = [1, 32], strides = [1, 1]} : vector<8x32xf32> to vector<1x32xf32>
    %2 = vector.extract_strided_slice %0 {offsets = [1, 0], sizes = [1, 32], strides = [1, 1]} : vector<8x32xf32> to vector<1x32xf32>
    %3 = vector.extract_strided_slice %0 {offsets = [2, 0], sizes = [1, 32], strides = [1, 1]} : vector<8x32xf32> to vector<1x32xf32>
    %4 = vector.extract_strided_slice %0 {offsets = [3, 0], sizes = [1, 32], strides = [1, 1]} : vector<8x32xf32> to vector<1x32xf32>
    %5 = vector.extract_strided_slice %0 {offsets = [4, 0], sizes = [1, 32], strides = [1, 1]} : vector<8x32xf32> to vector<1x32xf32>
    %6 = vector.extract_strided_slice %0 {offsets = [5, 0], sizes = [1, 32], strides = [1, 1]} : vector<8x32xf32> to vector<1x32xf32>
    %7 = vector.extract_strided_slice %0 {offsets = [6, 0], sizes = [1, 32], strides = [1, 1]} : vector<8x32xf32> to vector<1x32xf32>
    %c0_1 = arith.constant 0 : index
    %c0_2 = arith.constant 0 : index
    %8 = vector.load %arg7[%c0_1, %c0_2] : memref<32x8xf32, #tpu.memory_space<vmem>>, vector<32x8xf32>
    %c0_3 = arith.constant 0 : index
    %c0_4 = arith.constant 0 : index
    %9 = vector.load %arg8[%c0_3, %c0_4] : memref<8x32xf32, #tpu.memory_space<vmem>>, vector<8x32xf32>
    %c0_5 = arith.constant 0 : index
    %c0_6 = arith.constant 0 : index
    %c0_7 = arith.constant 0 : index
    %10 = vector.load %arg1[%c0_5, %c0_6, %c0_7] : memref<4x16x16xf32, #tpu.memory_space<vmem>>, vector<4x16x16xf32>
    %cst = arith.constant 0.000000e+00 : f32
    %11 = vector.broadcast %cst : f32 to vector<4x1x16xf32>
    %c0_8 = arith.constant 0 : index
    %c0_9 = arith.constant 0 : index
    %c0_10 = arith.constant 0 : index
    %12 = vector.load %arg10[%c0_8, %c0_9, %c0_10] : memref<4x18x16xf32, #tpu.memory_space<vmem>>, vector<4x1x16xf32>
    tpu.vector_store %arg10[%c0_8, %c0_9, %c0_10], %11 {strides = array<i32>} : memref<4x18x16xf32, #tpu.memory_space<vmem>>, vector<4x1x16xf32>,
    %c0_11 = arith.constant 0 : index
    %c17 = arith.constant 17 : index
    %c0_12 = arith.constant 0 : index
    %13 = vector.load %arg10[%c0_11, %c17, %c0_12] : memref<4x18x16xf32, #tpu.memory_space<vmem>>, vector<4x1x16xf32>
    tpu.vector_store %arg10[%c0_11, %c17, %c0_12], %11 {strides = array<i32>} : memref<4x18x16xf32, #tpu.memory_space<vmem>>, vector<4x1x16xf32>,
    %c0_13 = arith.constant 0 : index
    %c1 = arith.constant 1 : index
    %c0_14 = arith.constant 0 : index
    %14 = vector.load %arg10[%c0_13, %c1, %c0_14] : memref<4x18x16xf32, #tpu.memory_space<vmem>>, vector<4x16x16xf32>
    tpu.vector_store %arg10[%c0_13, %c1, %c0_14], %10 {strides = array<i32>} : memref<4x18x16xf32, #tpu.memory_space<vmem>>, vector<4x16x16xf32>,
    %cst_15 = arith.constant 0.000000e+00 : f32
    %15 = vector.broadcast %cst_15 : f32 to vector<64x32xf32>
    %c0_16 = arith.constant 0 : index
    %c0_17 = arith.constant 0 : index
    %c0_18 = arith.constant 0 : index
    %16 = vector.load %arg10[%c0_16, %c0_17, %c0_18] : memref<4x18x16xf32, #tpu.memory_space<vmem>>, vector<4x16x16xf32>
    %17 = vector.shape_cast %16 : vector<4x16x16xf32> to vector<64x16xf32>
    %c0_19 = arith.constant 0 : index
    %c0_20 = arith.constant 0 : index
    %c0_21 = arith.constant 0 : index
    %18 = vector.load %arg3[%c0_19, %c0_20, %c0_21] : memref<3x16x32xf32, #tpu.memory_space<vmem>>, vector<1x16x32xf32>
    %19 = vector.shape_cast %18 : vector<1x16x32xf32> to vector<16x32xf32>
    %cst_22 = arith.constant dense<0.000000e+00> : vector<64x32xf32>
    %20 = tpu.matmul %17, %19, %cst_22 {dimension_numbers = #tpu.dot_dimension_numbers<[1], [0], [0], [1], [0, 0, 1, 1], [], []>} : vector<64x16xf32>, vector<16x32xf32>, vector<64x32xf32> -> vector<64x32xf32>
    %21 = arith.addf %15, %20 : vector<64x32xf32>
    %c0_23 = arith.constant 0 : index
    %c1_24 = arith.constant 1 : index
    %c0_25 = arith.constant 0 : index
    %22 = vector.load %arg10[%c0_23, %c1_24, %c0_25] : memref<4x18x16xf32, #tpu.memory_space<vmem>>, vector<4x16x16xf32>
    %23 = vector.shape_cast %22 : vector<4x16x16xf32> to vector<64x16xf32>
    %c1_26 = arith.constant 1 : index
    %c0_27 = arith.constant 0 : index
    %c0_28 = arith.constant 0 : index
    %24 = vector.load %arg3[%c1_26, %c0_27, %c0_28] : memref<3x16x32xf32, #tpu.memory_space<vmem>>, vector<1x16x32xf32>
    %25 = vector.shape_cast %24 : vector<1x16x32xf32> to vector<16x32xf32>
    %cst_29 = arith.constant dense<0.000000e+00> : vector<64x32xf32>
    %26 = tpu.matmul %23, %25, %cst_29 {dimension_numbers = #tpu.dot_dimension_numbers<[1], [0], [0], [1], [0, 0, 1, 1], [], []>} : vector<64x16xf32>, vector<16x32xf32>, vector<64x32xf32> -> vector<64x32xf32>
    %27 = arith.addf %21, %26 : vector<64x32xf32>
    %c0_30 = arith.constant 0 : index
    %c2 = arith.constant 2 : index
    %c0_31 = arith.constant 0 : index
    %28 = vector.load %arg10[%c0_30, %c2, %c0_31] : memref<4x18x16xf32, #tpu.memory_space<vmem>>, vector<4x16x16xf32>
    %29 = vector.shape_cast %28 : vector<4x16x16xf32> to vector<64x16xf32>
    %c2_32 = arith.constant 2 : index
    %c0_33 = arith.constant 0 : index
    %c0_34 = arith.constant 0 : index
    %30 = vector.load %arg3[%c2_32, %c0_33, %c0_34] : memref<3x16x32xf32, #tpu.memory_space<vmem>>, vector<1x16x32xf32>
    %31 = vector.shape_cast %30 : vector<1x16x32xf32> to vector<16x32xf32>
    %cst_35 = arith.constant dense<0.000000e+00> : vector<64x32xf32>
    %32 = tpu.matmul %29, %31, %cst_35 {dimension_numbers = #tpu.dot_dimension_numbers<[1], [0], [0], [1], [0, 0, 1, 1], [], []>} : vector<64x16xf32>, vector<16x32xf32>, vector<64x32xf32> -> vector<64x32xf32>
    %33 = arith.addf %27, %32 : vector<64x32xf32>
    %34 = vector.broadcast %1 : vector<1x32xf32> to vector<64x32xf32>
    %35 = arith.addf %33, %34 : vector<64x32xf32>
    %36 = vector.shape_cast %35 : vector<64x32xf32> to vector<4x16x32xf32>
    %cst_36 = arith.constant dense<0.000000e+00> : vector<4x32xf32>
    %37 = vector.multi_reduction <add>, %36, %cst_36 [1] : vector<4x16x32xf32> to vector<4x32xf32>
    %cst_37 = arith.constant dense<0.000000e+00> : vector<4x8xf32>
    %38 = tpu.matmul %37, %8, %cst_37 {dimension_numbers = #tpu.dot_dimension_numbers<[1], [0], [0], [1], [0, 0, 1, 1], [], []>} : vector<4x32xf32>, vector<32x8xf32>, vector<4x8xf32> -> vector<4x8xf32>
    %cst_38 = arith.constant 1.562500e-02 : f32
    %39 = vector.broadcast %cst_38 : f32 to vector<4x8xf32>
    %40 = arith.mulf %38, %39 : vector<4x8xf32>
    %cst_39 = arith.constant dense<0.000000e+00> : vector<4x32xf32>
    %41 = tpu.matmul %40, %9, %cst_39 {dimension_numbers = #tpu.dot_dimension_numbers<[1], [0], [0], [1], [0, 0, 1, 1], [], []>} : vector<4x8xf32>, vector<8x32xf32>, vector<4x32xf32> -> vector<4x32xf32>
    %42 = vector.shape_cast %41 : vector<4x32xf32> to vector<4x1x32xf32>
    %43 = vector.broadcast %42 : vector<4x1x32xf32> to vector<4x16x32xf32>
    %44 = arith.subf %36, %43 : vector<4x16x32xf32>
    %45 = arith.mulf %44, %44 : vector<4x16x32xf32>
    %cst_40 = arith.constant dense<0.000000e+00> : vector<4x32xf32>
    %46 = vector.multi_reduction <add>, %45, %cst_40 [1] : vector<4x16x32xf32> to vector<4x32xf32>
    %cst_41 = arith.constant dense<0.000000e+00> : vector<4x8xf32>
    %47 = tpu.matmul %46, %8, %cst_41 {dimension_numbers = #tpu.dot_dimension_numbers<[1], [0], [0], [1], [0, 0, 1, 1], [], []>} : vector<4x32xf32>, vector<32x8xf32>, vector<4x8xf32> -> vector<4x8xf32>
    %cst_42 = arith.constant 1.562500e-02 : f32
    %48 = vector.broadcast %cst_42 : f32 to vector<4x8xf32>
    %49 = arith.mulf %47, %48 : vector<4x8xf32>
    %cst_43 = arith.constant 9.99999974E-6 : f32
    %50 = vector.broadcast %cst_43 : f32 to vector<4x8xf32>
    %51 = arith.addf %49, %50 : vector<4x8xf32>
    %52 = math.rsqrt %51 : vector<4x8xf32>
    %cst_44 = arith.constant dense<0.000000e+00> : vector<4x32xf32>
    %53 = tpu.matmul %52, %9, %cst_44 {dimension_numbers = #tpu.dot_dimension_numbers<[1], [0], [0], [1], [0, 0, 1, 1], [], []>} : vector<4x8xf32>, vector<8x32xf32>, vector<4x32xf32> -> vector<4x32xf32>
    %54 = vector.broadcast %2 : vector<1x32xf32> to vector<4x32xf32>
    %55 = arith.mulf %53, %54 : vector<4x32xf32>
    %56 = vector.shape_cast %55 : vector<4x32xf32> to vector<4x1x32xf32>
    %57 = vector.broadcast %56 : vector<4x1x32xf32> to vector<4x16x32xf32>
    %58 = arith.mulf %44, %57 : vector<4x16x32xf32>
    %59 = vector.shape_cast %3 : vector<1x32xf32> to vector<1x1x32xf32>
    %60 = vector.broadcast %59 : vector<1x1x32xf32> to vector<4x16x32xf32>
    %61 = arith.addf %58, %60 : vector<4x16x32xf32>
    %cst_45 = arith.constant 2.000000e+01 : f32
    %62 = vector.broadcast %cst_45 : f32 to vector<4x16x32xf32>
    %63 = arith.minimumf %61, %62 : vector<4x16x32xf32>
    %64 = math.exp %63 : vector<4x16x32xf32>
    %cst_46 = arith.constant 1.000000e+00 : f32
    %65 = vector.broadcast %cst_46 : f32 to vector<4x16x32xf32>
    %66 = arith.addf %65, %64 : vector<4x16x32xf32>
    %67 = arith.mulf %66, %66 : vector<4x16x32xf32>
    %cst_47 = arith.constant 1.000000e+00 : f32
    %68 = vector.broadcast %cst_47 : f32 to vector<4x16x32xf32>
    %69 = arith.subf %67, %68 : vector<4x16x32xf32>
    %70 = arith.mulf %61, %69 : vector<4x16x32xf32>
    %cst_48 = arith.constant 1.000000e+00 : f32
    %71 = vector.broadcast %cst_48 : f32 to vector<4x16x32xf32>
    %72 = arith.addf %67, %71 : vector<4x16x32xf32>
    %73 = tpu.reciprocal %72 {approx = true} : vector<4x16x32xf32> -> vector<4x16x32xf32>
    %74 = arith.mulf %70, %73 : vector<4x16x32xf32>
    %c0_49 = arith.constant 0 : index
    %c0_50 = arith.constant 0 : index
    %c0_51 = arith.constant 0 : index
    %75 = vector.load %arg2[%c0_49, %c0_50, %c0_51] : memref<4x2x32xf32, #tpu.memory_space<vmem>>, vector<4x2x32xf32>
    %76 = vector.extract_strided_slice %75 {offsets = [0, 0, 0], sizes = [4, 1, 32], strides = [1, 1, 1]} : vector<4x2x32xf32> to vector<4x1x32xf32>
    %77 = vector.broadcast %76 : vector<4x1x32xf32> to vector<4x16x32xf32>
    %78 = arith.mulf %77, %74 : vector<4x16x32xf32>
    %79 = vector.extract_strided_slice %75 {offsets = [0, 1, 0], sizes = [4, 1, 32], strides = [1, 1, 1]} : vector<4x2x32xf32> to vector<4x1x32xf32>
    %80 = vector.broadcast %79 : vector<4x1x32xf32> to vector<4x16x32xf32>
    %81 = arith.addf %78, %80 : vector<4x16x32xf32>
    %cst_52 = arith.constant 0.000000e+00 : f32
    %82 = vector.broadcast %cst_52 : f32 to vector<4x1x32xf32>
    %c0_53 = arith.constant 0 : index
    %c0_54 = arith.constant 0 : index
    %c0_55 = arith.constant 0 : index
    %83 = vector.load %arg11[%c0_53, %c0_54, %c0_55] : memref<4x18x32xf32, #tpu.memory_space<vmem>>, vector<4x1x32xf32>
    tpu.vector_store %arg11[%c0_53, %c0_54, %c0_55], %82 {strides = array<i32>} : memref<4x18x32xf32, #tpu.memory_space<vmem>>, vector<4x1x32xf32>,
    %c0_56 = arith.constant 0 : index
    %c17_57 = arith.constant 17 : index
    %c0_58 = arith.constant 0 : index
    %84 = vector.load %arg11[%c0_56, %c17_57, %c0_58] : memref<4x18x32xf32, #tpu.memory_space<vmem>>, vector<4x1x32xf32>
    tpu.vector_store %arg11[%c0_56, %c17_57, %c0_58], %82 {strides = array<i32>} : memref<4x18x32xf32, #tpu.memory_space<vmem>>, vector<4x1x32xf32>,
    %c0_59 = arith.constant 0 : index
    %c1_60 = arith.constant 1 : index
    %c0_61 = arith.constant 0 : index
    %85 = vector.load %arg11[%c0_59, %c1_60, %c0_61] : memref<4x18x32xf32, #tpu.memory_space<vmem>>, vector<4x16x32xf32>
    tpu.vector_store %arg11[%c0_59, %c1_60, %c0_61], %81 {strides = array<i32>} : memref<4x18x32xf32, #tpu.memory_space<vmem>>, vector<4x16x32xf32>,
    %cst_62 = arith.constant 0.000000e+00 : f32
    %86 = vector.broadcast %cst_62 : f32 to vector<64x32xf32>
    %c0_63 = arith.constant 0 : index
    %c0_64 = arith.constant 0 : index
    %c0_65 = arith.constant 0 : index
    %87 = vector.load %arg11[%c0_63, %c0_64, %c0_65] : memref<4x18x32xf32, #tpu.memory_space<vmem>>, vector<4x16x32xf32>
    %88 = vector.shape_cast %87 : vector<4x16x32xf32> to vector<64x32xf32>
    %c0_66 = arith.constant 0 : index
    %c0_67 = arith.constant 0 : index
    %c0_68 = arith.constant 0 : index
    %89 = vector.load %arg4[%c0_66, %c0_67, %c0_68] : memref<3x32x32xf32, #tpu.memory_space<vmem>>, vector<1x32x32xf32>
    %90 = vector.shape_cast %89 : vector<1x32x32xf32> to vector<32x32xf32>
    %cst_69 = arith.constant dense<0.000000e+00> : vector<64x32xf32>
    %91 = tpu.matmul %88, %90, %cst_69 {dimension_numbers = #tpu.dot_dimension_numbers<[1], [0], [0], [1], [0, 0, 1, 1], [], []>} : vector<64x32xf32>, vector<32x32xf32>, vector<64x32xf32> -> vector<64x32xf32>
    %92 = arith.addf %86, %91 : vector<64x32xf32>
    %c0_70 = arith.constant 0 : index
    %c1_71 = arith.constant 1 : index
    %c0_72 = arith.constant 0 : index
    %93 = vector.load %arg11[%c0_70, %c1_71, %c0_72] : memref<4x18x32xf32, #tpu.memory_space<vmem>>, vector<4x16x32xf32>
    %94 = vector.shape_cast %93 : vector<4x16x32xf32> to vector<64x32xf32>
    %c1_73 = arith.constant 1 : index
    %c0_74 = arith.constant 0 : index
    %c0_75 = arith.constant 0 : index
    %95 = vector.load %arg4[%c1_73, %c0_74, %c0_75] : memref<3x32x32xf32, #tpu.memory_space<vmem>>, vector<1x32x32xf32>
    %96 = vector.shape_cast %95 : vector<1x32x32xf32> to vector<32x32xf32>
    %cst_76 = arith.constant dense<0.000000e+00> : vector<64x32xf32>
    %97 = tpu.matmul %94, %96, %cst_76 {dimension_numbers = #tpu.dot_dimension_numbers<[1], [0], [0], [1], [0, 0, 1, 1], [], []>} : vector<64x32xf32>, vector<32x32xf32>, vector<64x32xf32> -> vector<64x32xf32>
    %98 = arith.addf %92, %97 : vector<64x32xf32>
    %c0_77 = arith.constant 0 : index
    %c2_78 = arith.constant 2 : index
    %c0_79 = arith.constant 0 : index
    %99 = vector.load %arg11[%c0_77, %c2_78, %c0_79] : memref<4x18x32xf32, #tpu.memory_space<vmem>>, vector<4x16x32xf32>
    %100 = vector.shape_cast %99 : vector<4x16x32xf32> to vector<64x32xf32>
    %c2_80 = arith.constant 2 : index
    %c0_81 = arith.constant 0 : index
    %c0_82 = arith.constant 0 : index
    %101 = vector.load %arg4[%c2_80, %c0_81, %c0_82] : memref<3x32x32xf32, #tpu.memory_space<vmem>>, vector<1x32x32xf32>
    %102 = vector.shape_cast %101 : vector<1x32x32xf32> to vector<32x32xf32>
    %cst_83 = arith.constant dense<0.000000e+00> : vector<64x32xf32>
    %103 = tpu.matmul %100, %102, %cst_83 {dimension_numbers = #tpu.dot_dimension_numbers<[1], [0], [0], [1], [0, 0, 1, 1], [], []>} : vector<64x32xf32>, vector<32x32xf32>, vector<64x32xf32> -> vector<64x32xf32>
    %104 = arith.addf %98, %103 : vector<64x32xf32>
    %105 = vector.broadcast %4 : vector<1x32xf32> to vector<64x32xf32>
    %106 = arith.addf %104, %105 : vector<64x32xf32>
    %107 = vector.shape_cast %106 : vector<64x32xf32> to vector<4x16x32xf32>
    %cst_84 = arith.constant dense<0.000000e+00> : vector<4x32xf32>
    %108 = vector.multi_reduction <add>, %107, %cst_84 [1] : vector<4x16x32xf32> to vector<4x32xf32>
    %cst_85 = arith.constant dense<0.000000e+00> : vector<4x8xf32>
    %109 = tpu.matmul %108, %8, %cst_85 {dimension_numbers = #tpu.dot_dimension_numbers<[1], [0], [0], [1], [0, 0, 1, 1], [], []>} : vector<4x32xf32>, vector<32x8xf32>, vector<4x8xf32> -> vector<4x8xf32>
    %cst_86 = arith.constant 1.562500e-02 : f32
    %110 = vector.broadcast %cst_86 : f32 to vector<4x8xf32>
    %111 = arith.mulf %109, %110 : vector<4x8xf32>
    %cst_87 = arith.constant dense<0.000000e+00> : vector<4x32xf32>
    %112 = tpu.matmul %111, %9, %cst_87 {dimension_numbers = #tpu.dot_dimension_numbers<[1], [0], [0], [1], [0, 0, 1, 1], [], []>} : vector<4x8xf32>, vector<8x32xf32>, vector<4x32xf32> -> vector<4x32xf32>
    %113 = vector.shape_cast %112 : vector<4x32xf32> to vector<4x1x32xf32>
    %114 = vector.broadcast %113 : vector<4x1x32xf32> to vector<4x16x32xf32>
    %115 = arith.subf %107, %114 : vector<4x16x32xf32>
    %116 = arith.mulf %115, %115 : vector<4x16x32xf32>
    %cst_88 = arith.constant dense<0.000000e+00> : vector<4x32xf32>
    %117 = vector.multi_reduction <add>, %116, %cst_88 [1] : vector<4x16x32xf32> to vector<4x32xf32>
    %cst_89 = arith.constant dense<0.000000e+00> : vector<4x8xf32>
    %118 = tpu.matmul %117, %8, %cst_89 {dimension_numbers = #tpu.dot_dimension_numbers<[1], [0], [0], [1], [0, 0, 1, 1], [], []>} : vector<4x32xf32>, vector<32x8xf32>, vector<4x8xf32> -> vector<4x8xf32>
    %cst_90 = arith.constant 1.562500e-02 : f32
    %119 = vector.broadcast %cst_90 : f32 to vector<4x8xf32>
    %120 = arith.mulf %118, %119 : vector<4x8xf32>
    %cst_91 = arith.constant 9.99999974E-6 : f32
    %121 = vector.broadcast %cst_91 : f32 to vector<4x8xf32>
    %122 = arith.addf %120, %121 : vector<4x8xf32>
    %123 = math.rsqrt %122 : vector<4x8xf32>
    %cst_92 = arith.constant dense<0.000000e+00> : vector<4x32xf32>
    %124 = tpu.matmul %123, %9, %cst_92 {dimension_numbers = #tpu.dot_dimension_numbers<[1], [0], [0], [1], [0, 0, 1, 1], [], []>} : vector<4x8xf32>, vector<8x32xf32>, vector<4x32xf32> -> vector<4x32xf32>
    %125 = vector.broadcast %5 : vector<1x32xf32> to vector<4x32xf32>
    %126 = arith.mulf %124, %125 : vector<4x32xf32>
    %127 = vector.shape_cast %126 : vector<4x32xf32> to vector<4x1x32xf32>
    %128 = vector.broadcast %127 : vector<4x1x32xf32> to vector<4x16x32xf32>
    %129 = arith.mulf %115, %128 : vector<4x16x32xf32>
    %130 = vector.shape_cast %6 : vector<1x32xf32> to vector<1x1x32xf32>
    %131 = vector.broadcast %130 : vector<1x1x32xf32> to vector<4x16x32xf32>
    %132 = arith.addf %129, %131 : vector<4x16x32xf32>
    %cst_93 = arith.constant 2.000000e+01 : f32
    %133 = vector.broadcast %cst_93 : f32 to vector<4x16x32xf32>
    %134 = arith.minimumf %132, %133 : vector<4x16x32xf32>
    %135 = math.exp %134 : vector<4x16x32xf32>
    %cst_94 = arith.constant 1.000000e+00 : f32
    %136 = vector.broadcast %cst_94 : f32 to vector<4x16x32xf32>
    %137 = arith.addf %136, %135 : vector<4x16x32xf32>
    %138 = arith.mulf %137, %137 : vector<4x16x32xf32>
    %cst_95 = arith.constant 1.000000e+00 : f32
    %139 = vector.broadcast %cst_95 : f32 to vector<4x16x32xf32>
    %140 = arith.subf %138, %139 : vector<4x16x32xf32>
    %141 = arith.mulf %132, %140 : vector<4x16x32xf32>
    %cst_96 = arith.constant 1.000000e+00 : f32
    %142 = vector.broadcast %cst_96 : f32 to vector<4x16x32xf32>
    %143 = arith.addf %138, %142 : vector<4x16x32xf32>
    %144 = tpu.reciprocal %143 {approx = true} : vector<4x16x32xf32> -> vector<4x16x32xf32>
    %145 = arith.mulf %141, %144 : vector<4x16x32xf32>
    %146 = vector.shape_cast %10 : vector<4x16x16xf32> to vector<64x16xf32>
    %c0_97 = arith.constant 0 : index
    %c0_98 = arith.constant 0 : index
    %147 = vector.load %arg5[%c0_97, %c0_98] : memref<16x32xf32, #tpu.memory_space<vmem>>, vector<16x32xf32>
    %cst_99 = arith.constant dense<0.000000e+00> : vector<64x32xf32>
    %148 = tpu.matmul %146, %147, %cst_99 {dimension_numbers = #tpu.dot_dimension_numbers<[1], [0], [0], [1], [0, 0, 1, 1], [], []>} : vector<64x16xf32>, vector<16x32xf32>, vector<64x32xf32> -> vector<64x32xf32>
    %149 = vector.shape_cast %148 : vector<64x32xf32> to vector<4x16x32xf32>
    %150 = vector.shape_cast %7 : vector<1x32xf32> to vector<1x1x32xf32>
    %151 = vector.broadcast %150 : vector<1x1x32xf32> to vector<4x16x32xf32>
    %152 = arith.addf %149, %151 : vector<4x16x32xf32>
    %153 = arith.addf %145, %152 : vector<4x16x32xf32>
    %c0_100 = arith.constant 0 : index
    %c0_101 = arith.constant 0 : index
    %c0_102 = arith.constant 0 : index
    %154 = vector.load %arg9[%c0_100, %c0_101, %c0_102] : memref<4x16x32xf32, #tpu.memory_space<vmem>>, vector<4x16x32xf32>
    tpu.vector_store %arg9[%c0_100, %c0_101, %c0_102], %153 {strides = array<i32>} : memref<4x16x32xf32, #tpu.memory_space<vmem>>, vector<4x16x32xf32>,
    return
  }
  func.func @transform_0(%arg0: i32) -> (i32, i32, i32) {
    %c0_i32 = arith.constant 0 : i32
    %c0_i32_0 = arith.constant 0 : i32
    %c0_i32_1 = arith.constant 0 : i32
    return %arg0, %c0_i32, %c0_i32_0 : i32, i32, i32
  }
  func.func @transform_1(%arg0: i32) -> (i32, i32, i32) {
    %c0_i32 = arith.constant 0 : i32
    %c0_i32_0 = arith.constant 0 : i32
    %c0_i32_1 = arith.constant 0 : i32
    return %arg0, %c0_i32, %c0_i32_0 : i32, i32, i32
  }
  func.func @transform_2(%arg0: i32) -> (i32, i32, i32) {
    %c0_i32 = arith.constant 0 : i32
    %c0_i32_0 = arith.constant 0 : i32
    %c0_i32_1 = arith.constant 0 : i32
    %c0_i32_2 = arith.constant 0 : i32
    return %c0_i32, %c0_i32_0, %c0_i32_1 : i32, i32, i32
  }
  func.func @transform_3(%arg0: i32) -> (i32, i32, i32) {
    %c0_i32 = arith.constant 0 : i32
    %c0_i32_0 = arith.constant 0 : i32
    %c0_i32_1 = arith.constant 0 : i32
    %c0_i32_2 = arith.constant 0 : i32
    return %c0_i32, %c0_i32_0, %c0_i32_1 : i32, i32, i32
  }
  func.func @transform_4(%arg0: i32) -> (i32, i32) {
    %c0_i32 = arith.constant 0 : i32
    %c0_i32_0 = arith.constant 0 : i32
    %c0_i32_1 = arith.constant 0 : i32
    return %c0_i32, %c0_i32_0 : i32, i32
  }
  func.func @transform_5(%arg0: i32) -> (i32, i32) {
    %c0_i32 = arith.constant 0 : i32
    %c0_i32_0 = arith.constant 0 : i32
    %c0_i32_1 = arith.constant 0 : i32
    return %c0_i32, %c0_i32_0 : i32, i32
  }
  func.func @transform_6(%arg0: i32) -> (i32, i32) {
    %c0_i32 = arith.constant 0 : i32
    %c0_i32_0 = arith.constant 0 : i32
    %c0_i32_1 = arith.constant 0 : i32
    return %c0_i32, %c0_i32_0 : i32, i32
  }
  func.func @transform_7(%arg0: i32) -> (i32, i32) {
    %c0_i32 = arith.constant 0 : i32
    %c0_i32_0 = arith.constant 0 : i32
    %c0_i32_1 = arith.constant 0 : i32
    return %c0_i32, %c0_i32_0 : i32, i32
  }
  func.func @transform_8(%arg0: i32) -> (i32, i32, i32) {
    %c0_i32 = arith.constant 0 : i32
    %c0_i32_0 = arith.constant 0 : i32
    %c0_i32_1 = arith.constant 0 : i32
    return %arg0, %c0_i32, %c0_i32_0 : i32, i32, i32
  }
}

</mosaic_0001>

<llo_original>
// kernel: tpu_custom_call.1
$region0: #{tpu_custom_call.1}
  #allocation0 [shape = 'u32[]', space=smem, size = 0x4, offset = 0x4, fixed_abs, tag = 'smem constant byte address 0x4 - core index']
  #allocation1 [shape = 'u32[144,128]{1,0:T(1,128)}', space=vmem, size = 0x12000, scoped, tag = 'internal scratch']
  #allocation2 [shape = 'f32[4,18,16]{2,1,0:T(8,128)}', space=vmem, size = 0xc000, scoped, tag = 'scratch operand']
  #allocation3 [shape = 'f32[4,18,32]{2,1,0:T(8,128)}', space=vmem, size = 0xc000, scoped, tag = 'scratch operand']
  %s0 = inlined_call_operand.hbm [shape: f32[8,16,16], index: 0, kind: input, shape index: {}]
  %s1 = inlined_call_operand.vmem [shape: f32[8,2,32], index: 1, kind: input, shape index: {}]
  %s2 = inlined_call_operand.hbm [shape: f32[3,16,32], index: 2, kind: input, shape index: {}]
  %s3 = inlined_call_operand.hbm [shape: f32[3,32,32], index: 3, kind: input, shape index: {}]
  %s4 = inlined_call_operand.vmem [shape: f32[16,32], index: 4, kind: input, shape index: {}]
  %s5 = inlined_call_operand.vmem [shape: f32[8,32], index: 5, kind: input, shape index: {}]
  %s6 = inlined_call_operand.vmem [shape: f32[32,8], index: 6, kind: input, shape index: {}]
  %s7 = inlined_call_operand.vmem [shape: f32[8,32], index: 7, kind: input, shape index: {}]
  %s8 = inlined_call_operand.hbm [shape: f32[8,16,32], index: 8, kind: output, shape index: {}]
  %s9 = sld [smem:[#allocation0]]
  $region77: #{tpu_custom_call.1} parent=0
    _
  %s11 = ssub.s32 1, %s9
  %s12 = scalar_select 0, %s11, %s9
  $region1: #{tpu_custom_call.1} parent=0
    #allocation4 [shape = 'u8[65536]{0}', space=vmem, size = 0x10000, scoped, tag = 'input window, operand 0']
    #allocation5 [shape = 's32[2]{0}', space=sflag, size = 0x8, scoped, tag = 'scoped memory for tpu_custom_call.1']
    #allocation6 [shape = 's32[2]{0}', space=sflag, size = 0x8, scoped, tag = 'scoped memory for tpu_custom_call.1']
    #allocation7 [shape = 'u8[24576]{0}', space=vmem, size = 0x6000, scoped, tag = 'input window, operand 2, single buffered']
    #allocation8 [shape = 's32[1]{0}', space=sflag, size = 0x4, scoped, tag = 'scoped memory for tpu_custom_call.1']
    #allocation9 [shape = 'u8[49152]{0}', space=vmem, size = 0xc000, scoped, tag = 'input window, operand 3, single buffered']
    #allocation10 [shape = 'u8[65536]{0}', space=vmem, size = 0x10000, scoped, tag = 'output window, operand 0']
    %13 = vsyncpa [#allocation5], 0
    %s14 = scalar_lea.sflag [#allocation5], 1
    %15 = vsyncpa %s14, 0
    %16 = vsyncpa [#allocation8], 0
    %17 = vsyncpa [#allocation6], 0
    %s18 = scalar_lea.sflag [#allocation6], 1
    %19 = vsyncpa %s18, 0
    loop: start=0, step=1, limit=4
    $region2: #{tpu_custom_call.1} parent=1 // loop_pre_header
      _
    $region3: #{tpu_custom_call.1} parent=1 // loop_header
      %s21 = sphi 0, %s25
      %p22 = scmp.ge.s32.totalorder %s21, 4
      %s31 = sphi 0, %s33
      %s34 = sphi 0, %s31
      %s35 = sphi 0, %s34
      %s51 = sphi 0, %s35
      %s57 = sphi 0, %s59
      %s60 = sphi 0, %s57
      %s61 = sphi 0, %s60
      %s77 = sphi 0, %s61
      %s81 = sphi 0, %s81
      %s83 = sphi 0, %s81
      %s84 = sphi 0, %s83
      %s98 = sphi 0, %s84
      %s102 = sphi 0, %s102
      %s104 = sphi 0, %s102
      %s105 = sphi 0, %s104
      %s119 = sphi 0, %s105
      %s123 = sphi 0, %s123
      %s125 = sphi 0, %s123
      %s126 = sphi 0, %s125
      %s140 = sphi 0, %s126
      %s144 = sphi 0, %s144
      %s146 = sphi 0, %s144
      %s147 = sphi 0, %s146
      %s161 = sphi 0, %s147
      %s165 = sphi 0, %s165
      %s167 = sphi 0, %s165
      %s168 = sphi 0, %s167
      %s182 = sphi 0, %s168
      %s186 = sphi 0, %s186
      %s188 = sphi 0, %s186
      %s189 = sphi 0, %s188
      %s203 = sphi 0, %s189
      %s209 = sphi 0, %s211
      %s212 = sphi 0, %s209
      %s213 = sphi 0, %s212
      %s229 = sphi 0, %s213
    $region4: #{tpu_custom_call.1} parent=1 // loop_header_branch
      %24 = sbr.rel (%p22) target = $region8
    $region5: #{tpu_custom_call.1} parent=1 // loop_body
      %s26 = ssub.s32 %s21, 1
      %s27 = ssub.s32 %s21, 2
      %s28 = sadd.s32 %s21, 1
      %s29 = ssub.s32 %s21, %s28
      %p30 = scmp.eq.s32.totalorder %s29, 0
      %s32 = sadd.s32 %s31, 1
      %s33 = scalar_select %p30, %s31, %s32
      %p36 = pneg %p30
      %p37 = scmp.eq.s32.totalorder %s21, 1
      %p38 = por %p36, %p37
      %p39 = scmp.ne.s32.totalorder %s31, %s34
      %p40 = scmp.eq.s32.totalorder %s21, 0
      %p41 = por %p39, %p40
      %p42 = scmp.ne.s32.totalorder %s31, %s34
      %p43 = scmp.eq.s32.totalorder %s26, 1
      %p44 = por %p42, %p43
      %p45 = scmp.ne.s32.totalorder %s34, %s35
      %p46 = scmp.eq.s32.totalorder %s26, 0
      %p47 = por %p45, %p46
      %p48 = scmp.ne.s32.totalorder %s34, %s35
      %p49 = scmp.eq.s32.totalorder %s27, 1
      %p50 = por %p48, %p49
      %p52 = scmp.ne.s32.totalorder %s35, %s51
      %p53 = scmp.eq.s32.totalorder %s27, 0
      %p54 = por %p52, %p53
      %s55 = ssub.s32 %s21, %s28
      %p56 = scmp.eq.s32.totalorder %s55, 0
      %s58 = sadd.s32 %s57, 1
      %s59 = scalar_select %p56, %s57, %s58
      %p62 = pneg %p56
      %p63 = scmp.eq.s32.totalorder %s21, 1
      %p64 = por %p62, %p63
      %p65 = scmp.ne.s32.totalorder %s57, %s60
      %p66 = scmp.eq.s32.totalorder %s21, 0
      %p67 = por %p65, %p66
      %p68 = scmp.ne.s32.totalorder %s57, %s60
      %p69 = scmp.eq.s32.totalorder %s26, 1
      %p70 = por %p68, %p69
      %p71 = scmp.ne.s32.totalorder %s60, %s61
      %p72 = scmp.eq.s32.totalorder %s26, 0
      %p73 = por %p71, %p72
      %p74 = scmp.ne.s32.totalorder %s60, %s61
      %p75 = scmp.eq.s32.totalorder %s27, 1
      %p76 = por %p74, %p75
      %p78 = scmp.ne.s32.totalorder %s61, %s77
      %p79 = scmp.eq.s32.totalorder %s27, 0
      %p80 = por %p78, %p79
      %s82 = sadd.s32 %s81, 1
      %p85 = scmp.eq.s32.totalorder %s21, 1
      %p86 = scmp.ne.s32.totalorder %s81, %s83
      %p87 = scmp.eq.s32.totalorder %s21, 0
      %p88 = por %p86, %p87
      %p89 = scmp.ne.s32.totalorder %s81, %s83
      %p90 = scmp.eq.s32.totalorder %s26, 1
      %p91 = por %p89, %p90
      %p92 = scmp.ne.s32.totalorder %s83, %s84
      %p93 = scmp.eq.s32.totalorder %s26, 0
      %p94 = por %p92, %p93
      %p95 = scmp.ne.s32.totalorder %s83, %s84
      %p96 = scmp.eq.s32.totalorder %s27, 1
      %p97 = por %p95, %p96
      %p99 = scmp.ne.s32.totalorder %s84, %s98
      %p100 = scmp.eq.s32.totalorder %s27, 0
      %p101 = por %p99, %p100
      %s103 = sadd.s32 %s102, 1
      %p106 = scmp.eq.s32.totalorder %s21, 1
      %p107 = scmp.ne.s32.totalorder %s102, %s104
      %p108 = scmp.eq.s32.totalorder %s21, 0
      %p109 = por %p107, %p108
      %p110 = scmp.ne.s32.totalorder %s102, %s104
      %p111 = scmp.eq.s32.totalorder %s26, 1
      %p112 = por %p110, %p111
      %p113 = scmp.ne.s32.totalorder %s104, %s105
      %p114 = scmp.eq.s32.totalorder %s26, 0
      %p115 = por %p113, %p114
      %p116 = scmp.ne.s32.totalorder %s104, %s105
      %p117 = scmp.eq.s32.totalorder %s27, 1
      %p118 = por %p116, %p117
      %p120 = scmp.ne.s32.totalorder %s105, %s119
      %p121 = scmp.eq.s32.totalorder %s27, 0
      %p122 = por %p120, %p121
      %s124 = sadd.s32 %s123, 1
      %p127 = scmp.eq.s32.totalorder %s21, 1
      %p128 = scmp.ne.s32.totalorder %s123, %s125
      %p129 = scmp.eq.s32.totalorder %s21, 0
      %p130 = por %p128, %p129
      %p131 = scmp.ne.s32.totalorder %s123, %s125
      %p132 = scmp.eq.s32.totalorder %s26, 1
      %p133 = por %p131, %p132
      %p134 = scmp.ne.s32.totalorder %s125, %s126
      %p135 = scmp.eq.s32.totalorder %s26, 0
      %p136 = por %p134, %p135
      %p137 = scmp.ne.s32.totalorder %s125, %s126
      %p138 = scmp.eq.s32.totalorder %s27, 1
      %p139 = por %p137, %p138
      %p141 = scmp.ne.s32.totalorder %s126, %s140
      %p142 = scmp.eq.s32.totalorder %s27, 0
      %p143 = por %p141, %p142
      %s145 = sadd.s32 %s144, 1
      %p148 = scmp.eq.s32.totalorder %s21, 1
      %p149 = scmp.ne.s32.totalorder %s144, %s146
      %p150 = scmp.eq.s32.totalorder %s21, 0
      %p151 = por %p149, %p150
      %p152 = scmp.ne.s32.totalorder %s144, %s146
      %p153 = scmp.eq.s32.totalorder %s26, 1
      %p154 = por %p152, %p153
      %p155 = scmp.ne.s32.totalorder %s146, %s147
      %p156 = scmp.eq.s32.totalorder %s26, 0
      %p157 = por %p155, %p156
      %p158 = scmp.ne.s32.totalorder %s146, %s147
      %p159 = scmp.eq.s32.totalorder %s27, 1
      %p160 = por %p158, %p159
      %p162 = scmp.ne.s32.totalorder %s147, %s161
      %p163 = scmp.eq.s32.totalorder %s27, 0
      %p164 = por %p162, %p163
      %s166 = sadd.s32 %s165, 1
      %p169 = scmp.eq.s32.totalorder %s21, 1
      %p170 = scmp.ne.s32.totalorder %s165, %s167
      %p171 = scmp.eq.s32.totalorder %s21, 0
      %p172 = por %p170, %p171
      %p173 = scmp.ne.s32.totalorder %s165, %s167
      %p174 = scmp.eq.s32.totalorder %s26, 1
      %p175 = por %p173, %p174
      %p176 = scmp.ne.s32.totalorder %s167, %s168
      %p177 = scmp.eq.s32.totalorder %s26, 0
      %p178 = por %p176, %p177
      %p179 = scmp.ne.s32.totalorder %s167, %s168
      %p180 = scmp.eq.s32.totalorder %s27, 1
      %p181 = por %p179, %p180
      %p183 = scmp.ne.s32.totalorder %s168, %s182
      %p184 = scmp.eq.s32.totalorder %s27, 0
      %p185 = por %p183, %p184
      %s187 = sadd.s32 %s186, 1
      %p190 = scmp.eq.s32.totalorder %s21, 1
      %p191 = scmp.ne.s32.totalorder %s186, %s188
      %p192 = scmp.eq.s32.totalorder %s21, 0
      %p193 = por %p191, %p192
      %p194 = scmp.ne.s32.totalorder %s186, %s188
      %p195 = scmp.eq.s32.totalorder %s26, 1
      %p196 = por %p194, %p195
      %p197 = scmp.ne.s32.totalorder %s188, %s189
      %p198 = scmp.eq.s32.totalorder %s26, 0
      %p199 = por %p197, %p198
      %p200 = scmp.ne.s32.totalorder %s188, %s189
      %p201 = scmp.eq.s32.totalorder %s27, 1
      %p202 = por %p200, %p201
      %p204 = scmp.ne.s32.totalorder %s189, %s203
      %p205 = scmp.eq.s32.totalorder %s27, 0
      %p206 = por %p204, %p205
      %s207 = ssub.s32 %s21, %s28
      %p208 = scmp.eq.s32.totalorder %s207, 0
      %s210 = sadd.s32 %s209, 1
      %s211 = scalar_select %p208, %s209, %s210
      %p214 = pneg %p208
      %p215 = scmp.eq.s32.totalorder %s21, 1
      %p216 = por %p214, %p215
      %p217 = scmp.ne.s32.totalorder %s209, %s212
      %p218 = scmp.eq.s32.totalorder %s21, 0
      %p219 = por %p217, %p218
      %p220 = scmp.ne.s32.totalorder %s209, %s212
      %p221 = scmp.eq.s32.totalorder %s26, 1
      %p222 = por %p220, %p221
      %p223 = scmp.ne.s32.totalorder %s212, %s213
      %p224 = scmp.eq.s32.totalorder %s26, 0
      %p225 = por %p223, %p224
      %p226 = scmp.ne.s32.totalorder %s212, %s213
      %p227 = scmp.eq.s32.totalorder %s27, 1
      %p228 = por %p226, %p227
      %p230 = scmp.ne.s32.totalorder %s213, %s229
      %p231 = scmp.eq.s32.totalorder %s27, 0
      %p232 = por %p230, %p231
      %p233 = scmp.le.s32.totalorder 1, %s21
      %p234 = scmp.lt.s32.totalorder %s21, 3
      %p235 = pnand %p233, %p234
      %p236 = pneg %p235
      // Predicated region
      $region9: #{tpu_custom_call.1} parent=5 // pred_check
        _
      $region10: #{tpu_custom_call.1} parent=5 // pred_check_branch
        %238 = sbr.rel (%p235) target = $region12
      $region11: #{tpu_custom_call.1} parent=5 // pred_region
        %s239 = ssub.s32 %s21, 1
        // Predicated region
        $region13: #{tpu_custom_call.1} parent=11 // pred_check
          %p240 = pneg %p94
        $region14: #{tpu_custom_call.1} parent=11 // pred_check_branch
          %242 = sbr.rel (%p240) target = $region16
        $region15: #{tpu_custom_call.1} parent=11 // pred_region
          %s244 = ssub.s32 768, 768
          %245 = vsyncadd [#allocation8], %s244
          %s246 = sshll.u32 [#allocation7], 4
          %s247 = int_to_ptr.vmem [resolvable:$true] %s246
          %252 = dma.hbm_to_vmem [thread:$0]  %s2, 768, %s247, [#allocation8], 128, 128, 8
        $region16: #{tpu_custom_call.1} parent=11 // pred_fallthru
          _
        // Predicated region
        $region17: #{tpu_custom_call.1} parent=11 // pred_check
          %p253 = pneg %p115
        $region18: #{tpu_custom_call.1} parent=11 // pred_check_branch
          %255 = sbr.rel (%p253) target = $region20
        $region19: #{tpu_custom_call.1} parent=11 // pred_region
          %s257 = ssub.s32 1536, 1536
          %258 = vsyncadd [#allocation8], %s257
          %s259 = sshll.u32 [#allocation9], 4
          %s260 = int_to_ptr.vmem [resolvable:$true] %s259
          %265 = dma.hbm_to_vmem [thread:$0]  %s3, 1536, %s260, [#allocation8], 128, 128, 8
        $region20: #{tpu_custom_call.1} parent=11 // pred_fallthru
          _
        // Predicated region
        $region21: #{tpu_custom_call.1} parent=11 // pred_check
          %p266 = pneg %p136
        $region22: #{tpu_custom_call.1} parent=11 // pred_check_branch
          %268 = sbr.rel (%p266) target = $region24
        $region23: #{tpu_custom_call.1} parent=11 // pred_region
          _
        $region24: #{tpu_custom_call.1} parent=11 // pred_fallthru
          _
        // Predicated region
        $region25: #{tpu_custom_call.1} parent=11 // pred_check
          %p269 = pneg %p157
        $region26: #{tpu_custom_call.1} parent=11 // pred_check_branch
          %271 = sbr.rel (%p269) target = $region28
        $region27: #{tpu_custom_call.1} parent=11 // pred_region
          _
        $region28: #{tpu_custom_call.1} parent=11 // pred_fallthru
          _
        // Predicated region
        $region29: #{tpu_custom_call.1} parent=11 // pred_check
          %p272 = pneg %p178
        $region30: #{tpu_custom_call.1} parent=11 // pred_check_branch
          %274 = sbr.rel (%p272) target = $region32
        $region31: #{tpu_custom_call.1} parent=11 // pred_region
          _
        $region32: #{tpu_custom_call.1} parent=11 // pred_fallthru
          _
        // Predicated region
        $region33: #{tpu_custom_call.1} parent=11 // pred_check
          %p275 = pneg %p199
        $region34: #{tpu_custom_call.1} parent=11 // pred_check_branch
          %277 = sbr.rel (%p275) target = $region36
        $region35: #{tpu_custom_call.1} parent=11 // pred_region
          _
        $region36: #{tpu_custom_call.1} parent=11 // pred_fallthru
          _
      $region12: #{tpu_custom_call.1} parent=5 // pred_fallthru
        _
      %p278 = scmp.lt.s32.totalorder %s21, 2
      // Predicated region
      $region37: #{tpu_custom_call.1} parent=5 // pred_check
        %p279 = pneg %p278
      $region38: #{tpu_custom_call.1} parent=5 // pred_check_branch
        %281 = sbr.rel (%p279) target = $region40
      $region39: #{tpu_custom_call.1} parent=5 // pred_region
        // Predicated region
        $region41: #{tpu_custom_call.1} parent=39 // pred_check
          %p282 = pneg %p41
        $region42: #{tpu_custom_call.1} parent=39 // pred_check_branch
          %284 = sbr.rel (%p282) target = $region44
        $region43: #{tpu_custom_call.1} parent=39 // pred_region
          %s285 = sand.u32 %s31, 1
          %s286 = scalar_lea.sflag [#allocation5], %s285
          %s287 = sand.u32 %s31, 1
          %s288 = smul.addr %s287, 64
          %s289 = scalar_lea.vmem [#allocation4], %s288
          %s290 = smul.u32 4, %s21
          %s292 = ssub.s32 1024, 1024
          %293 = vsyncadd %s286, %s292
          %s294 = smul.addr %s290, 2
          %s295 = smul.addr %s294, 128
          %s296 = scalar_lea.hbm %s0, %s295
          %s297 = sshll.u32 %s289, 4
          %s298 = int_to_ptr.vmem [resolvable:$true] %s297
          %303 = dma.hbm_to_vmem [thread:$0]  %s296, 1024, %s298, %s286, 128, 128, 8
        $region44: #{tpu_custom_call.1} parent=39 // pred_fallthru
          _
        // Predicated region
        $region45: #{tpu_custom_call.1} parent=39 // pred_check
          %p304 = pneg %p67
        $region46: #{tpu_custom_call.1} parent=39 // pred_check_branch
          %306 = sbr.rel (%p304) target = $region48
        $region47: #{tpu_custom_call.1} parent=39 // pred_region
          %s307 = smul.u32 4, %s21
          %p308 = scmp.lt.s32.totalorder %s307, 7
          %s309 = scalar_select %p308, %s307, 7
          %s310 = smul.addr %s309, 2
          %s311 = scalar_lea.vmem %s1, %s310
          %s312 = smul.u32 4, %s21
        $region48: #{tpu_custom_call.1} parent=39 // pred_fallthru
          _
      $region40: #{tpu_custom_call.1} parent=5 // pred_fallthru
        _
      %p313 = scmp.le.s32.totalorder 1, %s21
      %p314 = scmp.lt.s32.totalorder %s21, 3
      %p315 = pnand %p313, %p314
      %p316 = pneg %p315
      // Predicated region
      $region49: #{tpu_custom_call.1} parent=5 // pred_check
        _
      $region50: #{tpu_custom_call.1} parent=5 // pred_check_branch
        %318 = sbr.rel (%p315) target = $region52
      $region51: #{tpu_custom_call.1} parent=5 // pred_region
        %s319 = ssub.s32 %s21, 1
        %s320 = sand.u32 %s34, 1
        %s321 = scalar_lea.sflag [#allocation5], %s320
        %s322 = sand.u32 %s34, 1
        %s323 = smul.addr %s322, 64
        %s324 = scalar_lea.vmem [#allocation4], %s323
        // Predicated region
        $region53: #{tpu_custom_call.1} parent=51 // pred_check
          %p325 = pneg %p47
        $region54: #{tpu_custom_call.1} parent=51 // pred_check_branch
          %327 = sbr.rel (%p325) target = $region56
        $region55: #{tpu_custom_call.1} parent=51 // pred_region
          %328 = dma.done %s321, 1024
        $region56: #{tpu_custom_call.1} parent=51 // pred_fallthru
          _
        // Predicated region
        $region57: #{tpu_custom_call.1} parent=51 // pred_check
          %p329 = pneg %p94
        $region58: #{tpu_custom_call.1} parent=51 // pred_check_branch
          %331 = sbr.rel (%p329) target = $region60
        $region59: #{tpu_custom_call.1} parent=51 // pred_region
          %332 = dma.done [#allocation8], 768
        $region60: #{tpu_custom_call.1} parent=51 // pred_fallthru
          _
        // Predicated region
        $region61: #{tpu_custom_call.1} parent=51 // pred_check
          %p333 = pneg %p115
        $region62: #{tpu_custom_call.1} parent=51 // pred_check_branch
          %335 = sbr.rel (%p333) target = $region64
        $region63: #{tpu_custom_call.1} parent=51 // pred_region
          %336 = dma.done [#allocation8], 1536
        $region64: #{tpu_custom_call.1} parent=51 // pred_fallthru
          _
        %s337 = sand.u32 %s34, 1
        %s338 = scalar_lea.sflag [#allocation5], %s337
        %s339 = sand.u32 %s34, 1
        %s340 = smul.addr %s339, 64
        %s341 = scalar_lea.vmem [#allocation4], %s340
        %p342 = pneg %p47
        %p343 = pneg %p44
        %s344 = smul.u32 4, %s26
        %p345 = scmp.lt.s32.totalorder %s344, 7
        %s346 = scalar_select %p345, %s344, 7
        %s347 = smul.addr %s346, 2
        %s348 = scalar_lea.vmem %s1, %s347
        %p349 = pneg %p73
        %p350 = pneg %p70
        %p351 = pneg %p94
        %p352 = pneg %p91
        %p353 = pneg %p115
        %p354 = pneg %p112
        %p355 = pneg %p136
        %p356 = pneg %p133
        %p357 = pneg %p157
        %p358 = pneg %p154
        %p359 = pneg %p178
        %p360 = pneg %p175
        %p361 = pneg %p199
        %p362 = pneg %p196
        %p363 = pneg %p225
        %p364 = pneg %p222
        %s365 = sand.u32 %s212, 1
        %s366 = scalar_lea.sflag [#allocation6], %s365
        %s367 = sand.u32 %s212, 1
        %s368 = smul.addr %s367, 64
        %s369 = scalar_lea.vmem [#allocation10], %s368
        %s370 = smul.u32 4, %s26
        %s371 = smul.u32 4, %s26
        %p372 = scmp.lt.s32.totalorder %s371, 7
        %s373 = scalar_select %p372, %s371, 7
        %s374 = smul.addr %s373, 2
        %s375 = scalar_lea.vmem %s1, %s374
        %s376 = smul.u32 4, %s26
        %s377 = smul.u32 4, %s26
        %v378 = vld [vmem:[%s5] sm:$0xff]
        %v379 = vld [vmem:[%s6] sm:$0xff]
        %v380 = vld [vmem:[%s6 + $0x8] sm:$0xff]
        %v381 = vld [vmem:[%s6 + $0x10] sm:$0xff]
        %v382 = vld [vmem:[%s6 + $0x18] sm:$0xff]
        %v383 = vld [vmem:[%s7] sm:$0xff]
        %v384 = vld [vmem:[%s324] sm:$0xff]
        %v385 = vld [vmem:[%s324 + $0x8] sm:$0xff]
        %v386 = vld [vmem:[%s324 + $0x10] sm:$0xff]
        %v387 = vld [vmem:[%s324 + $0x18] sm:$0xff]
        %v388 = vld [vmem:[%s324 + $0x20] sm:$0xff]
        %v389 = vld [vmem:[%s324 + $0x28] sm:$0xff]
        %v390 = vld [vmem:[%s324 + $0x30] sm:$0xff]
        %v391 = vld [vmem:[%s324 + $0x38] sm:$0xff]
        %vm392 = vcmask 122880
        %393 = vst.msk [vmem:[#allocation2] sm:$0x1] %vm392, 0.0
        %394 = vst.msk [vmem:[#allocation2 + $0x18] sm:$0x1] %vm392, 0.0
        %395 = vst.msk [vmem:[#allocation2 + $0x30] sm:$0x1] %vm392, 0.0
        %396 = vst.msk [vmem:[#allocation2 + $0x48] sm:$0x1] %vm392, 0.0
        %397 = vst.msk [vmem:[#allocation2 + $0x11] sm:$0x1] %vm392, 0.0
        %398 = vst.msk [vmem:[#allocation2 + $0x29] sm:$0x1] %vm392, 0.0
        %399 = vst.msk [vmem:[#allocation2 + $0x41] sm:$0x1] %vm392, 0.0
        %400 = vst.msk [vmem:[#allocation2 + $0x59] sm:$0x1] %vm392, 0.0
        %vm401 = vcmask 130048
        %402 = vst.msk [vmem:[#allocation2 + $0x1] sm:$0xff] %vm401, %v384
        %403 = vst.msk [vmem:[#allocation2 + $0x9] sm:$0xff] %vm401, %v385
        %404 = vst.msk [vmem:[#allocation2 + $0x19] sm:$0xff] %vm401, %v386
        %405 = vst.msk [vmem:[#allocation2 + $0x21] sm:$0xff] %vm401, %v387
        %406 = vst.msk [vmem:[#allocation2 + $0x31] sm:$0xff] %vm401, %v388
        %407 = vst.msk [vmem:[#allocation2 + $0x39] sm:$0xff] %vm401, %v389
        %408 = vst.msk [vmem:[#allocation2 + $0x49] sm:$0xff] %vm401, %v390
        %409 = vst.msk [vmem:[#allocation2 + $0x51] sm:$0xff] %vm401, %v391
        %v410 = vld [vmem:[#allocation2] sm:$0xff]
        %v411 = vld [vmem:[#allocation2 + $0x8] sm:$0xff]
        %v412 = vld [vmem:[#allocation2 + $0x18] sm:$0xff]
        %v413 = vld [vmem:[#allocation2 + $0x20] sm:$0xff]
        %v414 = vld [vmem:[#allocation2 + $0x30] sm:$0xff]
        %v415 = vld [vmem:[#allocation2 + $0x38] sm:$0xff]
        %v416 = vld [vmem:[#allocation2 + $0x48] sm:$0xff]
        %v417 = vld [vmem:[#allocation2 + $0x50] sm:$0xff]
        %v418 = vld [vmem:[#allocation7] sm:$0xff]
        %v419 = vld [vmem:[#allocation7 + $0x8] sm:$0xff]
        %v420 = vld [vmem:[#allocation2 + $0x1] sm:$0xff]
        %v421 = vld [vmem:[#allocation2 + $0x9] sm:$0xff]
        %v422 = vld [vmem:[#allocation2 + $0x19] sm:$0xff]
        %v423 = vld [vmem:[#allocation2 + $0x21] sm:$0xff]
        %v424 = vld [vmem:[#allocation2 + $0x31] sm:$0xff]
        %v425 = vld [vmem:[#allocation2 + $0x39] sm:$0xff]
        %v426 = vld [vmem:[#allocation2 + $0x49] sm:$0xff]
        %v427 = vld [vmem:[#allocation2 + $0x51] sm:$0xff]
        %s428 = scalar_lea.vmem [#allocation7], 16
        %v429 = vld [vmem:[%s428] sm:$0xff]
        %v430 = vld [vmem:[%s428 + $0x8] sm:$0xff]
        %v432 = vsel %vm401, %v420, 0
        %v435 = vsel %vm401, %v421, 0
        %v438 = vsel %vm401, %v422, 0
        %v441 = vsel %vm401, %v423, 0
        %v444 = vsel %vm401, %v424, 0
        %v447 = vsel %vm401, %v425, 0
        %v450 = vsel %vm401, %v426, 0
        %v453 = vsel %vm401, %v427, 0
        %455 = vmatprep.subr.mxu0 0.0
        %456 = vmatpush1.msra.mxu0 %v429
        %457 = vmatprep.subr.mxu0 0.0
        %458 = vmatpush1.msra.mxu0 %v430
        %459 = vmatprep.subr.mxu0 0.0
        %460 = vmatpush1.msra.mxu0 0.0
        %461 = vmatprep.subr.mxu0 0.0
        %462 = vmatpush1.msra.mxu0 0.0
        %463 = vmatprep.subr.mxu0 0.0
        %464 = vmatpush1.msra.mxu0 0.0
        %465 = vmatprep.subr.mxu0 0.0
        %466 = vmatpush1.msra.mxu0 0.0
        %467 = vmatprep.subr.mxu0 0.0
        %468 = vmatpush1.msra.mxu0 0.0
        %469 = vmatprep.subr.mxu0 0.0
        %470 = vmatpush1.msra.mxu0 0.0
        %471 = vmatprep.subr.mxu0 0.0
        %472 = vmatpush1.msra.mxu0 0.0
        %473 = vmatprep.subr.mxu0 0.0
        %474 = vmatpush1.msra.mxu0 0.0
        %475 = vmatprep.subr.mxu0 0.0
        %476 = vmatpush1.msra.mxu0 0.0
        %477 = vmatprep.subr.mxu0 0.0
        %478 = vmatpush1.msra.mxu0 0.0
        %479 = vmatprep.subr.mxu0 0.0
        %480 = vmatpush1.msra.mxu0 0.0
        %481 = vmatprep.subr.mxu0 0.0
        %482 = vmatpush1.msra.mxu0 0.0
        %483 = vmatprep.subr.mxu0 0.0
        %484 = vmatpush1.msra.mxu0 0.0
        %485 = vmatprep.subr.mxu0 0.0
        %486 = vmatpush1.msra.mxu0 0.0
        %487 = vmatprep.subr.mxu0 0.0
        %488 = vmatpush1.msra.mxu0 0.0
        %489 = vmatprep.subr.mxu0 0.0
        %490 = vmatpush1.msra.mxu0 0.0
        %491 = vmatprep.subr.mxu0 0.0
        %492 = vmatpush1.msra.mxu0 0.0
        %493 = vmatprep.subr.mxu0 0.0
        %494 = vmatpush1.msra.mxu0 0.0
        %495 = vmatprep.subr.mxu0 0.0
        %496 = vmatpush1.msra.mxu0 0.0
        %497 = vmatprep.subr.mxu0 0.0
        %498 = vmatpush1.msra.mxu0 0.0
        %499 = vmatprep.subr.mxu0 0.0
        %500 = vmatpush1.msra.mxu0 0.0
        %501 = vmatprep.subr.mxu0 0.0
        %502 = vmatpush1.msra.mxu0 0.0
        %503 = vmatprep.subr.mxu0 0.0
        %504 = vmatpush1.msra.mxu0 0.0
        %505 = vmatprep.subr.mxu0 0.0
        %506 = vmatpush1.msra.mxu0 0.0
        %507 = vmatprep.subr.mxu0 0.0
        %508 = vmatpush1.msra.mxu0 0.0
        %509 = vmatprep.subr.mxu0 0.0
        %510 = vmatpush1.msra.mxu0 0.0
        %511 = vmatprep.subr.mxu0 0.0
        %512 = vmatpush1.msra.mxu0 0.0
        %513 = vmatprep.subr.mxu0 0.0
        %514 = vmatpush1.msra.mxu0 0.0
        %515 = vmatprep.subr.mxu0 0.0
        %516 = vmatpush1.msra.mxu0 0.0
        %517 = vmatprep.subr.mxu0 0.0
        %518 = vmatpush1.msra.mxu0 0.0
        %519 = vmatprep.mubr.f32.mxu0 0.0
        %520 = vmatmul.mubr.f32.gmra.mrb[0].mxu0 %v432
        %v521 = vpop.f32.mrb[0].mxu0
        %v522 = vadd.f32 0.0, %v521
        %v523 = vpop.f32.mrb[0].mxu0
        %524 = vmatprep.mubr.f32.mxu0 0.0
        %525 = vmatmul.mubr.f32.gmra.mrb[0].mxu0 %v435
        %v526 = vpop.f32.mrb[0].mxu0
        %v527 = vadd.f32 0.0, %v526
        %v528 = vpop.f32.mrb[0].mxu0
        %529 = vmatprep.mubr.f32.mxu0 0.0
        %530 = vmatmul.mubr.f32.gmra.mrb[0].mxu0 %v438
        %v531 = vpop.f32.mrb[0].mxu0
        %v532 = vadd.f32 0.0, %v531
        %v533 = vpop.f32.mrb[0].mxu0
        %534 = vmatprep.mubr.f32.mxu0 0.0
        %535 = vmatmul.mubr.f32.gmra.mrb[0].mxu0 %v441
        %v536 = vpop.f32.mrb[0].mxu0
        %v537 = vadd.f32 0.0, %v536
        %v538 = vpop.f32.mrb[0].mxu0
        %539 = vmatprep.mubr.f32.mxu0 0.0
        %540 = vmatmul.mubr.f32.gmra.mrb[0].mxu0 %v444
        %v541 = vpop.f32.mrb[0].mxu0
        %v542 = vadd.f32 0.0, %v541
        %v543 = vpop.f32.mrb[0].mxu0
        %544 = vmatprep.mubr.f32.mxu0 0.0
        %545 = vmatmul.mubr.f32.gmra.mrb[0].mxu0 %v447
        %v546 = vpop.f32.mrb[0].mxu0
        %v547 = vadd.f32 0.0, %v546
        %v548 = vpop.f32.mrb[0].mxu0
        %549 = vmatprep.mubr.f32.mxu0 0.0
        %550 = vmatmul.mubr.f32.gmra.mrb[0].mxu0 %v450
        %v551 = vpop.f32.mrb[0].mxu0
        %v552 = vadd.f32 0.0, %v551
        %v553 = vpop.f32.mrb[0].mxu0
        %554 = vmatprep.mubr.f32.mxu0 0.0
        %555 = vmatmul.mubr.f32.gmra.mrb[0].mxu0 %v453
        %v556 = vpop.f32.mrb[0].mxu0
        %v557 = vadd.f32 0.0, %v556
        %v558 = vpop.f32.mrb[0].mxu0
        %559 = vdwg.mxu0
        %v561 = vsel %vm401, %v410, 0
        %v564 = vsel %vm401, %v411, 0
        %v567 = vsel %vm401, %v412, 0
        %v570 = vsel %vm401, %v413, 0
        %v573 = vsel %vm401, %v414, 0
        %v576 = vsel %vm401, %v415, 0
        %v579 = vsel %vm401, %v416, 0
        %v582 = vsel %vm401, %v417, 0
        %584 = vmatprep.subr.mxu0 0.0
        %585 = vmatpush1.msra.mxu0 %v418
        %586 = vmatprep.subr.mxu0 0.0
        %587 = vmatpush1.msra.mxu0 %v419
        %588 = vmatprep.subr.mxu0 0.0
        %589 = vmatpush1.msra.mxu0 0.0
        %590 = vmatprep.subr.mxu0 0.0
        %591 = vmatpush1.msra.mxu0 0.0
        %592 = vmatprep.subr.mxu0 0.0
        %593 = vmatpush1.msra.mxu0 0.0
        %594 = vmatprep.subr.mxu0 0.0
        %595 = vmatpush1.msra.mxu0 0.0
        %596 = vmatprep.subr.mxu0 0.0
        %597 = vmatpush1.msra.mxu0 0.0
        %598 = vmatprep.subr.mxu0 0.0
        %599 = vmatpush1.msra.mxu0 0.0
        %600 = vmatprep.subr.mxu0 0.0
        %601 = vmatpush1.msra.mxu0 0.0
        %602 = vmatprep.subr.mxu0 0.0
        %603 = vmatpush1.msra.mxu0 0.0
        %604 = vmatprep.subr.mxu0 0.0
        %605 = vmatpush1.msra.mxu0 0.0
        %606 = vmatprep.subr.mxu0 0.0
        %607 = vmatpush1.msra.mxu0 0.0
        %608 = vmatprep.subr.mxu0 0.0
        %609 = vmatpush1.msra.mxu0 0.0
        %610 = vmatprep.subr.mxu0 0.0
        %611 = vmatpush1.msra.mxu0 0.0
        %612 = vmatprep.subr.mxu0 0.0
        %613 = vmatpush1.msra.mxu0 0.0
        %614 = vmatprep.subr.mxu0 0.0
        %615 = vmatpush1.msra.mxu0 0.0
        %616 = vmatprep.subr.mxu0 0.0
        %617 = vmatpush1.msra.mxu0 0.0
        %618 = vmatprep.subr.mxu0 0.0
        %619 = vmatpush1.msra.mxu0 0.0
        %620 = vmatprep.subr.mxu0 0.0
        %621 = vmatpush1.msra.mxu0 0.0
        %622 = vmatprep.subr.mxu0 0.0
        %623 = vmatpush1.msra.mxu0 0.0
        %624 = vmatprep.subr.mxu0 0.0
        %625 = vmatpush1.msra.mxu0 0.0
        %626 = vmatprep.subr.mxu0 0.0
        %627 = vmatpush1.msra.mxu0 0.0
        %628 = vmatprep.subr.mxu0 0.0
        %629 = vmatpush1.msra.mxu0 0.0
        %630 = vmatprep.subr.mxu0 0.0
        %631 = vmatpush1.msra.mxu0 0.0
        %632 = vmatprep.subr.mxu0 0.0
        %633 = vmatpush1.msra.mxu0 0.0
        %634 = vmatprep.subr.mxu0 0.0
        %635 = vmatpush1.msra.mxu0 0.0
        %636 = vmatprep.subr.mxu0 0.0
        %637 = vmatpush1.msra.mxu0 0.0
        %638 = vmatprep.subr.mxu0 0.0
        %639 = vmatpush1.msra.mxu0 0.0
        %640 = vmatprep.subr.mxu0 0.0
        %641 = vmatpush1.msra.mxu0 0.0
        %642 = vmatprep.subr.mxu0 0.0
        %643 = vmatpush1.msra.mxu0 0.0
        %644 = vmatprep.subr.mxu0 0.0
        %645 = vmatpush1.msra.mxu0 0.0
        %646 = vmatprep.subr.mxu0 0.0
        %647 = vmatpush1.msra.mxu0 0.0
        %648 = vmatprep.mubr.f32.mxu0 0.0
        %649 = vmatmul.mubr.f32.gmra.mrb[0].mxu0 %v561
        %v650 = vpop.f32.mrb[0].mxu0
        %v651 = vadd.f32 %v522, %v650
        %v652 = vpop.f32.mrb[0].mxu0
        %653 = vmatprep.mubr.f32.mxu0 0.0
        %654 = vmatmul.mubr.f32.gmra.mrb[0].mxu0 %v564
        %v655 = vpop.f32.mrb[0].mxu0
        %v656 = vadd.f32 %v527, %v655
        %v657 = vpop.f32.mrb[0].mxu0
        %658 = vmatprep.mubr.f32.mxu0 0.0
        %659 = vmatmul.mubr.f32.gmra.mrb[0].mxu0 %v567
        %v660 = vpop.f32.mrb[0].mxu0
        %v661 = vadd.f32 %v532, %v660
        %v662 = vpop.f32.mrb[0].mxu0
        %663 = vmatprep.mubr.f32.mxu0 0.0
        %664 = vmatmul.mubr.f32.gmra.mrb[0].mxu0 %v570
        %v665 = vpop.f32.mrb[0].mxu0
        %v666 = vadd.f32 %v537, %v665
        %v667 = vpop.f32.mrb[0].mxu0
        %668 = vmatprep.mubr.f32.mxu0 0.0
        %669 = vmatmul.mubr.f32.gmra.mrb[0].mxu0 %v573
        %v670 = vpop.f32.mrb[0].mxu0
        %v671 = vadd.f32 %v542, %v670
        %v672 = vpop.f32.mrb[0].mxu0
        %673 = vmatprep.mubr.f32.mxu0 0.0
        %674 = vmatmul.mubr.f32.gmra.mrb[0].mxu0 %v576
        %v675 = vpop.f32.mrb[0].mxu0
        %v676 = vadd.f32 %v547, %v675
        %v677 = vpop.f32.mrb[0].mxu0
        %678 = vmatprep.mubr.f32.mxu0 0.0
        %679 = vmatmul.mubr.f32.gmra.mrb[0].mxu0 %v579
        %v680 = vpop.f32.mrb[0].mxu0
        %v681 = vadd.f32 %v552, %v680
        %v682 = vpop.f32.mrb[0].mxu0
        %683 = vmatprep.mubr.f32.mxu0 0.0
        %684 = vmatmul.mubr.f32.gmra.mrb[0].mxu0 %v582
        %v685 = vpop.f32.mrb[0].mxu0
        %v686 = vadd.f32 %v557, %v685
        %v687 = vpop.f32.mrb[0].mxu0
        %688 = vdwg.mxu0
        %v689 = vld [vmem:[#allocation2 + $0x2] sm:$0xff]
        %v690 = vld [vmem:[#allocation2 + $0xa] sm:$0xff]
        %v691 = vld [vmem:[#allocation2 + $0x1a] sm:$0xff]
        %v692 = vld [vmem:[#allocation2 + $0x22] sm:$0xff]
        %v693 = vld [vmem:[#allocation2 + $0x32] sm:$0xff]
        %v694 = vld [vmem:[#allocation2 + $0x3a] sm:$0xff]
        %v695 = vld [vmem:[#allocation2 + $0x4a] sm:$0xff]
        %v696 = vld [vmem:[#allocation2 + $0x52] sm:$0xff]
        %s697 = scalar_lea.vmem [#allocation7], 32
        %v698 = vld [vmem:[%s697] sm:$0xff]
        %v699 = vld [vmem:[%s697 + $0x8] sm:$0xff]
        %v701 = vsel %vm401, %v689, 0
        %v704 = vsel %vm401, %v690, 0
        %v707 = vsel %vm401, %v691, 0
        %v710 = vsel %vm401, %v692, 0
        %v713 = vsel %vm401, %v693, 0
        %v716 = vsel %vm401, %v694, 0
        %v719 = vsel %vm401, %v695, 0
        %v722 = vsel %vm401, %v696, 0
        %724 = vmatprep.subr.mxu0 0.0
        %725 = vmatpush1.msra.mxu0 %v698
        %726 = vmatprep.subr.mxu0 0.0
        %727 = vmatpush1.msra.mxu0 %v699
        %728 = vmatprep.subr.mxu0 0.0
        %729 = vmatpush1.msra.mxu0 0.0
        %730 = vmatprep.subr.mxu0 0.0
        %731 = vmatpush1.msra.mxu0 0.0
        %732 = vmatprep.subr.mxu0 0.0
        %733 = vmatpush1.msra.mxu0 0.0
        %734 = vmatprep.subr.mxu0 0.0
        %735 = vmatpush1.msra.mxu0 0.0
        %736 = vmatprep.subr.mxu0 0.0
        %737 = vmatpush1.msra.mxu0 0.0
        %738 = vmatprep.subr.mxu0 0.0
        %739 = vmatpush1.msra.mxu0 0.0
        %740 = vmatprep.subr.mxu0 0.0
        %741 = vmatpush1.msra.mxu0 0.0
        %742 = vmatprep.subr.mxu0 0.0
        %743 = vmatpush1.msra.mxu0 0.0
        %744 = vmatprep.subr.mxu0 0.0
        %745 = vmatpush1.msra.mxu0 0.0
        %746 = vmatprep.subr.mxu0 0.0
        %747 = vmatpush1.msra.mxu0 0.0
        %748 = vmatprep.subr.mxu0 0.0
        %749 = vmatpush1.msra.mxu0 0.0
        %750 = vmatprep.subr.mxu0 0.0
        %751 = vmatpush1.msra.mxu0 0.0
        %752 = vmatprep.subr.mxu0 0.0
        %753 = vmatpush1.msra.mxu0 0.0
        %754 = vmatprep.subr.mxu0 0.0
        %755 = vmatpush1.msra.mxu0 0.0
        %756 = vmatprep.subr.mxu0 0.0
        %757 = vmatpush1.msra.mxu0 0.0
        %758 = vmatprep.subr.mxu0 0.0
        %759 = vmatpush1.msra.mxu0 0.0
        %760 = vmatprep.subr.mxu0 0.0
        %761 = vmatpush1.msra.mxu0 0.0
        %762 = vmatprep.subr.mxu0 0.0
        %763 = vmatpush1.msra.mxu0 0.0
        %764 = vmatprep.subr.mxu0 0.0
        %765 = vmatpush1.msra.mxu0 0.0
        %766 = vmatprep.subr.mxu0 0.0
        %767 = vmatpush1.msra.mxu0 0.0
        %768 = vmatprep.subr.mxu0 0.0
        %769 = vmatpush1.msra.mxu0 0.0
        %770 = vmatprep.subr.mxu0 0.0
        %771 = vmatpush1.msra.mxu0 0.0
        %772 = vmatprep.subr.mxu0 0.0
        %773 = vmatpush1.msra.mxu0 0.0
        %774 = vmatprep.subr.mxu0 0.0
        %775 = vmatpush1.msra.mxu0 0.0
        %776 = vmatprep.subr.mxu0 0.0
        %777 = vmatpush1.msra.mxu0 0.0
        %778 = vmatprep.subr.mxu0 0.0
        %779 = vmatpush1.msra.mxu0 0.0
        %780 = vmatprep.subr.mxu0 0.0
        %781 = vmatpush1.msra.mxu0 0.0
        %782 = vmatprep.subr.mxu0 0.0
        %783 = vmatpush1.msra.mxu0 0.0
        %784 = vmatprep.subr.mxu0 0.0
        %785 = vmatpush1.msra.mxu0 0.0
        %786 = vmatprep.subr.mxu0 0.0
        %787 = vmatpush1.msra.mxu0 0.0
        %788 = vmatprep.mubr.f32.mxu0 0.0
        %789 = vmatmul.mubr.f32.gmra.mrb[0].mxu0 %v701
        %v790 = vpop.f32.mrb[0].mxu0
        %v791 = vadd.f32 0.0, %v790
        %v792 = vpop.f32.mrb[0].mxu0
        %793 = vmatprep.mubr.f32.mxu0 0.0
        %794 = vmatmul.mubr.f32.gmra.mrb[0].mxu0 %v704
        %v795 = vpop.f32.mrb[0].mxu0
        %v796 = vadd.f32 0.0, %v795
        %v797 = vpop.f32.mrb[0].mxu0
        %798 = vmatprep.mubr.f32.mxu0 0.0
        %799 = vmatmul.mubr.f32.gmra.mrb[0].mxu0 %v707
        %v800 = vpop.f32.mrb[0].mxu0
        %v801 = vadd.f32 0.0, %v800
        %v802 = vpop.f32.mrb[0].mxu0
        %803 = vmatprep.mubr.f32.mxu0 0.0
        %804 = vmatmul.mubr.f32.gmra.mrb[0].mxu0 %v710
        %v805 = vpop.f32.mrb[0].mxu0
        %v806 = vadd.f32 0.0, %v805
        %v807 = vpop.f32.mrb[0].mxu0
        %808 = vmatprep.mubr.f32.mxu0 0.0
        %809 = vmatmul.mubr.f32.gmra.mrb[0].mxu0 %v713
        %v810 = vpop.f32.mrb[0].mxu0
        %v811 = vadd.f32 0.0, %v810
        %v812 = vpop.f32.mrb[0].mxu0
        %813 = vmatprep.mubr.f32.mxu0 0.0
        %814 = vmatmul.mubr.f32.gmra.mrb[0].mxu0 %v716
        %v815 = vpop.f32.mrb[0].mxu0
        %v816 = vadd.f32 0.0, %v815
        %v817 = vpop.f32.mrb[0].mxu0
        %818 = vmatprep.mubr.f32.mxu0 0.0
        %819 = vmatmul.mubr.f32.gmra.mrb[0].mxu0 %v719
        %v820 = vpop.f32.mrb[0].mxu0
        %v821 = vadd.f32 0.0, %v820
        %v822 = vpop.f32.mrb[0].mxu0
        %823 = vmatprep.mubr.f32.mxu0 0.0
        %824 = vmatmul.mubr.f32.gmra.mrb[0].mxu0 %v722
        %v825 = vpop.f32.mrb[0].mxu0
        %v826 = vadd.f32 0.0, %v825
        %v827 = vpop.f32.mrb[0].mxu0
        %828 = vdwg.mxu0
        %v829 = vadd.f32 %v651, %v791
        %v830 = vadd.f32 %v656, %v796
        %v831 = vadd.f32 %v661, %v801
        %v832 = vadd.f32 %v666, %v806
        %v833 = vadd.f32 %v671, %v811
        %v834 = vadd.f32 %v676, %v816
        %v835 = vadd.f32 %v681, %v821
        %v836 = vadd.f32 %v686, %v826
        %v837 = vlaneseq
        %v838 = vshrl.u32 %v837, 7
        %v839 = vsub.s32 0, %v838
        %v840 = vrot.slane %v378, %v839
        %v841 = vadd.f32 %v829, %v840
        %v842 = vadd.f32 %v830, %v840
        %v843 = vadd.f32 %v831, %v840
        %v844 = vadd.f32 %v832, %v840
        %v845 = vadd.f32 %v833, %v840
        %v846 = vadd.f32 %v834, %v840
        %v847 = vadd.f32 %v835, %v840
        %v848 = vadd.f32 %v836, %v840
        %vm849 = vcmask 261120
        %v850 = vsel %vm849, %v841, 0.0
        %v851 = vsel %vm849, %v842, 0.0
        %v852 = vadd.f32 %v850, %v851
        %v853 = vrot.slane %v852, 4
        %v854 = vadd.f32 %v852, %v853
        %v855 = vrot.slane %v854, 2
        %v856 = vadd.f32 %v854, %v855
        %v857 = vrot.slane %v856, 1
        %v858 = vadd.f32 %v856, %v857
        %v859 = vsel %vm849, %v843, 0.0
        %v860 = vsel %vm849, %v844, 0.0
        %v861 = vadd.f32 %v859, %v860
        %v862 = vrot.slane %v861, 4
        %v863 = vadd.f32 %v861, %v862
        %v864 = vrot.slane %v863, 2
        %v865 = vadd.f32 %v863, %v864
        %v866 = vrot.slane %v865, 1
        %v867 = vadd.f32 %v865, %v866
        %v868 = vsel %vm849, %v845, 0.0
        %v869 = vsel %vm849, %v846, 0.0
        %v870 = vadd.f32 %v868, %v869
        %v871 = vrot.slane %v870, 4
        %v872 = vadd.f32 %v870, %v871
        %v873 = vrot.slane %v872, 2
        %v874 = vadd.f32 %v872, %v873
        %v875 = vrot.slane %v874, 1
        %v876 = vadd.f32 %v874, %v875
        %v877 = vsel %vm849, %v847, 0.0
        %v878 = vsel %vm849, %v848, 0.0
        %v879 = vadd.f32 %v877, %v878
        %v880 = vrot.slane %v879, 4
        %v881 = vadd.f32 %v879, %v880
        %v882 = vrot.slane %v881, 2
        %v883 = vadd.f32 %v881, %v882
        %v884 = vrot.slane %v883, 1
        %v885 = vadd.f32 %v883, %v884
        %vm890 = vcmask 1041409
        %v891 = vsel %vm890, %v867, %v858
        %vm892 = vcmask 1042434
        %v893 = vsel %vm892, %v876, %v891
        %vm894 = vcmask 1043459
        %v895 = vsel %vm894, %v885, %v893
        %v896 = vsel %vm849, %v895, 0
        %898 = vmatprep.subr.mxu0 0.0
        %899 = vmatpush1.msra.mxu0 %v379
        %900 = vmatprep.subr.mxu0 0.0
        %901 = vmatpush1.msra.mxu0 %v380
        %902 = vmatprep.subr.mxu0 0.0
        %903 = vmatpush1.msra.mxu0 %v381
        %904 = vmatprep.subr.mxu0 0.0
        %905 = vmatpush1.msra.mxu0 %v382
        %906 = vmatprep.subr.mxu0 0.0
        %907 = vmatpush1.msra.mxu0 0.0
        %908 = vmatprep.subr.mxu0 0.0
        %909 = vmatpush1.msra.mxu0 0.0
        %910 = vmatprep.subr.mxu0 0.0
        %911 = vmatpush1.msra.mxu0 0.0
        %912 = vmatprep.subr.mxu0 0.0
        %913 = vmatpush1.msra.mxu0 0.0
        %914 = vmatprep.subr.mxu0 0.0
        %915 = vmatpush1.msra.mxu0 0.0
        %916 = vmatprep.subr.mxu0 0.0
        %917 = vmatpush1.msra.mxu0 0.0
        %918 = vmatprep.subr.mxu0 0.0
        %919 = vmatpush1.msra.mxu0 0.0
        %920 = vmatprep.subr.mxu0 0.0
        %921 = vmatpush1.msra.mxu0 0.0
        %922 = vmatprep.subr.mxu0 0.0
        %923 = vmatpush1.msra.mxu0 0.0
        %924 = vmatprep.subr.mxu0 0.0
        %925 = vmatpush1.msra.mxu0 0.0
        %926 = vmatprep.subr.mxu0 0.0
        %927 = vmatpush1.msra.mxu0 0.0
        %928 = vmatprep.subr.mxu0 0.0
        %929 = vmatpush1.msra.mxu0 0.0
        %930 = vmatprep.subr.mxu0 0.0
        %931 = vmatpush1.msra.mxu0 0.0
        %932 = vmatprep.subr.mxu0 0.0
        %933 = vmatpush1.msra.mxu0 0.0
        %934 = vmatprep.subr.mxu0 0.0
        %935 = vmatpush1.msra.mxu0 0.0
        %936 = vmatprep.subr.mxu0 0.0
        %937 = vmatpush1.msra.mxu0 0.0
        %938 = vmatprep.subr.mxu0 0.0
        %939 = vmatpush1.msra.mxu0 0.0
        %940 = vmatprep.subr.mxu0 0.0
        %941 = vmatpush1.msra.mxu0 0.0
        %942 = vmatprep.subr.mxu0 0.0
        %943 = vmatpush1.msra.mxu0 0.0
        %944 = vmatprep.subr.mxu0 0.0
        %945 = vmatpush1.msra.mxu0 0.0
        %946 = vmatprep.subr.mxu0 0.0
        %947 = vmatpush1.msra.mxu0 0.0
        %948 = vmatprep.subr.mxu0 0.0
        %949 = vmatpush1.msra.mxu0 0.0
        %950 = vmatprep.subr.mxu0 0.0
        %951 = vmatpush1.msra.mxu0 0.0
        %952 = vmatprep.subr.mxu0 0.0
        %953 = vmatpush1.msra.mxu0 0.0
        %954 = vmatprep.subr.mxu0 0.0
        %955 = vmatpush1.msra.mxu0 0.0
        %956 = vmatprep.subr.mxu0 0.0
        %957 = vmatpush1.msra.mxu0 0.0
        %958 = vmatprep.subr.mxu0 0.0
        %959 = vmatpush1.msra.mxu0 0.0
        %960 = vmatprep.subr.mxu0 0.0
        %961 = vmatpush1.msra.mxu0 0.0
        %962 = vmatprep.mubr.f32.mxu0 0.0
        %963 = vmatmul.mubr.f32.gmra.mrb[0].mxu0 %v896
        %v964 = vpop.f32.mrb[0].mxu0
        %v965 = vadd.f32 0.0, %v964
        %v966 = vpop.f32.mrb[0].mxu0
        %967 = vdwg.mxu0
        %v968 = vmul.f32 %v965, 0.015625
        %vm969 = vcmask 64512
        %v971 = vsel %vm969, %v968, 0
        %973 = vmatprep.subr.mxu0 0.0
        %974 = vmatpush1.msra.mxu0 %v383
        %975 = vmatprep.subr.mxu0 0.0
        %976 = vmatpush1.msra.mxu0 0.0
        %977 = vmatprep.subr.mxu0 0.0
        %978 = vmatpush1.msra.mxu0 0.0
        %979 = vmatprep.subr.mxu0 0.0
        %980 = vmatpush1.msra.mxu0 0.0
        %981 = vmatprep.subr.mxu0 0.0
        %982 = vmatpush1.msra.mxu0 0.0
        %983 = vmatprep.subr.mxu0 0.0
        %984 = vmatpush1.msra.mxu0 0.0
        %985 = vmatprep.subr.mxu0 0.0
        %986 = vmatpush1.msra.mxu0 0.0
        %987 = vmatprep.subr.mxu0 0.0
        %988 = vmatpush1.msra.mxu0 0.0
        %989 = vmatprep.subr.mxu0 0.0
        %990 = vmatpush1.msra.mxu0 0.0
        %991 = vmatprep.subr.mxu0 0.0
        %992 = vmatpush1.msra.mxu0 0.0
        %993 = vmatprep.subr.mxu0 0.0
        %994 = vmatpush1.msra.mxu0 0.0
        %995 = vmatprep.subr.mxu0 0.0
        %996 = vmatpush1.msra.mxu0 0.0
        %997 = vmatprep.subr.mxu0 0.0
        %998 = vmatpush1.msra.mxu0 0.0
        %999 = vmatprep.subr.mxu0 0.0
        %1000 = vmatpush1.msra.mxu0 0.0
        %1001 = vmatprep.subr.mxu0 0.0
        %1002 = vmatpush1.msra.mxu0 0.0
        %1003 = vmatprep.subr.mxu0 0.0
        %1004 = vmatpush1.msra.mxu0 0.0
        %1005 = vmatprep.subr.mxu0 0.0
        %1006 = vmatpush1.msra.mxu0 0.0
        %1007 = vmatprep.subr.mxu0 0.0
        %1008 = vmatpush1.msra.mxu0 0.0
        %1009 = vmatprep.subr.mxu0 0.0
        %1010 = vmatpush1.msra.mxu0 0.0
        %1011 = vmatprep.subr.mxu0 0.0
        %1012 = vmatpush1.msra.mxu0 0.0
        %1013 = vmatprep.subr.mxu0 0.0
        %1014 = vmatpush1.msra.mxu0 0.0
        %1015 = vmatprep.subr.mxu0 0.0
        %1016 = vmatpush1.msra.mxu0 0.0
        %1017 = vmatprep.subr.mxu0 0.0
        %1018 = vmatpush1.msra.mxu0 0.0
        %1019 = vmatprep.subr.mxu0 0.0
        %1020 = vmatpush1.msra.mxu0 0.0
        %1021 = vmatprep.subr.mxu0 0.0
        %1022 = vmatpush1.msra.mxu0 0.0
        %1023 = vmatprep.subr.mxu0 0.0
        %1024 = vmatpush1.msra.mxu0 0.0
        %1025 = vmatprep.subr.mxu0 0.0
        %1026 = vmatpush1.msra.mxu0 0.0
        %1027 = vmatprep.subr.mxu0 0.0
        %1028 = vmatpush1.msra.mxu0 0.0
        %1029 = vmatprep.subr.mxu0 0.0
        %1030 = vmatpush1.msra.mxu0 0.0
        %1031 = vmatprep.subr.mxu0 0.0
        %1032 = vmatpush1.msra.mxu0 0.0
        %1033 = vmatprep.subr.mxu0 0.0
        %1034 = vmatpush1.msra.mxu0 0.0
        %1035 = vmatprep.subr.mxu0 0.0
        %1036 = vmatpush1.msra.mxu0 0.0
        %1037 = vmatprep.mubr.f32.mxu0 0.0
        %1038 = vmatmul.mubr.f32.gmra.mrb[0].mxu0 %v971
        %v1039 = vpop.f32.mrb[0].mxu0
        %v1040 = vadd.f32 0.0, %v1039
        %v1041 = vpop.f32.mrb[0].mxu0
        %1042 = vdwg.mxu0
        %v1045 = vunpack.c.l.s4 1966171168
        %v1046 = vunpack.c.0.s8 %v1045
        %v1047 = vlaneseq
        %v1048 = vshrl.u32 %v1047, 7
        %v1049 = vsub.s32 %v1046, %v1048
        %v1050 = vrot.slane %v1040, %v1049
        %v1051 = vcombine.high %v1050, %v1050
        %v1053 = vunpack.c.l.s4 1966171168
        %v1054 = vunpack.c.0.s8 %v1053
        %v1055 = vlaneseq
        %v1056 = vshrl.u32 %v1055, 7
        %v1057 = vsub.s32 %v1054, %v1056
        %v1058 = vrot.slane %v1050, %v1057
        %v1060 = vunpack.c.l.s4 1966171168
        %v1061 = vunpack.c.0.s8 %v1060
        %v1062 = vlaneseq
        %v1063 = vshrl.u32 %v1062, 7
        %v1064 = vsub.s32 %v1061, %v1063
        %v1065 = vrot.slane %v1051, %v1064
        %v1066 = vcombine.high %v1058, %v1058
        %v1067 = vcombine.high %v1065, %v1065
        %v1068 = vlaneseq
        %v1069 = vshrl.u32 %v1068, 7
        %v1070 = vsub.s32 0, %v1069
        %v1071 = vrot.slane %v1058, %v1070
        %v1072 = vlaneseq
        %v1073 = vshrl.u32 %v1072, 7
        %v1074 = vsub.s32 0, %v1073
        %v1075 = vrot.slane %v1065, %v1074
        %v1076 = vlaneseq
        %v1077 = vshrl.u32 %v1076, 7
        %v1078 = vsub.s32 0, %v1077
        %v1079 = vrot.slane %v1066, %v1078
        %v1080 = vlaneseq
        %v1081 = vshrl.u32 %v1080, 7
        %v1082 = vsub.s32 0, %v1081
        %v1083 = vrot.slane %v1067, %v1082
        %v1088 = vsub.f32 %v841, %v1071
        %v1089 = vsub.f32 %v842, %v1071
        %v1090 = vsub.f32 %v843, %v1075
        %v1091 = vsub.f32 %v844, %v1075
        %v1092 = vsub.f32 %v845, %v1079
        %v1093 = vsub.f32 %v846, %v1079
        %v1094 = vsub.f32 %v847, %v1083
        %v1095 = vsub.f32 %v848, %v1083
        %v1096 = vmul.f32 %v1088, %v1088
        %v1097 = vmul.f32 %v1089, %v1089
        %v1098 = vmul.f32 %v1090, %v1090
        %v1099 = vmul.f32 %v1091, %v1091
        %v1100 = vmul.f32 %v1092, %v1092
        %v1101 = vmul.f32 %v1093, %v1093
        %v1102 = vmul.f32 %v1094, %v1094
        %v1103 = vmul.f32 %v1095, %v1095
        %v1104 = vsel %vm849, %v1096, 0.0
        %v1105 = vsel %vm849, %v1097, 0.0
        %v1106 = vadd.f32 %v1104, %v1105
        %v1107 = vrot.slane %v1106, 4
        %v1108 = vadd.f32 %v1106, %v1107
        %v1109 = vrot.slane %v1108, 2
        %v1110 = vadd.f32 %v1108, %v1109
        %v1111 = vrot.slane %v1110, 1
        %v1112 = vadd.f32 %v1110, %v1111
        %v1113 = vsel %vm849, %v1098, 0.0
        %v1114 = vsel %vm849, %v1099, 0.0
        %v1115 = vadd.f32 %v1113, %v1114
        %v1116 = vrot.slane %v1115, 4
        %v1117 = vadd.f32 %v1115, %v1116
        %v1118 = vrot.slane %v1117, 2
        %v1119 = vadd.f32 %v1117, %v1118
        %v1120 = vrot.slane %v1119, 1
        %v1121 = vadd.f32 %v1119, %v1120
        %v1122 = vsel %vm849, %v1100, 0.0
        %v1123 = vsel %vm849, %v1101, 0.0
        %v1124 = vadd.f32 %v1122, %v1123
        %v1125 = vrot.slane %v1124, 4
        %v1126 = vadd.f32 %v1124, %v1125
        %v1127 = vrot.slane %v1126, 2
        %v1128 = vadd.f32 %v1126, %v1127
        %v1129 = vrot.slane %v1128, 1
        %v1130 = vadd.f32 %v1128, %v1129
        %v1131 = vsel %vm849, %v1102, 0.0
        %v1132 = vsel %vm849, %v1103, 0.0
        %v1133 = vadd.f32 %v1131, %v1132
        %v1134 = vrot.slane %v1133, 4
        %v1135 = vadd.f32 %v1133, %v1134
        %v1136 = vrot.slane %v1135, 2
        %v1137 = vadd.f32 %v1135, %v1136
        %v1138 = vrot.slane %v1137, 1
        %v1139 = vadd.f32 %v1137, %v1138
        %v1144 = vsel %vm890, %v1121, %v1112
        %v1145 = vsel %vm892, %v1130, %v1144
        %v1146 = vsel %vm894, %v1139, %v1145
        %v1147 = vsel %vm849, %v1146, 0
        %1149 = vmatprep.subr.mxu0 0.0
        %1150 = vmatpush1.msra.mxu0 %v379
        %1151 = vmatprep.subr.mxu0 0.0
        %1152 = vmatpush1.msra.mxu0 %v380
        %1153 = vmatprep.subr.mxu0 0.0
        %1154 = vmatpush1.msra.mxu0 %v381
        %1155 = vmatprep.subr.mxu0 0.0
        %1156 = vmatpush1.msra.mxu0 %v382
        %1157 = vmatprep.subr.mxu0 0.0
        %1158 = vmatpush1.msra.mxu0 0.0
        %1159 = vmatprep.subr.mxu0 0.0
        %1160 = vmatpush1.msra.mxu0 0.0
        %1161 = vmatprep.subr.mxu0 0.0
        %1162 = vmatpush1.msra.mxu0 0.0
        %1163 = vmatprep.subr.mxu0 0.0
        %1164 = vmatpush1.msra.mxu0 0.0
        %1165 = vmatprep.subr.mxu0 0.0
        %1166 = vmatpush1.msra.mxu0 0.0
        %1167 = vmatprep.subr.mxu0 0.0
        %1168 = vmatpush1.msra.mxu0 0.0
        %1169 = vmatprep.subr.mxu0 0.0
        %1170 = vmatpush1.msra.mxu0 0.0
        %1171 = vmatprep.subr.mxu0 0.0
        %1172 = vmatpush1.msra.mxu0 0.0
        %1173 = vmatprep.subr.mxu0 0.0
        %1174 = vmatpush1.msra.mxu0 0.0
        %1175 = vmatprep.subr.mxu0 0.0
        %1176 = vmatpush1.msra.mxu0 0.0
        %1177 = vmatprep.subr.mxu0 0.0
        %1178 = vmatpush1.msra.mxu0 0.0
        %1179 = vmatprep.subr.mxu0 0.0
        %1180 = vmatpush1.msra.mxu0 0.0
        %1181 = vmatprep.subr.mxu0 0.0
        %1182 = vmatpush1.msra.mxu0 0.0
        %1183 = vmatprep.subr.mxu0 0.0
        %1184 = vmatpush1.msra.mxu0 0.0
        %1185 = vmatprep.subr.mxu0 0.0
        %1186 = vmatpush1.msra.mxu0 0.0
        %1187 = vmatprep.subr.mxu0 0.0
        %1188 = vmatpush1.msra.mxu0 0.0
        %1189 = vmatprep.subr.mxu0 0.0
        %1190 = vmatpush1.msra.mxu0 0.0
        %1191 = vmatprep.subr.mxu0 0.0
        %1192 = vmatpush1.msra.mxu0 0.0
        %1193 = vmatprep.subr.mxu0 0.0
        %1194 = vmatpush1.msra.mxu0 0.0
        %1195 = vmatprep.subr.mxu0 0.0
        %1196 = vmatpush1.msra.mxu0 0.0
        %1197 = vmatprep.subr.mxu0 0.0
        %1198 = vmatpush1.msra.mxu0 0.0
        %1199 = vmatprep.subr.mxu0 0.0
        %1200 = vmatpush1.msra.mxu0 0.0
        %1201 = vmatprep.subr.mxu0 0.0
        %1202 = vmatpush1.msra.mxu0 0.0
        %1203 = vmatprep.subr.mxu0 0.0
        %1204 = vmatpush1.msra.mxu0 0.0
        %1205 = vmatprep.subr.mxu0 0.0
        %1206 = vmatpush1.msra.mxu0 0.0
        %1207 = vmatprep.subr.mxu0 0.0
        %1208 = vmatpush1.msra.mxu0 0.0
        %1209 = vmatprep.subr.mxu0 0.0
        %1210 = vmatpush1.msra.mxu0 0.0
        %1211 = vmatprep.subr.mxu0 0.0
        %1212 = vmatpush1.msra.mxu0 0.0
        %1213 = vmatprep.mubr.f32.mxu0 0.0
        %1214 = vmatmul.mubr.f32.gmra.mrb[0].mxu0 %v1147
        %v1215 = vpop.f32.mrb[0].mxu0
        %v1216 = vadd.f32 0.0, %v1215
        %v1217 = vpop.f32.mrb[0].mxu0
        %1218 = vdwg.mxu0
        %v1219 = vmul.f32 %v1216, 0.015625
        %v1220 = vadd.f32 %v1219, 1e-05
        %v1221 = vrsqrt.pop %v1220
        %v1223 = vsel %vm969, %v1221, 0
        %1225 = vmatprep.subr.mxu0 0.0
        %1226 = vmatpush1.msra.mxu0 %v383
        %1227 = vmatprep.subr.mxu0 0.0
        %1228 = vmatpush1.msra.mxu0 0.0
        %1229 = vmatprep.subr.mxu0 0.0
        %1230 = vmatpush1.msra.mxu0 0.0
        %1231 = vmatprep.subr.mxu0 0.0
        %1232 = vmatpush1.msra.mxu0 0.0
        %1233 = vmatprep.subr.mxu0 0.0
        %1234 = vmatpush1.msra.mxu0 0.0
        %1235 = vmatprep.subr.mxu0 0.0
        %1236 = vmatpush1.msra.mxu0 0.0
        %1237 = vmatprep.subr.mxu0 0.0
        %1238 = vmatpush1.msra.mxu0 0.0
        %1239 = vmatprep.subr.mxu0 0.0
        %1240 = vmatpush1.msra.mxu0 0.0
        %1241 = vmatprep.subr.mxu0 0.0
        %1242 = vmatpush1.msra.mxu0 0.0
        %1243 = vmatprep.subr.mxu0 0.0
        %1244 = vmatpush1.msra.mxu0 0.0
        %1245 = vmatprep.subr.mxu0 0.0
        %1246 = vmatpush1.msra.mxu0 0.0
        %1247 = vmatprep.subr.mxu0 0.0
        %1248 = vmatpush1.msra.mxu0 0.0
        %1249 = vmatprep.subr.mxu0 0.0
        %1250 = vmatpush1.msra.mxu0 0.0
        %1251 = vmatprep.subr.mxu0 0.0
        %1252 = vmatpush1.msra.mxu0 0.0
        %1253 = vmatprep.subr.mxu0 0.0
        %1254 = vmatpush1.msra.mxu0 0.0
        %1255 = vmatprep.subr.mxu0 0.0
        %1256 = vmatpush1.msra.mxu0 0.0
        %1257 = vmatprep.subr.mxu0 0.0
        %1258 = vmatpush1.msra.mxu0 0.0
        %1259 = vmatprep.subr.mxu0 0.0
        %1260 = vmatpush1.msra.mxu0 0.0
        %1261 = vmatprep.subr.mxu0 0.0
        %1262 = vmatpush1.msra.mxu0 0.0
        %1263 = vmatprep.subr.mxu0 0.0
        %1264 = vmatpush1.msra.mxu0 0.0
        %1265 = vmatprep.subr.mxu0 0.0
        %1266 = vmatpush1.msra.mxu0 0.0
        %1267 = vmatprep.subr.mxu0 0.0
        %1268 = vmatpush1.msra.mxu0 0.0
        %1269 = vmatprep.subr.mxu0 0.0
        %1270 = vmatpush1.msra.mxu0 0.0
        %1271 = vmatprep.subr.mxu0 0.0
        %1272 = vmatpush1.msra.mxu0 0.0
        %1273 = vmatprep.subr.mxu0 0.0
        %1274 = vmatpush1.msra.mxu0 0.0
        %1275 = vmatprep.subr.mxu0 0.0
        %1276 = vmatpush1.msra.mxu0 0.0
        %1277 = vmatprep.subr.mxu0 0.0
        %1278 = vmatpush1.msra.mxu0 0.0
        %1279 = vmatprep.subr.mxu0 0.0
        %1280 = vmatpush1.msra.mxu0 0.0
        %1281 = vmatprep.subr.mxu0 0.0
        %1282 = vmatpush1.msra.mxu0 0.0
        %1283 = vmatprep.subr.mxu0 0.0
        %1284 = vmatpush1.msra.mxu0 0.0
        %1285 = vmatprep.subr.mxu0 0.0
        %1286 = vmatpush1.msra.mxu0 0.0
        %1287 = vmatprep.subr.mxu0 0.0
        %1288 = vmatpush1.msra.mxu0 0.0
        %1289 = vmatprep.mubr.f32.mxu0 0.0
        %1290 = vmatmul.mubr.f32.gmra.mrb[0].mxu0 %v1223
        %v1291 = vpop.f32.mrb[0].mxu0
        %v1292 = vadd.f32 0.0, %v1291
        %v1293 = vpop.f32.mrb[0].mxu0
        %1294 = vdwg.mxu0
        %v1295 = vlaneseq
        %v1296 = vshrl.u32 %v1295, 7
        %v1297 = vsub.s32 1, %v1296
        %v1298 = vrot.slane %v378, %v1297
        %v1299 = vmul.f32 %v1292, %v1298
        %v1302 = vunpack.c.l.s4 1966171168
        %v1303 = vunpack.c.0.s8 %v1302
        %v1304 = vlaneseq
        %v1305 = vshrl.u32 %v1304, 7
        %v1306 = vsub.s32 %v1303, %v1305
        %v1307 = vrot.slane %v1299, %v1306
        %v1308 = vcombine.high %v1307, %v1307
        %v1310 = vunpack.c.l.s4 1966171168
        %v1311 = vunpack.c.0.s8 %v1310
        %v1312 = vlaneseq
        %v1313 = vshrl.u32 %v1312, 7
        %v1314 = vsub.s32 %v1311, %v1313
        %v1315 = vrot.slane %v1307, %v1314
        %v1317 = vunpack.c.l.s4 1966171168
        %v1318 = vunpack.c.0.s8 %v1317
        %v1319 = vlaneseq
        %v1320 = vshrl.u32 %v1319, 7
        %v1321 = vsub.s32 %v1318, %v1320
        %v1322 = vrot.slane %v1308, %v1321
        %v1323 = vcombine.high %v1315, %v1315
        %v1324 = vcombine.high %v1322, %v1322
        %v1325 = vlaneseq
        %v1326 = vshrl.u32 %v1325, 7
        %v1327 = vsub.s32 0, %v1326
        %v1328 = vrot.slane %v1315, %v1327
        %v1329 = vlaneseq
        %v1330 = vshrl.u32 %v1329, 7
        %v1331 = vsub.s32 0, %v1330
        %v1332 = vrot.slane %v1322, %v1331
        %v1333 = vlaneseq
        %v1334 = vshrl.u32 %v1333, 7
        %v1335 = vsub.s32 0, %v1334
        %v1336 = vrot.slane %v1323, %v1335
        %v1337 = vlaneseq
        %v1338 = vshrl.u32 %v1337, 7
        %v1339 = vsub.s32 0, %v1338
        %v1340 = vrot.slane %v1324, %v1339
        %v1345 = vmul.f32 %v1088, %v1328
        %v1346 = vmul.f32 %v1089, %v1328
        %v1347 = vmul.f32 %v1090, %v1332
        %v1348 = vmul.f32 %v1091, %v1332
        %v1349 = vmul.f32 %v1092, %v1336
        %v1350 = vmul.f32 %v1093, %v1336
        %v1351 = vmul.f32 %v1094, %v1340
        %v1352 = vmul.f32 %v1095, %v1340
        %v1353 = vlaneseq
        %v1354 = vshrl.u32 %v1353, 7
        %v1355 = vsub.s32 2, %v1354
        %v1356 = vrot.slane %v378, %v1355
        %v1357 = vadd.f32 %v1345, %v1356
        %v1358 = vadd.f32 %v1346, %v1356
        %v1359 = vadd.f32 %v1347, %v1356
        %v1360 = vadd.f32 %v1348, %v1356
        %v1361 = vadd.f32 %v1349, %v1356
        %v1362 = vadd.f32 %v1350, %v1356
        %v1363 = vadd.f32 %v1351, %v1356
        %v1364 = vadd.f32 %v1352, %v1356
        %v1365 = vmin.f32 %v1357, 20.0
        %v1366 = vmin.f32 %v1358, 20.0
        %v1367 = vmin.f32 %v1359, 20.0
        %v1368 = vmin.f32 %v1360, 20.0
        %v1369 = vmin.f32 %v1361, 20.0
        %v1370 = vmin.f32 %v1362, 20.0
        %v1371 = vmin.f32 %v1363, 20.0
        %v1372 = vmin.f32 %v1364, 20.0
        %v1373 = vmul.f32 %v1365, 1.442695
        %v1374 = vpow.pop %v1373
        %v1375 = vmul.f32 %v1366, 1.442695
        %v1376 = vpow.pop %v1375
        %v1377 = vmul.f32 %v1367, 1.442695
        %v1378 = vpow.pop %v1377
        %v1379 = vmul.f32 %v1368, 1.442695
        %v1380 = vpow.pop %v1379
        %v1381 = vmul.f32 %v1369, 1.442695
        %v1382 = vpow.pop %v1381
        %v1383 = vmul.f32 %v1370, 1.442695
        %v1384 = vpow.pop %v1383
        %v1385 = vmul.f32 %v1371, 1.442695
        %v1386 = vpow.pop %v1385
        %v1387 = vmul.f32 %v1372, 1.442695
        %v1388 = vpow.pop %v1387
        %v1389 = vadd.f32 %v1374, 1.0
        %v1390 = vadd.f32 %v1376, 1.0
        %v1391 = vadd.f32 %v1378, 1.0
        %v1392 = vadd.f32 %v1380, 1.0
        %v1393 = vadd.f32 %v1382, 1.0
        %v1394 = vadd.f32 %v1384, 1.0
        %v1395 = vadd.f32 %v1386, 1.0
        %v1396 = vadd.f32 %v1388, 1.0
        %v1397 = vmul.f32 %v1389, %v1389
        %v1398 = vmul.f32 %v1390, %v1390
        %v1399 = vmul.f32 %v1391, %v1391
        %v1400 = vmul.f32 %v1392, %v1392
        %v1401 = vmul.f32 %v1393, %v1393
        %v1402 = vmul.f32 %v1394, %v1394
        %v1403 = vmul.f32 %v1395, %v1395
        %v1404 = vmul.f32 %v1396, %v1396
        %v1405 = vsub.f32 %v1397, 1.0
        %v1406 = vsub.f32 %v1398, 1.0
        %v1407 = vsub.f32 %v1399, 1.0
        %v1408 = vsub.f32 %v1400, 1.0
        %v1409 = vsub.f32 %v1401, 1.0
        %v1410 = vsub.f32 %v1402, 1.0
        %v1411 = vsub.f32 %v1403, 1.0
        %v1412 = vsub.f32 %v1404, 1.0
        %v1413 = vmul.f32 %v1357, %v1405
        %v1414 = vmul.f32 %v1358, %v1406
        %v1415 = vmul.f32 %v1359, %v1407
        %v1416 = vmul.f32 %v1360, %v1408
        %v1417 = vmul.f32 %v1361, %v1409
        %v1418 = vmul.f32 %v1362, %v1410
        %v1419 = vmul.f32 %v1363, %v1411
        %v1420 = vmul.f32 %v1364, %v1412
        %v1421 = vadd.f32 %v1397, 1.0
        %v1422 = vadd.f32 %v1398, 1.0
        %v1423 = vadd.f32 %v1399, 1.0
        %v1424 = vadd.f32 %v1400, 1.0
        %v1425 = vadd.f32 %v1401, 1.0
        %v1426 = vadd.f32 %v1402, 1.0
        %v1427 = vadd.f32 %v1403, 1.0
        %v1428 = vadd.f32 %v1404, 1.0
        %v1429 = vrcp.pop %v1421
        %v1430 = vrcp.pop %v1422
        %v1431 = vrcp.pop %v1423
        %v1432 = vrcp.pop %v1424
        %v1433 = vrcp.pop %v1425
        %v1434 = vrcp.pop %v1426
        %v1435 = vrcp.pop %v1427
        %v1436 = vrcp.pop %v1428
        %v1437 = vmul.f32 %v1413, %v1429
        %v1438 = vmul.f32 %v1414, %v1430
        %v1439 = vmul.f32 %v1415, %v1431
        %v1440 = vmul.f32 %v1416, %v1432
        %v1441 = vmul.f32 %v1417, %v1433
        %v1442 = vmul.f32 %v1418, %v1434
        %v1443 = vmul.f32 %v1419, %v1435
        %v1444 = vmul.f32 %v1420, %v1436
        %v1445 = vld [vmem:[%s375] sm:$0x3]
        %v1446 = vld [vmem:[%s375 + $0x2] sm:$0x3]
        %v1447 = vld [vmem:[%s375 + $0x4] sm:$0x3]
        %v1448 = vld [vmem:[%s375 + $0x6] sm:$0x3]
        %v1449 = vlaneseq
        %v1450 = vshrl.u32 %v1449, 7
        %v1451 = vsub.s32 0, %v1450
        %v1452 = vrot.slane %v1445, %v1451
        %v1453 = vlaneseq
        %v1454 = vshrl.u32 %v1453, 7
        %v1455 = vsub.s32 0, %v1454
        %v1456 = vrot.slane %v1446, %v1455
        %v1457 = vlaneseq
        %v1458 = vshrl.u32 %v1457, 7
        %v1459 = vsub.s32 0, %v1458
        %v1460 = vrot.slane %v1447, %v1459
        %v1461 = vlaneseq
        %v1462 = vshrl.u32 %v1461, 7
        %v1463 = vsub.s32 0, %v1462
        %v1464 = vrot.slane %v1448, %v1463
        %v1465 = vmul.f32 %v1452, %v1437
        %v1466 = vmul.f32 %v1452, %v1438
        %v1467 = vmul.f32 %v1456, %v1439
        %v1468 = vmul.f32 %v1456, %v1440
        %v1469 = vmul.f32 %v1460, %v1441
        %v1470 = vmul.f32 %v1460, %v1442
        %v1471 = vmul.f32 %v1464, %v1443
        %v1472 = vmul.f32 %v1464, %v1444
        %v1473 = vlaneseq
        %v1474 = vshrl.u32 %v1473, 7
        %v1475 = vsub.s32 1, %v1474
        %v1476 = vrot.slane %v1445, %v1475
        %v1477 = vlaneseq
        %v1478 = vshrl.u32 %v1477, 7
        %v1479 = vsub.s32 1, %v1478
        %v1480 = vrot.slane %v1446, %v1479
        %v1481 = vlaneseq
        %v1482 = vshrl.u32 %v1481, 7
        %v1483 = vsub.s32 1, %v1482
        %v1484 = vrot.slane %v1447, %v1483
        %v1485 = vlaneseq
        %v1486 = vshrl.u32 %v1485, 7
        %v1487 = vsub.s32 1, %v1486
        %v1488 = vrot.slane %v1448, %v1487
        %v1489 = vadd.f32 %v1465, %v1476
        %v1490 = vadd.f32 %v1466, %v1476
        %v1491 = vadd.f32 %v1467, %v1480
        %v1492 = vadd.f32 %v1468, %v1480
        %v1493 = vadd.f32 %v1469, %v1484
        %v1494 = vadd.f32 %v1470, %v1484
        %v1495 = vadd.f32 %v1471, %v1488
        %v1496 = vadd.f32 %v1472, %v1488
        %vm1497 = vcmask 253952
        %1498 = vst.msk [vmem:[#allocation3] sm:$0x1] %vm1497, 0.0
        %1499 = vst.msk [vmem:[#allocation3 + $0x18] sm:$0x1] %vm1497, 0.0
        %1500 = vst.msk [vmem:[#allocation3 + $0x30] sm:$0x1] %vm1497, 0.0
        %1501 = vst.msk [vmem:[#allocation3 + $0x48] sm:$0x1] %vm1497, 0.0
        %1502 = vst.msk [vmem:[#allocation3 + $0x11] sm:$0x1] %vm1497, 0.0
        %1503 = vst.msk [vmem:[#allocation3 + $0x29] sm:$0x1] %vm1497, 0.0
        %1504 = vst.msk [vmem:[#allocation3 + $0x41] sm:$0x1] %vm1497, 0.0
        %1505 = vst.msk [vmem:[#allocation3 + $0x59] sm:$0x1] %vm1497, 0.0
        %1506 = vst.msk [vmem:[#allocation3 + $0x1] sm:$0xff] %vm849, %v1489
        %1507 = vst.msk [vmem:[#allocation3 + $0x9] sm:$0xff] %vm849, %v1490
        %1508 = vst.msk [vmem:[#allocation3 + $0x19] sm:$0xff] %vm849, %v1491
        %1509 = vst.msk [vmem:[#allocation3 + $0x21] sm:$0xff] %vm849, %v1492
        %1510 = vst.msk [vmem:[#allocation3 + $0x31] sm:$0xff] %vm849, %v1493
        %1511 = vst.msk [vmem:[#allocation3 + $0x39] sm:$0xff] %vm849, %v1494
        %1512 = vst.msk [vmem:[#allocation3 + $0x49] sm:$0xff] %vm849, %v1495
        %1513 = vst.msk [vmem:[#allocation3 + $0x51] sm:$0xff] %vm849, %v1496
        %v1514 = vld [vmem:[#allocation3] sm:$0xff]
        %v1515 = vld [vmem:[#allocation3 + $0x8] sm:$0xff]
        %v1516 = vld [vmem:[#allocation3 + $0x18] sm:$0xff]
        %v1517 = vld [vmem:[#allocation3 + $0x20] sm:$0xff]
        %v1518 = vld [vmem:[#allocation3 + $0x30] sm:$0xff]
        %v1519 = vld [vmem:[#allocation3 + $0x38] sm:$0xff]
        %v1520 = vld [vmem:[#allocation3 + $0x48] sm:$0xff]
        %v1521 = vld [vmem:[#allocation3 + $0x50] sm:$0xff]
        %v1522 = vld [vmem:[#allocation9] sm:$0xff]
        %v1523 = vld [vmem:[#allocation9 + $0x8] sm:$0xff]
        %v1524 = vld [vmem:[#allocation9 + $0x10] sm:$0xff]
        %v1525 = vld [vmem:[#allocation9 + $0x18] sm:$0xff]
        %v1526 = vld [vmem:[#allocation3 + $0x1] sm:$0xff]
        %v1527 = vld [vmem:[#allocation3 + $0x9] sm:$0xff]
        %v1528 = vld [vmem:[#allocation3 + $0x19] sm:$0xff]
        %v1529 = vld [vmem:[#allocation3 + $0x21] sm:$0xff]
        %v1530 = vld [vmem:[#allocation3 + $0x31] sm:$0xff]
        %v1531 = vld [vmem:[#allocation3 + $0x39] sm:$0xff]
        %v1532 = vld [vmem:[#allocation3 + $0x49] sm:$0xff]
        %v1533 = vld [vmem:[#allocation3 + $0x51] sm:$0xff]
        %s1534 = scalar_lea.vmem [#allocation9], 32
        %v1535 = vld [vmem:[%s1534] sm:$0xff]
        %v1536 = vld [vmem:[%s1534 + $0x8] sm:$0xff]
        %v1537 = vld [vmem:[%s1534 + $0x10] sm:$0xff]
        %v1538 = vld [vmem:[%s1534 + $0x18] sm:$0xff]
        %v1540 = vsel %vm849, %v1526, 0
        %v1543 = vsel %vm849, %v1527, 0
        %v1546 = vsel %vm849, %v1528, 0
        %v1549 = vsel %vm849, %v1529, 0
        %v1552 = vsel %vm849, %v1530, 0
        %v1555 = vsel %vm849, %v1531, 0
        %v1558 = vsel %vm849, %v1532, 0
        %v1561 = vsel %vm849, %v1533, 0
        %1563 = vmatprep.subr.mxu0 0.0
        %1564 = vmatpush1.msra.mxu0 %v1535
        %1565 = vmatprep.subr.mxu0 0.0
        %1566 = vmatpush1.msra.mxu0 %v1536
        %1567 = vmatprep.subr.mxu0 0.0
        %1568 = vmatpush1.msra.mxu0 %v1537
        %1569 = vmatprep.subr.mxu0 0.0
        %1570 = vmatpush1.msra.mxu0 %v1538
        %1571 = vmatprep.subr.mxu0 0.0
        %1572 = vmatpush1.msra.mxu0 0.0
        %1573 = vmatprep.subr.mxu0 0.0
        %1574 = vmatpush1.msra.mxu0 0.0
        %1575 = vmatprep.subr.mxu0 0.0
        %1576 = vmatpush1.msra.mxu0 0.0
        %1577 = vmatprep.subr.mxu0 0.0
        %1578 = vmatpush1.msra.mxu0 0.0
        %1579 = vmatprep.subr.mxu0 0.0
        %1580 = vmatpush1.msra.mxu0 0.0
        %1581 = vmatprep.subr.mxu0 0.0
        %1582 = vmatpush1.msra.mxu0 0.0
        %1583 = vmatprep.subr.mxu0 0.0
        %1584 = vmatpush1.msra.mxu0 0.0
        %1585 = vmatprep.subr.mxu0 0.0
        %1586 = vmatpush1.msra.mxu0 0.0
        %1587 = vmatprep.subr.mxu0 0.0
        %1588 = vmatpush1.msra.mxu0 0.0
        %1589 = vmatprep.subr.mxu0 0.0
        %1590 = vmatpush1.msra.mxu0 0.0
        %1591 = vmatprep.subr.mxu0 0.0
        %1592 = vmatpush1.msra.mxu0 0.0
        %1593 = vmatprep.subr.mxu0 0.0
        %1594 = vmatpush1.msra.mxu0 0.0
        %1595 = vmatprep.subr.mxu0 0.0
        %1596 = vmatpush1.msra.mxu0 0.0
        %1597 = vmatprep.subr.mxu0 0.0
        %1598 = vmatpush1.msra.mxu0 0.0
        %1599 = vmatprep.subr.mxu0 0.0
        %1600 = vmatpush1.msra.mxu0 0.0
        %1601 = vmatprep.subr.mxu0 0.0
        %1602 = vmatpush1.msra.mxu0 0.0
        %1603 = vmatprep.subr.mxu0 0.0
        %1604 = vmatpush1.msra.mxu0 0.0
        %1605 = vmatprep.subr.mxu0 0.0
        %1606 = vmatpush1.msra.mxu0 0.0
        %1607 = vmatprep.subr.mxu0 0.0
        %1608 = vmatpush1.msra.mxu0 0.0
        %1609 = vmatprep.subr.mxu0 0.0
        %1610 = vmatpush1.msra.mxu0 0.0
        %1611 = vmatprep.subr.mxu0 0.0
        %1612 = vmatpush1.msra.mxu0 0.0
        %1613 = vmatprep.subr.mxu0 0.0
        %1614 = vmatpush1.msra.mxu0 0.0
        %1615 = vmatprep.subr.mxu0 0.0
        %1616 = vmatpush1.msra.mxu0 0.0
        %1617 = vmatprep.subr.mxu0 0.0
        %1618 = vmatpush1.msra.mxu0 0.0
        %1619 = vmatprep.subr.mxu0 0.0
        %1620 = vmatpush1.msra.mxu0 0.0
        %1621 = vmatprep.subr.mxu0 0.0
        %1622 = vmatpush1.msra.mxu0 0.0
        %1623 = vmatprep.subr.mxu0 0.0
        %1624 = vmatpush1.msra.mxu0 0.0
        %1625 = vmatprep.subr.mxu0 0.0
        %1626 = vmatpush1.msra.mxu0 0.0
        %1627 = vmatprep.mubr.f32.mxu0 0.0
        %1628 = vmatmul.mubr.f32.gmra.mrb[0].mxu0 %v1540
        %v1629 = vpop.f32.mrb[0].mxu0
        %v1630 = vadd.f32 0.0, %v1629
        %v1631 = vpop.f32.mrb[0].mxu0
        %1632 = vmatprep.mubr.f32.mxu0 0.0
        %1633 = vmatmul.mubr.f32.gmra.mrb[0].mxu0 %v1543
        %v1634 = vpop.f32.mrb[0].mxu0
        %v1635 = vadd.f32 0.0, %v1634
        %v1636 = vpop.f32.mrb[0].mxu0
        %1637 = vmatprep.mubr.f32.mxu0 0.0
        %1638 = vmatmul.mubr.f32.gmra.mrb[0].mxu0 %v1546
        %v1639 = vpop.f32.mrb[0].mxu0
        %v1640 = vadd.f32 0.0, %v1639
        %v1641 = vpop.f32.mrb[0].mxu0
        %1642 = vmatprep.mubr.f32.mxu0 0.0
        %1643 = vmatmul.mubr.f32.gmra.mrb[0].mxu0 %v1549
        %v1644 = vpop.f32.mrb[0].mxu0
        %v1645 = vadd.f32 0.0, %v1644
        %v1646 = vpop.f32.mrb[0].mxu0
        %1647 = vmatprep.mubr.f32.mxu0 0.0
        %1648 = vmatmul.mubr.f32.gmra.mrb[0].mxu0 %v1552
        %v1649 = vpop.f32.mrb[0].mxu0
        %v1650 = vadd.f32 0.0, %v1649
        %v1651 = vpop.f32.mrb[0].mxu0
        %1652 = vmatprep.mubr.f32.mxu0 0.0
        %1653 = vmatmul.mubr.f32.gmra.mrb[0].mxu0 %v1555
        %v1654 = vpop.f32.mrb[0].mxu0
        %v1655 = vadd.f32 0.0, %v1654
        %v1656 = vpop.f32.mrb[0].mxu0
        %1657 = vmatprep.mubr.f32.mxu0 0.0
        %1658 = vmatmul.mubr.f32.gmra.mrb[0].mxu0 %v1558
        %v1659 = vpop.f32.mrb[0].mxu0
        %v1660 = vadd.f32 0.0, %v1659
        %v1661 = vpop.f32.mrb[0].mxu0
        %1662 = vmatprep.mubr.f32.mxu0 0.0
        %1663 = vmatmul.mubr.f32.gmra.mrb[0].mxu0 %v1561
        %v1664 = vpop.f32.mrb[0].mxu0
        %v1665 = vadd.f32 0.0, %v1664
        %v1666 = vpop.f32.mrb[0].mxu0
        %1667 = vdwg.mxu0
        %v1669 = vsel %vm849, %v1514, 0
        %v1672 = vsel %vm849, %v1515, 0
        %v1675 = vsel %vm849, %v1516, 0
        %v1678 = vsel %vm849, %v1517, 0
        %v1681 = vsel %vm849, %v1518, 0
        %v1684 = vsel %vm849, %v1519, 0
        %v1687 = vsel %vm849, %v1520, 0
        %v1690 = vsel %vm849, %v1521, 0
        %1692 = vmatprep.subr.mxu0 0.0
        %1693 = vmatpush1.msra.mxu0 %v1522
        %1694 = vmatprep.subr.mxu0 0.0
        %1695 = vmatpush1.msra.mxu0 %v1523
        %1696 = vmatprep.subr.mxu0 0.0
        %1697 = vmatpush1.msra.mxu0 %v1524
        %1698 = vmatprep.subr.mxu0 0.0
        %1699 = vmatpush1.msra.mxu0 %v1525
        %1700 = vmatprep.subr.mxu0 0.0
        %1701 = vmatpush1.msra.mxu0 0.0
        %1702 = vmatprep.subr.mxu0 0.0
        %1703 = vmatpush1.msra.mxu0 0.0
        %1704 = vmatprep.subr.mxu0 0.0
        %1705 = vmatpush1.msra.mxu0 0.0
        %1706 = vmatprep.subr.mxu0 0.0
        %1707 = vmatpush1.msra.mxu0 0.0
        %1708 = vmatprep.subr.mxu0 0.0
        %1709 = vmatpush1.msra.mxu0 0.0
        %1710 = vmatprep.subr.mxu0 0.0
        %1711 = vmatpush1.msra.mxu0 0.0
        %1712 = vmatprep.subr.mxu0 0.0
        %1713 = vmatpush1.msra.mxu0 0.0
        %1714 = vmatprep.subr.mxu0 0.0
        %1715 = vmatpush1.msra.mxu0 0.0
        %1716 = vmatprep.subr.mxu0 0.0
        %1717 = vmatpush1.msra.mxu0 0.0
        %1718 = vmatprep.subr.mxu0 0.0
        %1719 = vmatpush1.msra.mxu0 0.0
        %1720 = vmatprep.subr.mxu0 0.0
        %1721 = vmatpush1.msra.mxu0 0.0
        %1722 = vmatprep.subr.mxu0 0.0
        %1723 = vmatpush1.msra.mxu0 0.0
        %1724 = vmatprep.subr.mxu0 0.0
        %1725 = vmatpush1.msra.mxu0 0.0
        %1726 = vmatprep.subr.mxu0 0.0
        %1727 = vmatpush1.msra.mxu0 0.0
        %1728 = vmatprep.subr.mxu0 0.0
        %1729 = vmatpush1.msra.mxu0 0.0
        %1730 = vmatprep.subr.mxu0 0.0
        %1731 = vmatpush1.msra.mxu0 0.0
        %1732 = vmatprep.subr.mxu0 0.0
        %1733 = vmatpush1.msra.mxu0 0.0
        %1734 = vmatprep.subr.mxu0 0.0
        %1735 = vmatpush1.msra.mxu0 0.0
        %1736 = vmatprep.subr.mxu0 0.0
        %1737 = vmatpush1.msra.mxu0 0.0
        %1738 = vmatprep.subr.mxu0 0.0
        %1739 = vmatpush1.msra.mxu0 0.0
        %1740 = vmatprep.subr.mxu0 0.0
        %1741 = vmatpush1.msra.mxu0 0.0
        %1742 = vmatprep.subr.mxu0 0.0
        %1743 = vmatpush1.msra.mxu0 0.0
        %1744 = vmatprep.subr.mxu0 0.0
        %1745 = vmatpush1.msra.mxu0 0.0
        %1746 = vmatprep.subr.mxu0 0.0
        %1747 = vmatpush1.msra.mxu0 0.0
        %1748 = vmatprep.subr.mxu0 0.0
        %1749 = vmatpush1.msra.mxu0 0.0
        %1750 = vmatprep.subr.mxu0 0.0
        %1751 = vmatpush1.msra.mxu0 0.0
        %1752 = vmatprep.subr.mxu0 0.0
        %1753 = vmatpush1.msra.mxu0 0.0
        %1754 = vmatprep.subr.mxu0 0.0
        %1755 = vmatpush1.msra.mxu0 0.0
        %1756 = vmatprep.mubr.f32.mxu0 0.0
        %1757 = vmatmul.mubr.f32.gmra.mrb[0].mxu0 %v1669
        %v1758 = vpop.f32.mrb[0].mxu0
        %v1759 = vadd.f32 %v1630, %v1758
        %v1760 = vpop.f32.mrb[0].mxu0
        %1761 = vmatprep.mubr.f32.mxu0 0.0
        %1762 = vmatmul.mubr.f32.gmra.mrb[0].mxu0 %v1672
        %v1763 = vpop.f32.mrb[0].mxu0
        %v1764 = vadd.f32 %v1635, %v1763
        %v1765 = vpop.f32.mrb[0].mxu0
        %1766 = vmatprep.mubr.f32.mxu0 0.0
        %1767 = vmatmul.mubr.f32.gmra.mrb[0].mxu0 %v1675
        %v1768 = vpop.f32.mrb[0].mxu0
        %v1769 = vadd.f32 %v1640, %v1768
        %v1770 = vpop.f32.mrb[0].mxu0
        %1771 = vmatprep.mubr.f32.mxu0 0.0
        %1772 = vmatmul.mubr.f32.gmra.mrb[0].mxu0 %v1678
        %v1773 = vpop.f32.mrb[0].mxu0
        %v1774 = vadd.f32 %v1645, %v1773
        %v1775 = vpop.f32.mrb[0].mxu0
        %1776 = vmatprep.mubr.f32.mxu0 0.0
        %1777 = vmatmul.mubr.f32.gmra.mrb[0].mxu0 %v1681
        %v1778 = vpop.f32.mrb[0].mxu0
        %v1779 = vadd.f32 %v1650, %v1778
        %v1780 = vpop.f32.mrb[0].mxu0
        %1781 = vmatprep.mubr.f32.mxu0 0.0
        %1782 = vmatmul.mubr.f32.gmra.mrb[0].mxu0 %v1684
        %v1783 = vpop.f32.mrb[0].mxu0
        %v1784 = vadd.f32 %v1655, %v1783
        %v1785 = vpop.f32.mrb[0].mxu0
        %1786 = vmatprep.mubr.f32.mxu0 0.0
        %1787 = vmatmul.mubr.f32.gmra.mrb[0].mxu0 %v1687
        %v1788 = vpop.f32.mrb[0].mxu0
        %v1789 = vadd.f32 %v1660, %v1788
        %v1790 = vpop.f32.mrb[0].mxu0
        %1791 = vmatprep.mubr.f32.mxu0 0.0
        %1792 = vmatmul.mubr.f32.gmra.mrb[0].mxu0 %v1690
        %v1793 = vpop.f32.mrb[0].mxu0
        %v1794 = vadd.f32 %v1665, %v1793
        %v1795 = vpop.f32.mrb[0].mxu0
        %1796 = vdwg.mxu0
        %v1797 = vld [vmem:[#allocation3 + $0x2] sm:$0xff]
        %v1798 = vld [vmem:[#allocation3 + $0xa] sm:$0xff]
        %v1799 = vld [vmem:[#allocation3 + $0x1a] sm:$0xff]
        %v1800 = vld [vmem:[#allocation3 + $0x22] sm:$0xff]
        %v1801 = vld [vmem:[#allocation3 + $0x32] sm:$0xff]
        %v1802 = vld [vmem:[#allocation3 + $0x3a] sm:$0xff]
        %v1803 = vld [vmem:[#allocation3 + $0x4a] sm:$0xff]
        %v1804 = vld [vmem:[#allocation3 + $0x52] sm:$0xff]
        %s1805 = scalar_lea.vmem [#allocation9], 64
        %v1806 = vld [vmem:[%s1805] sm:$0xff]
        %v1807 = vld [vmem:[%s1805 + $0x8] sm:$0xff]
        %v1808 = vld [vmem:[%s1805 + $0x10] sm:$0xff]
        %v1809 = vld [vmem:[%s1805 + $0x18] sm:$0xff]
        %v1811 = vsel %vm849, %v1797, 0
        %v1814 = vsel %vm849, %v1798, 0
        %v1817 = vsel %vm849, %v1799, 0
        %v1820 = vsel %vm849, %v1800, 0
        %v1823 = vsel %vm849, %v1801, 0
        %v1826 = vsel %vm849, %v1802, 0
        %v1829 = vsel %vm849, %v1803, 0
        %v1832 = vsel %vm849, %v1804, 0
        %1834 = vmatprep.subr.mxu0 0.0
        %1835 = vmatpush1.msra.mxu0 %v1806
        %1836 = vmatprep.subr.mxu0 0.0
        %1837 = vmatpush1.msra.mxu0 %v1807
        %1838 = vmatprep.subr.mxu0 0.0
        %1839 = vmatpush1.msra.mxu0 %v1808
        %1840 = vmatprep.subr.mxu0 0.0
        %1841 = vmatpush1.msra.mxu0 %v1809
        %1842 = vmatprep.subr.mxu0 0.0
        %1843 = vmatpush1.msra.mxu0 0.0
        %1844 = vmatprep.subr.mxu0 0.0
        %1845 = vmatpush1.msra.mxu0 0.0
        %1846 = vmatprep.subr.mxu0 0.0
        %1847 = vmatpush1.msra.mxu0 0.0
        %1848 = vmatprep.subr.mxu0 0.0
        %1849 = vmatpush1.msra.mxu0 0.0
        %1850 = vmatprep.subr.mxu0 0.0
        %1851 = vmatpush1.msra.mxu0 0.0
        %1852 = vmatprep.subr.mxu0 0.0
        %1853 = vmatpush1.msra.mxu0 0.0
        %1854 = vmatprep.subr.mxu0 0.0
        %1855 = vmatpush1.msra.mxu0 0.0
        %1856 = vmatprep.subr.mxu0 0.0
        %1857 = vmatpush1.msra.mxu0 0.0
        %1858 = vmatprep.subr.mxu0 0.0
        %1859 = vmatpush1.msra.mxu0 0.0
        %1860 = vmatprep.subr.mxu0 0.0
        %1861 = vmatpush1.msra.mxu0 0.0
        %1862 = vmatprep.subr.mxu0 0.0
        %1863 = vmatpush1.msra.mxu0 0.0
        %1864 = vmatprep.subr.mxu0 0.0
        %1865 = vmatpush1.msra.mxu0 0.0
        %1866 = vmatprep.subr.mxu0 0.0
        %1867 = vmatpush1.msra.mxu0 0.0
        %1868 = vmatprep.subr.mxu0 0.0
        %1869 = vmatpush1.msra.mxu0 0.0
        %1870 = vmatprep.subr.mxu0 0.0
        %1871 = vmatpush1.msra.mxu0 0.0
        %1872 = vmatprep.subr.mxu0 0.0
        %1873 = vmatpush1.msra.mxu0 0.0
        %1874 = vmatprep.subr.mxu0 0.0
        %1875 = vmatpush1.msra.mxu0 0.0
        %1876 = vmatprep.subr.mxu0 0.0
        %1877 = vmatpush1.msra.mxu0 0.0
        %1878 = vmatprep.subr.mxu0 0.0
        %1879 = vmatpush1.msra.mxu0 0.0
        %1880 = vmatprep.subr.mxu0 0.0
        %1881 = vmatpush1.msra.mxu0 0.0
        %1882 = vmatprep.subr.mxu0 0.0
        %1883 = vmatpush1.msra.mxu0 0.0
        %1884 = vmatprep.subr.mxu0 0.0
        %1885 = vmatpush1.msra.mxu0 0.0
        %1886 = vmatprep.subr.mxu0 0.0
        %1887 = vmatpush1.msra.mxu0 0.0
        %1888 = vmatprep.subr.mxu0 0.0
        %1889 = vmatpush1.msra.mxu0 0.0
        %1890 = vmatprep.subr.mxu0 0.0
        %1891 = vmatpush1.msra.mxu0 0.0
        %1892 = vmatprep.subr.mxu0 0.0
        %1893 = vmatpush1.msra.mxu0 0.0
        %1894 = vmatprep.subr.mxu0 0.0
        %1895 = vmatpush1.msra.mxu0 0.0
        %1896 = vmatprep.subr.mxu0 0.0
        %1897 = vmatpush1.msra.mxu0 0.0
        %1898 = vmatprep.mubr.f32.mxu0 0.0
        %1899 = vmatmul.mubr.f32.gmra.mrb[0].mxu0 %v1811
        %v1900 = vpop.f32.mrb[0].mxu0
        %v1901 = vadd.f32 0.0, %v1900
        %v1902 = vpop.f32.mrb[0].mxu0
        %1903 = vmatprep.mubr.f32.mxu0 0.0
        %1904 = vmatmul.mubr.f32.gmra.mrb[0].mxu0 %v1814
        %v1905 = vpop.f32.mrb[0].mxu0
        %v1906 = vadd.f32 0.0, %v1905
        %v1907 = vpop.f32.mrb[0].mxu0
        %1908 = vmatprep.mubr.f32.mxu0 0.0
        %1909 = vmatmul.mubr.f32.gmra.mrb[0].mxu0 %v1817
        %v1910 = vpop.f32.mrb[0].mxu0
        %v1911 = vadd.f32 0.0, %v1910
        %v1912 = vpop.f32.mrb[0].mxu0
        %1913 = vmatprep.mubr.f32.mxu0 0.0
        %1914 = vmatmul.mubr.f32.gmra.mrb[0].mxu0 %v1820
        %v1915 = vpop.f32.mrb[0].mxu0
        %v1916 = vadd.f32 0.0, %v1915
        %v1917 = vpop.f32.mrb[0].mxu0
        %1918 = vmatprep.mubr.f32.mxu0 0.0
        %1919 = vmatmul.mubr.f32.gmra.mrb[0].mxu0 %v1823
        %v1920 = vpop.f32.mrb[0].mxu0
        %v1921 = vadd.f32 0.0, %v1920
        %v1922 = vpop.f32.mrb[0].mxu0
        %1923 = vmatprep.mubr.f32.mxu0 0.0
        %1924 = vmatmul.mubr.f32.gmra.mrb[0].mxu0 %v1826
        %v1925 = vpop.f32.mrb[0].mxu0
        %v1926 = vadd.f32 0.0, %v1925
        %v1927 = vpop.f32.mrb[0].mxu0
        %1928 = vmatprep.mubr.f32.mxu0 0.0
        %1929 = vmatmul.mubr.f32.gmra.mrb[0].mxu0 %v1829
        %v1930 = vpop.f32.mrb[0].mxu0
        %v1931 = vadd.f32 0.0, %v1930
        %v1932 = vpop.f32.mrb[0].mxu0
        %1933 = vmatprep.mubr.f32.mxu0 0.0
        %1934 = vmatmul.mubr.f32.gmra.mrb[0].mxu0 %v1832
        %v1935 = vpop.f32.mrb[0].mxu0
        %v1936 = vadd.f32 0.0, %v1935
        %v1937 = vpop.f32.mrb[0].mxu0
        %1938 = vdwg.mxu0
        %v1939 = vadd.f32 %v1759, %v1901
        %v1940 = vadd.f32 %v1764, %v1906
        %v1941 = vadd.f32 %v1769, %v1911
        %v1942 = vadd.f32 %v1774, %v1916
        %v1943 = vadd.f32 %v1779, %v1921
        %v1944 = vadd.f32 %v1784, %v1926
        %v1945 = vadd.f32 %v1789, %v1931
        %v1946 = vadd.f32 %v1794, %v1936
        %v1947 = vlaneseq
        %v1948 = vshrl.u32 %v1947, 7
        %v1949 = vsub.s32 3, %v1948
        %v1950 = vrot.slane %v378, %v1949
        %v1951 = vadd.f32 %v1939, %v1950
        %v1952 = vadd.f32 %v1940, %v1950
        %v1953 = vadd.f32 %v1941, %v1950
        %v1954 = vadd.f32 %v1942, %v1950
        %v1955 = vadd.f32 %v1943, %v1950
        %v1956 = vadd.f32 %v1944, %v1950
        %v1957 = vadd.f32 %v1945, %v1950
        %v1958 = vadd.f32 %v1946, %v1950
        %v1959 = vsel %vm849, %v1951, 0.0
        %v1960 = vsel %vm849, %v1952, 0.0
        %v1961 = vadd.f32 %v1959, %v1960
        %v1962 = vrot.slane %v1961, 4
        %v1963 = vadd.f32 %v1961, %v1962
        %v1964 = vrot.slane %v1963, 2
        %v1965 = vadd.f32 %v1963, %v1964
        %v1966 = vrot.slane %v1965, 1
        %v1967 = vadd.f32 %v1965, %v1966
        %v1968 = vsel %vm849, %v1953, 0.0
        %v1969 = vsel %vm849, %v1954, 0.0
        %v1970 = vadd.f32 %v1968, %v1969
        %v1971 = vrot.slane %v1970, 4
        %v1972 = vadd.f32 %v1970, %v1971
        %v1973 = vrot.slane %v1972, 2
        %v1974 = vadd.f32 %v1972, %v1973
        %v1975 = vrot.slane %v1974, 1
        %v1976 = vadd.f32 %v1974, %v1975
        %v1977 = vsel %vm849, %v1955, 0.0
        %v1978 = vsel %vm849, %v1956, 0.0
        %v1979 = vadd.f32 %v1977, %v1978
        %v1980 = vrot.slane %v1979, 4
        %v1981 = vadd.f32 %v1979, %v1980
        %v1982 = vrot.slane %v1981, 2
        %v1983 = vadd.f32 %v1981, %v1982
        %v1984 = vrot.slane %v1983, 1
        %v1985 = vadd.f32 %v1983, %v1984
        %v1986 = vsel %vm849, %v1957, 0.0
        %v1987 = vsel %vm849, %v1958, 0.0
        %v1988 = vadd.f32 %v1986, %v1987
        %v1989 = vrot.slane %v1988, 4
        %v1990 = vadd.f32 %v1988, %v1989
        %v1991 = vrot.slane %v1990, 2
        %v1992 = vadd.f32 %v1990, %v1991
        %v1993 = vrot.slane %v1992, 1
        %v1994 = vadd.f32 %v1992, %v1993
        %v1999 = vsel %vm890, %v1976, %v1967
        %v2000 = vsel %vm892, %v1985, %v1999
        %v2001 = vsel %vm894, %v1994, %v2000
        %v2002 = vsel %vm849, %v2001, 0
        %2004 = vmatprep.subr.mxu0 0.0
        %2005 = vmatpush1.msra.mxu0 %v379
        %2006 = vmatprep.subr.mxu0 0.0
        %2007 = vmatpush1.msra.mxu0 %v380
        %2008 = vmatprep.subr.mxu0 0.0
        %2009 = vmatpush1.msra.mxu0 %v381
        %2010 = vmatprep.subr.mxu0 0.0
        %2011 = vmatpush1.msra.mxu0 %v382
        %2012 = vmatprep.subr.mxu0 0.0
        %2013 = vmatpush1.msra.mxu0 0.0
        %2014 = vmatprep.subr.mxu0 0.0
        %2015 = vmatpush1.msra.mxu0 0.0
        %2016 = vmatprep.subr.mxu0 0.0
        %2017 = vmatpush1.msra.mxu0 0.0
        %2018 = vmatprep.subr.mxu0 0.0
        %2019 = vmatpush1.msra.mxu0 0.0
        %2020 = vmatprep.subr.mxu0 0.0
        %2021 = vmatpush1.msra.mxu0 0.0
        %2022 = vmatprep.subr.mxu0 0.0
        %2023 = vmatpush1.msra.mxu0 0.0
        %2024 = vmatprep.subr.mxu0 0.0
        %2025 = vmatpush1.msra.mxu0 0.0
        %2026 = vmatprep.subr.mxu0 0.0
        %2027 = vmatpush1.msra.mxu0 0.0
        %2028 = vmatprep.subr.mxu0 0.0
        %2029 = vmatpush1.msra.mxu0 0.0
        %2030 = vmatprep.subr.mxu0 0.0
        %2031 = vmatpush1.msra.mxu0 0.0
        %2032 = vmatprep.subr.mxu0 0.0
        %2033 = vmatpush1.msra.mxu0 0.0
        %2034 = vmatprep.subr.mxu0 0.0
        %2035 = vmatpush1.msra.mxu0 0.0
        %2036 = vmatprep.subr.mxu0 0.0
        %2037 = vmatpush1.msra.mxu0 0.0
        %2038 = vmatprep.subr.mxu0 0.0
        %2039 = vmatpush1.msra.mxu0 0.0
        %2040 = vmatprep.subr.mxu0 0.0
        %2041 = vmatpush1.msra.mxu0 0.0
        %2042 = vmatprep.subr.mxu0 0.0
        %2043 = vmatpush1.msra.mxu0 0.0
        %2044 = vmatprep.subr.mxu0 0.0
        %2045 = vmatpush1.msra.mxu0 0.0
        %2046 = vmatprep.subr.mxu0 0.0
        %2047 = vmatpush1.msra.mxu0 0.0
        %2048 = vmatprep.subr.mxu0 0.0
        %2049 = vmatpush1.msra.mxu0 0.0
        %2050 = vmatprep.subr.mxu0 0.0
        %2051 = vmatpush1.msra.mxu0 0.0
        %2052 = vmatprep.subr.mxu0 0.0
        %2053 = vmatpush1.msra.mxu0 0.0
        %2054 = vmatprep.subr.mxu0 0.0
        %2055 = vmatpush1.msra.mxu0 0.0
        %2056 = vmatprep.subr.mxu0 0.0
        %2057 = vmatpush1.msra.mxu0 0.0
        %2058 = vmatprep.subr.mxu0 0.0
        %2059 = vmatpush1.msra.mxu0 0.0
        %2060 = vmatprep.subr.mxu0 0.0
        %2061 = vmatpush1.msra.mxu0 0.0
        %2062 = vmatprep.subr.mxu0 0.0
        %2063 = vmatpush1.msra.mxu0 0.0
        %2064 = vmatprep.subr.mxu0 0.0
        %2065 = vmatpush1.msra.mxu0 0.0
        %2066 = vmatprep.subr.mxu0 0.0
        %2067 = vmatpush1.msra.mxu0 0.0
        %2068 = vmatprep.mubr.f32.mxu0 0.0
        %2069 = vmatmul.mubr.f32.gmra.mrb[0].mxu0 %v2002
        %v2070 = vpop.f32.mrb[0].mxu0
        %v2071 = vadd.f32 0.0, %v2070
        %v2072 = vpop.f32.mrb[0].mxu0
        %2073 = vdwg.mxu0
        %v2074 = vmul.f32 %v2071, 0.015625
        %v2076 = vsel %vm969, %v2074, 0
        %2078 = vmatprep.subr.mxu0 0.0
        %2079 = vmatpush1.msra.mxu0 %v383
        %2080 = vmatprep.subr.mxu0 0.0
        %2081 = vmatpush1.msra.mxu0 0.0
        %2082 = vmatprep.subr.mxu0 0.0
        %2083 = vmatpush1.msra.mxu0 0.0
        %2084 = vmatprep.subr.mxu0 0.0
        %2085 = vmatpush1.msra.mxu0 0.0
        %2086 = vmatprep.subr.mxu0 0.0
        %2087 = vmatpush1.msra.mxu0 0.0
        %2088 = vmatprep.subr.mxu0 0.0
        %2089 = vmatpush1.msra.mxu0 0.0
        %2090 = vmatprep.subr.mxu0 0.0
        %2091 = vmatpush1.msra.mxu0 0.0
        %2092 = vmatprep.subr.mxu0 0.0
        %2093 = vmatpush1.msra.mxu0 0.0
        %2094 = vmatprep.subr.mxu0 0.0
        %2095 = vmatpush1.msra.mxu0 0.0
        %2096 = vmatprep.subr.mxu0 0.0
        %2097 = vmatpush1.msra.mxu0 0.0
        %2098 = vmatprep.subr.mxu0 0.0
        %2099 = vmatpush1.msra.mxu0 0.0
        %2100 = vmatprep.subr.mxu0 0.0
        %2101 = vmatpush1.msra.mxu0 0.0
        %2102 = vmatprep.subr.mxu0 0.0
        %2103 = vmatpush1.msra.mxu0 0.0
        %2104 = vmatprep.subr.mxu0 0.0
        %2105 = vmatpush1.msra.mxu0 0.0
        %2106 = vmatprep.subr.mxu0 0.0
        %2107 = vmatpush1.msra.mxu0 0.0
        %2108 = vmatprep.subr.mxu0 0.0
        %2109 = vmatpush1.msra.mxu0 0.0
        %2110 = vmatprep.subr.mxu0 0.0
        %2111 = vmatpush1.msra.mxu0 0.0
        %2112 = vmatprep.subr.mxu0 0.0
        %2113 = vmatpush1.msra.mxu0 0.0
        %2114 = vmatprep.subr.mxu0 0.0
        %2115 = vmatpush1.msra.mxu0 0.0
        %2116 = vmatprep.subr.mxu0 0.0
        %2117 = vmatpush1.msra.mxu0 0.0
        %2118 = vmatprep.subr.mxu0 0.0
        %2119 = vmatpush1.msra.mxu0 0.0
        %2120 = vmatprep.subr.mxu0 0.0
        %2121 = vmatpush1.msra.mxu0 0.0
        %2122 = vmatprep.subr.mxu0 0.0
        %2123 = vmatpush1.msra.mxu0 0.0
        %2124 = vmatprep.subr.mxu0 0.0
        %2125 = vmatpush1.msra.mxu0 0.0
        %2126 = vmatprep.subr.mxu0 0.0
        %2127 = vmatpush1.msra.mxu0 0.0
        %2128 = vmatprep.subr.mxu0 0.0
        %2129 = vmatpush1.msra.mxu0 0.0
        %2130 = vmatprep.subr.mxu0 0.0
        %2131 = vmatpush1.msra.mxu0 0.0
        %2132 = vmatprep.subr.mxu0 0.0
        %2133 = vmatpush1.msra.mxu0 0.0
        %2134 = vmatprep.subr.mxu0 0.0
        %2135 = vmatpush1.msra.mxu0 0.0
        %2136 = vmatprep.subr.mxu0 0.0
        %2137 = vmatpush1.msra.mxu0 0.0
        %2138 = vmatprep.subr.mxu0 0.0
        %2139 = vmatpush1.msra.mxu0 0.0
        %2140 = vmatprep.subr.mxu0 0.0
        %2141 = vmatpush1.msra.mxu0 0.0
        %2142 = vmatprep.mubr.f32.mxu0 0.0
        %2143 = vmatmul.mubr.f32.gmra.mrb[0].mxu0 %v2076
        %v2144 = vpop.f32.mrb[0].mxu0
        %v2145 = vadd.f32 0.0, %v2144
        %v2146 = vpop.f32.mrb[0].mxu0
        %2147 = vdwg.mxu0
        %v2150 = vunpack.c.l.s4 1966171168
        %v2151 = vunpack.c.0.s8 %v2150
        %v2152 = vlaneseq
        %v2153 = vshrl.u32 %v2152, 7
        %v2154 = vsub.s32 %v2151, %v2153
        %v2155 = vrot.slane %v2145, %v2154
        %v2156 = vcombine.high %v2155, %v2155
        %v2158 = vunpack.c.l.s4 1966171168
        %v2159 = vunpack.c.0.s8 %v2158
        %v2160 = vlaneseq
        %v2161 = vshrl.u32 %v2160, 7
        %v2162 = vsub.s32 %v2159, %v2161
        %v2163 = vrot.slane %v2155, %v2162
        %v2165 = vunpack.c.l.s4 1966171168
        %v2166 = vunpack.c.0.s8 %v2165
        %v2167 = vlaneseq
        %v2168 = vshrl.u32 %v2167, 7
        %v2169 = vsub.s32 %v2166, %v2168
        %v2170 = vrot.slane %v2156, %v2169
        %v2171 = vcombine.high %v2163, %v2163
        %v2172 = vcombine.high %v2170, %v2170
        %v2173 = vlaneseq
        %v2174 = vshrl.u32 %v2173, 7
        %v2175 = vsub.s32 0, %v2174
        %v2176 = vrot.slane %v2163, %v2175
        %v2177 = vlaneseq
        %v2178 = vshrl.u32 %v2177, 7
        %v2179 = vsub.s32 0, %v2178
        %v2180 = vrot.slane %v2170, %v2179
        %v2181 = vlaneseq
        %v2182 = vshrl.u32 %v2181, 7
        %v2183 = vsub.s32 0, %v2182
        %v2184 = vrot.slane %v2171, %v2183
        %v2185 = vlaneseq
        %v2186 = vshrl.u32 %v2185, 7
        %v2187 = vsub.s32 0, %v2186
        %v2188 = vrot.slane %v2172, %v2187
        %v2193 = vsub.f32 %v1951, %v2176
        %v2194 = vsub.f32 %v1952, %v2176
        %v2195 = vsub.f32 %v1953, %v2180
        %v2196 = vsub.f32 %v1954, %v2180
        %v2197 = vsub.f32 %v1955, %v2184
        %v2198 = vsub.f32 %v1956, %v2184
        %v2199 = vsub.f32 %v1957, %v2188
        %v2200 = vsub.f32 %v1958, %v2188
        %v2201 = vmul.f32 %v2193, %v2193
        %v2202 = vmul.f32 %v2194, %v2194
        %v2203 = vmul.f32 %v2195, %v2195
        %v2204 = vmul.f32 %v2196, %v2196
        %v2205 = vmul.f32 %v2197, %v2197
        %v2206 = vmul.f32 %v2198, %v2198
        %v2207 = vmul.f32 %v2199, %v2199
        %v2208 = vmul.f32 %v2200, %v2200
        %v2209 = vsel %vm849, %v2201, 0.0
        %v2210 = vsel %vm849, %v2202, 0.0
        %v2211 = vadd.f32 %v2209, %v2210
        %v2212 = vrot.slane %v2211, 4
        %v2213 = vadd.f32 %v2211, %v2212
        %v2214 = vrot.slane %v2213, 2
        %v2215 = vadd.f32 %v2213, %v2214
        %v2216 = vrot.slane %v2215, 1
        %v2217 = vadd.f32 %v2215, %v2216
        %v2218 = vsel %vm849, %v2203, 0.0
        %v2219 = vsel %vm849, %v2204, 0.0
        %v2220 = vadd.f32 %v2218, %v2219
        %v2221 = vrot.slane %v2220, 4
        %v2222 = vadd.f32 %v2220, %v2221
        %v2223 = vrot.slane %v2222, 2
        %v2224 = vadd.f32 %v2222, %v2223
        %v2225 = vrot.slane %v2224, 1
        %v2226 = vadd.f32 %v2224, %v2225
        %v2227 = vsel %vm849, %v2205, 0.0
        %v2228 = vsel %vm849, %v2206, 0.0
        %v2229 = vadd.f32 %v2227, %v2228
        %v2230 = vrot.slane %v2229, 4
        %v2231 = vadd.f32 %v2229, %v2230
        %v2232 = vrot.slane %v2231, 2
        %v2233 = vadd.f32 %v2231, %v2232
        %v2234 = vrot.slane %v2233, 1
        %v2235 = vadd.f32 %v2233, %v2234
        %v2236 = vsel %vm849, %v2207, 0.0
        %v2237 = vsel %vm849, %v2208, 0.0
        %v2238 = vadd.f32 %v2236, %v2237
        %v2239 = vrot.slane %v2238, 4
        %v2240 = vadd.f32 %v2238, %v2239
        %v2241 = vrot.slane %v2240, 2
        %v2242 = vadd.f32 %v2240, %v2241
        %v2243 = vrot.slane %v2242, 1
        %v2244 = vadd.f32 %v2242, %v2243
        %v2249 = vsel %vm890, %v2226, %v2217
        %v2250 = vsel %vm892, %v2235, %v2249
        %v2251 = vsel %vm894, %v2244, %v2250
        %v2252 = vsel %vm849, %v2251, 0
        %2254 = vmatprep.subr.mxu0 0.0
        %2255 = vmatpush1.msra.mxu0 %v379
        %2256 = vmatprep.subr.mxu0 0.0
        %2257 = vmatpush1.msra.mxu0 %v380
        %2258 = vmatprep.subr.mxu0 0.0
        %2259 = vmatpush1.msra.mxu0 %v381
        %2260 = vmatprep.subr.mxu0 0.0
        %2261 = vmatpush1.msra.mxu0 %v382
        %2262 = vmatprep.subr.mxu0 0.0
        %2263 = vmatpush1.msra.mxu0 0.0
        %2264 = vmatprep.subr.mxu0 0.0
        %2265 = vmatpush1.msra.mxu0 0.0
        %2266 = vmatprep.subr.mxu0 0.0
        %2267 = vmatpush1.msra.mxu0 0.0
        %2268 = vmatprep.subr.mxu0 0.0
        %2269 = vmatpush1.msra.mxu0 0.0
        %2270 = vmatprep.subr.mxu0 0.0
        %2271 = vmatpush1.msra.mxu0 0.0
        %2272 = vmatprep.subr.mxu0 0.0
        %2273 = vmatpush1.msra.mxu0 0.0
        %2274 = vmatprep.subr.mxu0 0.0
        %2275 = vmatpush1.msra.mxu0 0.0
        %2276 = vmatprep.subr.mxu0 0.0
        %2277 = vmatpush1.msra.mxu0 0.0
        %2278 = vmatprep.subr.mxu0 0.0
        %2279 = vmatpush1.msra.mxu0 0.0
        %2280 = vmatprep.subr.mxu0 0.0
        %2281 = vmatpush1.msra.mxu0 0.0
        %2282 = vmatprep.subr.mxu0 0.0
        %2283 = vmatpush1.msra.mxu0 0.0
        %2284 = vmatprep.subr.mxu0 0.0
        %2285 = vmatpush1.msra.mxu0 0.0
        %2286 = vmatprep.subr.mxu0 0.0
        %2287 = vmatpush1.msra.mxu0 0.0
        %2288 = vmatprep.subr.mxu0 0.0
        %2289 = vmatpush1.msra.mxu0 0.0
        %2290 = vmatprep.subr.mxu0 0.0
        %2291 = vmatpush1.msra.mxu0 0.0
        %2292 = vmatprep.subr.mxu0 0.0
        %2293 = vmatpush1.msra.mxu0 0.0
        %2294 = vmatprep.subr.mxu0 0.0
        %2295 = vmatpush1.msra.mxu0 0.0
        %2296 = vmatprep.subr.mxu0 0.0
        %2297 = vmatpush1.msra.mxu0 0.0
        %2298 = vmatprep.subr.mxu0 0.0
        %2299 = vmatpush1.msra.mxu0 0.0
        %2300 = vmatprep.subr.mxu0 0.0
        %2301 = vmatpush1.msra.mxu0 0.0
        %2302 = vmatprep.subr.mxu0 0.0
        %2303 = vmatpush1.msra.mxu0 0.0
        %2304 = vmatprep.subr.mxu0 0.0
        %2305 = vmatpush1.msra.mxu0 0.0
        %2306 = vmatprep.subr.mxu0 0.0
        %2307 = vmatpush1.msra.mxu0 0.0
        %2308 = vmatprep.subr.mxu0 0.0
        %2309 = vmatpush1.msra.mxu0 0.0
        %2310 = vmatprep.subr.mxu0 0.0
        %2311 = vmatpush1.msra.mxu0 0.0
        %2312 = vmatprep.subr.mxu0 0.0
        %2313 = vmatpush1.msra.mxu0 0.0
        %2314 = vmatprep.subr.mxu0 0.0
        %2315 = vmatpush1.msra.mxu0 0.0
        %2316 = vmatprep.subr.mxu0 0.0
        %2317 = vmatpush1.msra.mxu0 0.0
        %2318 = vmatprep.mubr.f32.mxu0 0.0
        %2319 = vmatmul.mubr.f32.gmra.mrb[0].mxu0 %v2252
        %v2320 = vpop.f32.mrb[0].mxu0
        %v2321 = vadd.f32 0.0, %v2320
        %v2322 = vpop.f32.mrb[0].mxu0
        %2323 = vdwg.mxu0
        %v2324 = vmul.f32 %v2321, 0.015625
        %v2325 = vadd.f32 %v2324, 1e-05
        %v2326 = vrsqrt.pop %v2325
        %v2328 = vsel %vm969, %v2326, 0
        %2330 = vmatprep.subr.mxu0 0.0
        %2331 = vmatpush1.msra.mxu0 %v383
        %2332 = vmatprep.subr.mxu0 0.0
        %2333 = vmatpush1.msra.mxu0 0.0
        %2334 = vmatprep.subr.mxu0 0.0
        %2335 = vmatpush1.msra.mxu0 0.0
        %2336 = vmatprep.subr.mxu0 0.0
        %2337 = vmatpush1.msra.mxu0 0.0
        %2338 = vmatprep.subr.mxu0 0.0
        %2339 = vmatpush1.msra.mxu0 0.0
        %2340 = vmatprep.subr.mxu0 0.0
        %2341 = vmatpush1.msra.mxu0 0.0
        %2342 = vmatprep.subr.mxu0 0.0
        %2343 = vmatpush1.msra.mxu0 0.0
        %2344 = vmatprep.subr.mxu0 0.0
        %2345 = vmatpush1.msra.mxu0 0.0
        %2346 = vmatprep.subr.mxu0 0.0
        %2347 = vmatpush1.msra.mxu0 0.0
        %2348 = vmatprep.subr.mxu0 0.0
        %2349 = vmatpush1.msra.mxu0 0.0
        %2350 = vmatprep.subr.mxu0 0.0
        %2351 = vmatpush1.msra.mxu0 0.0
        %2352 = vmatprep.subr.mxu0 0.0
        %2353 = vmatpush1.msra.mxu0 0.0
        %2354 = vmatprep.subr.mxu0 0.0
        %2355 = vmatpush1.msra.mxu0 0.0
        %2356 = vmatprep.subr.mxu0 0.0
        %2357 = vmatpush1.msra.mxu0 0.0
        %2358 = vmatprep.subr.mxu0 0.0
        %2359 = vmatpush1.msra.mxu0 0.0
        %2360 = vmatprep.subr.mxu0 0.0
        %2361 = vmatpush1.msra.mxu0 0.0
        %2362 = vmatprep.subr.mxu0 0.0
        %2363 = vmatpush1.msra.mxu0 0.0
        %2364 = vmatprep.subr.mxu0 0.0
        %2365 = vmatpush1.msra.mxu0 0.0
        %2366 = vmatprep.subr.mxu0 0.0
        %2367 = vmatpush1.msra.mxu0 0.0
        %2368 = vmatprep.subr.mxu0 0.0
        %2369 = vmatpush1.msra.mxu0 0.0
        %2370 = vmatprep.subr.mxu0 0.0
        %2371 = vmatpush1.msra.mxu0 0.0
        %2372 = vmatprep.subr.mxu0 0.0
        %2373 = vmatpush1.msra.mxu0 0.0
        %2374 = vmatprep.subr.mxu0 0.0
        %2375 = vmatpush1.msra.mxu0 0.0
        %2376 = vmatprep.subr.mxu0 0.0
        %2377 = vmatpush1.msra.mxu0 0.0
        %2378 = vmatprep.subr.mxu0 0.0
        %2379 = vmatpush1.msra.mxu0 0.0
        %2380 = vmatprep.subr.mxu0 0.0
        %2381 = vmatpush1.msra.mxu0 0.0
        %2382 = vmatprep.subr.mxu0 0.0
        %2383 = vmatpush1.msra.mxu0 0.0
        %2384 = vmatprep.subr.mxu0 0.0
        %2385 = vmatpush1.msra.mxu0 0.0
        %2386 = vmatprep.subr.mxu0 0.0
        %2387 = vmatpush1.msra.mxu0 0.0
        %2388 = vmatprep.subr.mxu0 0.0
        %2389 = vmatpush1.msra.mxu0 0.0
        %2390 = vmatprep.subr.mxu0 0.0
        %2391 = vmatpush1.msra.mxu0 0.0
        %2392 = vmatprep.subr.mxu0 0.0
        %2393 = vmatpush1.msra.mxu0 0.0
        %2394 = vmatprep.mubr.f32.mxu0 0.0
        %2395 = vmatmul.mubr.f32.gmra.mrb[0].mxu0 %v2328
        %v2396 = vpop.f32.mrb[0].mxu0
        %v2397 = vadd.f32 0.0, %v2396
        %v2398 = vpop.f32.mrb[0].mxu0
        %2399 = vdwg.mxu0
        %v2400 = vlaneseq
        %v2401 = vshrl.u32 %v2400, 7
        %v2402 = vsub.s32 4, %v2401
        %v2403 = vrot.slane %v378, %v2402
        %v2404 = vmul.f32 %v2397, %v2403
        %v2407 = vunpack.c.l.s4 1966171168
        %v2408 = vunpack.c.0.s8 %v2407
        %v2409 = vlaneseq
        %v2410 = vshrl.u32 %v2409, 7
        %v2411 = vsub.s32 %v2408, %v2410
        %v2412 = vrot.slane %v2404, %v2411
        %v2413 = vcombine.high %v2412, %v2412
        %v2415 = vunpack.c.l.s4 1966171168
        %v2416 = vunpack.c.0.s8 %v2415
        %v2417 = vlaneseq
        %v2418 = vshrl.u32 %v2417, 7
        %v2419 = vsub.s32 %v2416, %v2418
        %v2420 = vrot.slane %v2412, %v2419
        %v2422 = vunpack.c.l.s4 1966171168
        %v2423 = vunpack.c.0.s8 %v2422
        %v2424 = vlaneseq
        %v2425 = vshrl.u32 %v2424, 7
        %v2426 = vsub.s32 %v2423, %v2425
        %v2427 = vrot.slane %v2413, %v2426
        %v2428 = vcombine.high %v2420, %v2420
        %v2429 = vcombine.high %v2427, %v2427
        %v2430 = vlaneseq
        %v2431 = vshrl.u32 %v2430, 7
        %v2432 = vsub.s32 0, %v2431
        %v2433 = vrot.slane %v2420, %v2432
        %v2434 = vlaneseq
        %v2435 = vshrl.u32 %v2434, 7
        %v2436 = vsub.s32 0, %v2435
        %v2437 = vrot.slane %v2427, %v2436
        %v2438 = vlaneseq
        %v2439 = vshrl.u32 %v2438, 7
        %v2440 = vsub.s32 0, %v2439
        %v2441 = vrot.slane %v2428, %v2440
        %v2442 = vlaneseq
        %v2443 = vshrl.u32 %v2442, 7
        %v2444 = vsub.s32 0, %v2443
        %v2445 = vrot.slane %v2429, %v2444
        %v2450 = vmul.f32 %v2193, %v2433
        %v2451 = vmul.f32 %v2194, %v2433
        %v2452 = vmul.f32 %v2195, %v2437
        %v2453 = vmul.f32 %v2196, %v2437
        %v2454 = vmul.f32 %v2197, %v2441
        %v2455 = vmul.f32 %v2198, %v2441
        %v2456 = vmul.f32 %v2199, %v2445
        %v2457 = vmul.f32 %v2200, %v2445
        %v2458 = vlaneseq
        %v2459 = vshrl.u32 %v2458, 7
        %v2460 = vsub.s32 5, %v2459
        %v2461 = vrot.slane %v378, %v2460
        %v2462 = vadd.f32 %v2450, %v2461
        %v2463 = vadd.f32 %v2451, %v2461
        %v2464 = vadd.f32 %v2452, %v2461
        %v2465 = vadd.f32 %v2453, %v2461
        %v2466 = vadd.f32 %v2454, %v2461
        %v2467 = vadd.f32 %v2455, %v2461
        %v2468 = vadd.f32 %v2456, %v2461
        %v2469 = vadd.f32 %v2457, %v2461
        %v2470 = vmin.f32 %v2462, 20.0
        %v2471 = vmin.f32 %v2463, 20.0
        %v2472 = vmin.f32 %v2464, 20.0
        %v2473 = vmin.f32 %v2465, 20.0
        %v2474 = vmin.f32 %v2466, 20.0
        %v2475 = vmin.f32 %v2467, 20.0
        %v2476 = vmin.f32 %v2468, 20.0
        %v2477 = vmin.f32 %v2469, 20.0
        %v2478 = vmul.f32 %v2470, 1.442695
        %v2479 = vpow.pop %v2478
        %v2480 = vmul.f32 %v2471, 1.442695
        %v2481 = vpow.pop %v2480
        %v2482 = vmul.f32 %v2472, 1.442695
        %v2483 = vpow.pop %v2482
        %v2484 = vmul.f32 %v2473, 1.442695
        %v2485 = vpow.pop %v2484
        %v2486 = vmul.f32 %v2474, 1.442695
        %v2487 = vpow.pop %v2486
        %v2488 = vmul.f32 %v2475, 1.442695
        %v2489 = vpow.pop %v2488
        %v2490 = vmul.f32 %v2476, 1.442695
        %v2491 = vpow.pop %v2490
        %v2492 = vmul.f32 %v2477, 1.442695
        %v2493 = vpow.pop %v2492
        %v2494 = vadd.f32 %v2479, 1.0
        %v2495 = vadd.f32 %v2481, 1.0
        %v2496 = vadd.f32 %v2483, 1.0
        %v2497 = vadd.f32 %v2485, 1.0
        %v2498 = vadd.f32 %v2487, 1.0
        %v2499 = vadd.f32 %v2489, 1.0
        %v2500 = vadd.f32 %v2491, 1.0
        %v2501 = vadd.f32 %v2493, 1.0
        %v2502 = vmul.f32 %v2494, %v2494
        %v2503 = vmul.f32 %v2495, %v2495
        %v2504 = vmul.f32 %v2496, %v2496
        %v2505 = vmul.f32 %v2497, %v2497
        %v2506 = vmul.f32 %v2498, %v2498
        %v2507 = vmul.f32 %v2499, %v2499
        %v2508 = vmul.f32 %v2500, %v2500
        %v2509 = vmul.f32 %v2501, %v2501
        %v2510 = vsub.f32 %v2502, 1.0
        %v2511 = vsub.f32 %v2503, 1.0
        %v2512 = vsub.f32 %v2504, 1.0
        %v2513 = vsub.f32 %v2505, 1.0
        %v2514 = vsub.f32 %v2506, 1.0
        %v2515 = vsub.f32 %v2507, 1.0
        %v2516 = vsub.f32 %v2508, 1.0
        %v2517 = vsub.f32 %v2509, 1.0
        %v2518 = vmul.f32 %v2462, %v2510
        %v2519 = vmul.f32 %v2463, %v2511
        %v2520 = vmul.f32 %v2464, %v2512
        %v2521 = vmul.f32 %v2465, %v2513
        %v2522 = vmul.f32 %v2466, %v2514
        %v2523 = vmul.f32 %v2467, %v2515
        %v2524 = vmul.f32 %v2468, %v2516
        %v2525 = vmul.f32 %v2469, %v2517
        %v2526 = vadd.f32 %v2502, 1.0
        %v2527 = vadd.f32 %v2503, 1.0
        %v2528 = vadd.f32 %v2504, 1.0
        %v2529 = vadd.f32 %v2505, 1.0
        %v2530 = vadd.f32 %v2506, 1.0
        %v2531 = vadd.f32 %v2507, 1.0
        %v2532 = vadd.f32 %v2508, 1.0
        %v2533 = vadd.f32 %v2509, 1.0
        %v2534 = vrcp.pop %v2526
        %v2535 = vrcp.pop %v2527
        %v2536 = vrcp.pop %v2528
        %v2537 = vrcp.pop %v2529
        %v2538 = vrcp.pop %v2530
        %v2539 = vrcp.pop %v2531
        %v2540 = vrcp.pop %v2532
        %v2541 = vrcp.pop %v2533
        %v2542 = vmul.f32 %v2518, %v2534
        %v2543 = vmul.f32 %v2519, %v2535
        %v2544 = vmul.f32 %v2520, %v2536
        %v2545 = vmul.f32 %v2521, %v2537
        %v2546 = vmul.f32 %v2522, %v2538
        %v2547 = vmul.f32 %v2523, %v2539
        %v2548 = vmul.f32 %v2524, %v2540
        %v2549 = vmul.f32 %v2525, %v2541
        %v2550 = vld [vmem:[%s4] sm:$0xff]
        %v2551 = vld [vmem:[%s4 + $0x8] sm:$0xff]
        %v2553 = vsel %vm401, %v384, 0
        %v2556 = vsel %vm401, %v385, 0
        %v2559 = vsel %vm401, %v386, 0
        %v2562 = vsel %vm401, %v387, 0
        %v2565 = vsel %vm401, %v388, 0
        %v2568 = vsel %vm401, %v389, 0
        %v2571 = vsel %vm401, %v390, 0
        %v2574 = vsel %vm401, %v391, 0
        %2576 = vmatprep.subr.mxu0 0.0
        %2577 = vmatpush1.msra.mxu0 %v2550
        %2578 = vmatprep.subr.mxu0 0.0
        %2579 = vmatpush1.msra.mxu0 %v2551
        %2580 = vmatprep.subr.mxu0 0.0
        %2581 = vmatpush1.msra.mxu0 0.0
        %2582 = vmatprep.subr.mxu0 0.0
        %2583 = vmatpush1.msra.mxu0 0.0
        %2584 = vmatprep.subr.mxu0 0.0
        %2585 = vmatpush1.msra.mxu0 0.0
        %2586 = vmatprep.subr.mxu0 0.0
        %2587 = vmatpush1.msra.mxu0 0.0
        %2588 = vmatprep.subr.mxu0 0.0
        %2589 = vmatpush1.msra.mxu0 0.0
        %2590 = vmatprep.subr.mxu0 0.0
        %2591 = vmatpush1.msra.mxu0 0.0
        %2592 = vmatprep.subr.mxu0 0.0
        %2593 = vmatpush1.msra.mxu0 0.0
        %2594 = vmatprep.subr.mxu0 0.0
        %2595 = vmatpush1.msra.mxu0 0.0
        %2596 = vmatprep.subr.mxu0 0.0
        %2597 = vmatpush1.msra.mxu0 0.0
        %2598 = vmatprep.subr.mxu0 0.0
        %2599 = vmatpush1.msra.mxu0 0.0
        %2600 = vmatprep.subr.mxu0 0.0
        %2601 = vmatpush1.msra.mxu0 0.0
        %2602 = vmatprep.subr.mxu0 0.0
        %2603 = vmatpush1.msra.mxu0 0.0
        %2604 = vmatprep.subr.mxu0 0.0
        %2605 = vmatpush1.msra.mxu0 0.0
        %2606 = vmatprep.subr.mxu0 0.0
        %2607 = vmatpush1.msra.mxu0 0.0
        %2608 = vmatprep.subr.mxu0 0.0
        %2609 = vmatpush1.msra.mxu0 0.0
        %2610 = vmatprep.subr.mxu0 0.0
        %2611 = vmatpush1.msra.mxu0 0.0
        %2612 = vmatprep.subr.mxu0 0.0
        %2613 = vmatpush1.msra.mxu0 0.0
        %2614 = vmatprep.subr.mxu0 0.0
        %2615 = vmatpush1.msra.mxu0 0.0
        %2616 = vmatprep.subr.mxu0 0.0
        %2617 = vmatpush1.msra.mxu0 0.0
        %2618 = vmatprep.subr.mxu0 0.0
        %2619 = vmatpush1.msra.mxu0 0.0
        %2620 = vmatprep.subr.mxu0 0.0
        %2621 = vmatpush1.msra.mxu0 0.0
        %2622 = vmatprep.subr.mxu0 0.0
        %2623 = vmatpush1.msra.mxu0 0.0
        %2624 = vmatprep.subr.mxu0 0.0
        %2625 = vmatpush1.msra.mxu0 0.0
        %2626 = vmatprep.subr.mxu0 0.0
        %2627 = vmatpush1.msra.mxu0 0.0
        %2628 = vmatprep.subr.mxu0 0.0
        %2629 = vmatpush1.msra.mxu0 0.0
        %2630 = vmatprep.subr.mxu0 0.0
        %2631 = vmatpush1.msra.mxu0 0.0
        %2632 = vmatprep.subr.mxu0 0.0
        %2633 = vmatpush1.msra.mxu0 0.0
        %2634 = vmatprep.subr.mxu0 0.0
        %2635 = vmatpush1.msra.mxu0 0.0
        %2636 = vmatprep.subr.mxu0 0.0
        %2637 = vmatpush1.msra.mxu0 0.0
        %2638 = vmatprep.subr.mxu0 0.0
        %2639 = vmatpush1.msra.mxu0 0.0
        %2640 = vmatprep.mubr.f32.mxu0 0.0
        %2641 = vmatmul.mubr.f32.gmra.mrb[0].mxu0 %v2553
        %v2642 = vpop.f32.mrb[0].mxu0
        %v2643 = vadd.f32 0.0, %v2642
        %v2644 = vpop.f32.mrb[0].mxu0
        %2645 = vmatprep.mubr.f32.mxu0 0.0
        %2646 = vmatmul.mubr.f32.gmra.mrb[0].mxu0 %v2556
        %v2647 = vpop.f32.mrb[0].mxu0
        %v2648 = vadd.f32 0.0, %v2647
        %v2649 = vpop.f32.mrb[0].mxu0
        %2650 = vmatprep.mubr.f32.mxu0 0.0
        %2651 = vmatmul.mubr.f32.gmra.mrb[0].mxu0 %v2559
        %v2652 = vpop.f32.mrb[0].mxu0
        %v2653 = vadd.f32 0.0, %v2652
        %v2654 = vpop.f32.mrb[0].mxu0
        %2655 = vmatprep.mubr.f32.mxu0 0.0
        %2656 = vmatmul.mubr.f32.gmra.mrb[0].mxu0 %v2562
        %v2657 = vpop.f32.mrb[0].mxu0
        %v2658 = vadd.f32 0.0, %v2657
        %v2659 = vpop.f32.mrb[0].mxu0
        %2660 = vmatprep.mubr.f32.mxu0 0.0
        %2661 = vmatmul.mubr.f32.gmra.mrb[0].mxu0 %v2565
        %v2662 = vpop.f32.mrb[0].mxu0
        %v2663 = vadd.f32 0.0, %v2662
        %v2664 = vpop.f32.mrb[0].mxu0
        %2665 = vmatprep.mubr.f32.mxu0 0.0
        %2666 = vmatmul.mubr.f32.gmra.mrb[0].mxu0 %v2568
        %v2667 = vpop.f32.mrb[0].mxu0
        %v2668 = vadd.f32 0.0, %v2667
        %v2669 = vpop.f32.mrb[0].mxu0
        %2670 = vmatprep.mubr.f32.mxu0 0.0
        %2671 = vmatmul.mubr.f32.gmra.mrb[0].mxu0 %v2571
        %v2672 = vpop.f32.mrb[0].mxu0
        %v2673 = vadd.f32 0.0, %v2672
        %v2674 = vpop.f32.mrb[0].mxu0
        %2675 = vmatprep.mubr.f32.mxu0 0.0
        %2676 = vmatmul.mubr.f32.gmra.mrb[0].mxu0 %v2574
        %v2677 = vpop.f32.mrb[0].mxu0
        %v2678 = vadd.f32 0.0, %v2677
        %v2679 = vpop.f32.mrb[0].mxu0
        %2680 = vdwg.mxu0
        %v2681 = vlaneseq
        %v2682 = vshrl.u32 %v2681, 7
        %v2683 = vsub.s32 6, %v2682
        %v2684 = vrot.slane %v378, %v2683
        %v2685 = vadd.f32 %v2643, %v2684
        %v2686 = vadd.f32 %v2648, %v2684
        %v2687 = vadd.f32 %v2653, %v2684
        %v2688 = vadd.f32 %v2658, %v2684
        %v2689 = vadd.f32 %v2663, %v2684
        %v2690 = vadd.f32 %v2668, %v2684
        %v2691 = vadd.f32 %v2673, %v2684
        %v2692 = vadd.f32 %v2678, %v2684
        %v2693 = vadd.f32 %v2542, %v2685
        %v2694 = vadd.f32 %v2543, %v2686
        %v2695 = vadd.f32 %v2544, %v2687
        %v2696 = vadd.f32 %v2545, %v2688
        %v2697 = vadd.f32 %v2546, %v2689
        %v2698 = vadd.f32 %v2547, %v2690
        %v2699 = vadd.f32 %v2548, %v2691
        %v2700 = vadd.f32 %v2549, %v2692
        %2701 = vst.msk [vmem:[%s369] sm:$0xff] %vm849, %v2693
        %2702 = vst.msk [vmem:[%s369 + $0x8] sm:$0xff] %vm849, %v2694
        %2703 = vst.msk [vmem:[%s369 + $0x10] sm:$0xff] %vm849, %v2695
        %2704 = vst.msk [vmem:[%s369 + $0x18] sm:$0xff] %vm849, %v2696
        %2705 = vst.msk [vmem:[%s369 + $0x20] sm:$0xff] %vm849, %v2697
        %2706 = vst.msk [vmem:[%s369 + $0x28] sm:$0xff] %vm849, %v2698
        %2707 = vst.msk [vmem:[%s369 + $0x30] sm:$0xff] %vm849, %v2699
        %2708 = vst.msk [vmem:[%s369 + $0x38] sm:$0xff] %vm849, %v2700
        %s2709 = sand.u32 %s212, 1
        %s2710 = scalar_lea.sflag [#allocation6], %s2709
        %s2711 = sand.u32 %s212, 1
        %s2712 = smul.addr %s2711, 64
        %s2713 = scalar_lea.vmem [#allocation10], %s2712
        // Predicated region
        $region65: #{tpu_custom_call.1} parent=51 // pred_check
          %p2714 = pneg %p222
        $region66: #{tpu_custom_call.1} parent=51 // pred_check_branch
          %2716 = sbr.rel (%p2714) target = $region68
        $region67: #{tpu_custom_call.1} parent=51 // pred_region
          %s2717 = smul.u32 4, %s26
          %s2719 = ssub.s32 1024, 1024
          %2720 = vsyncadd %s2710, %s2719
          %s2721 = smul.addr %s2717, 2
          %s2722 = smul.addr %s2721, 128
          %s2723 = scalar_lea.hbm %s8, %s2722
          %s2724 = sshll.u32 %s2713, 4
          %s2725 = int_to_ptr.vmem [resolvable:$true] %s2724
          %2730 = dma.vmem_to_hbm [thread:$0]  %s2725, 1024, %s2723, %s2710, 128, 128, 8
        $region68: #{tpu_custom_call.1} parent=51 // pred_fallthru
          _
      $region52: #{tpu_custom_call.1} parent=5 // pred_fallthru
        _
      %p2731 = scmp.le.s32.totalorder 2, %s21
      // Predicated region
      $region69: #{tpu_custom_call.1} parent=5 // pred_check
        %p2732 = pneg %p2731
      $region70: #{tpu_custom_call.1} parent=5 // pred_check_branch
        %2734 = sbr.rel (%p2732) target = $region72
      $region71: #{tpu_custom_call.1} parent=5 // pred_region
        %s2735 = ssub.s32 %s21, 2
        // Predicated region
        $region73: #{tpu_custom_call.1} parent=71 // pred_check
          %p2736 = pneg %p228
        $region74: #{tpu_custom_call.1} parent=71 // pred_check_branch
          %2738 = sbr.rel (%p2736) target = $region76
        $region75: #{tpu_custom_call.1} parent=71 // pred_region
          %s2739 = sand.u32 %s213, 1
          %s2740 = scalar_lea.sflag [#allocation6], %s2739
          %s2741 = sand.u32 %s213, 1
          %s2742 = smul.addr %s2741, 64
          %s2743 = scalar_lea.vmem [#allocation10], %s2742
          %2744 = dma.done %s2740, 1024
        $region76: #{tpu_custom_call.1} parent=71 // pred_fallthru
          _
      $region72: #{tpu_custom_call.1} parent=5 // pred_fallthru
        _
    $region6: #{tpu_custom_call.1} parent=1 // loop_footer
      %s25 = sadd.s32 1, %s21
    $region7: #{tpu_custom_call.1} parent=1 // loop_footer_branch
      %20 = sbr.rel target = $region3
    $region8: #{tpu_custom_call.1} parent=1 // loop_exit
      _
    %2745 = vsyncpa [#allocation5], 1
    %s2746 = scalar_lea.sflag [#allocation5], 1
    %2747 = vsyncpa %s2746, 1
    %2748 = vsyncpa [#allocation8], 1
    %2749 = vsyncpa [#allocation6], 1
    %s2750 = scalar_lea.sflag [#allocation6], 1
    %2751 = vsyncpa %s2750, 1

// kernel: tpu_custom_call.1
$region0: #{tpu_custom_call.1}
  #allocation0 [shape = 'u32[]', space=smem, size = 0x4, offset = 0x4, fixed_abs, tag = 'smem constant byte address 0x4 - core index']
  #allocation1 [shape = 'u32[144,128]{1,0:T(1,128)}', space=vmem, size = 0x12000, scoped, tag = 'internal scratch']
  #allocation2 [shape = 'f32[4,18,16]{2,1,0:T(8,128)}', space=vmem, size = 0xc000, scoped, tag = 'scratch operand']
  #allocation3 [shape = 'f32[4,18,32]{2,1,0:T(8,128)}', space=vmem, size = 0xc000, scoped, tag = 'scratch operand']
  %s0 = inlined_call_operand.hbm [shape: f32[8,16,16], index: 0, kind: input, shape index: {}]
  %s1 = inlined_call_operand.vmem [shape: f32[8,2,32], index: 1, kind: input, shape index: {}]
  %s2 = inlined_call_operand.hbm [shape: f32[3,16,32], index: 2, kind: input, shape index: {}]
  %s3 = inlined_call_operand.hbm [shape: f32[3,32,32], index: 3, kind: input, shape index: {}]
  %s4 = inlined_call_operand.vmem [shape: f32[16,32], index: 4, kind: input, shape index: {}]
  %s5 = inlined_call_operand.vmem [shape: f32[8,32], index: 5, kind: input, shape index: {}]
  %s6 = inlined_call_operand.vmem [shape: f32[32,8], index: 6, kind: input, shape index: {}]
  %s7 = inlined_call_operand.vmem [shape: f32[8,32], index: 7, kind: input, shape index: {}]
  %s8 = inlined_call_operand.hbm [shape: f32[8,16,32], index: 8, kind: output, shape index: {}]
  %s9 = sld [smem:[#allocation0]]
  $region77: #{tpu_custom_call.1} parent=0
    _
  %s11 = ssub.s32 1, %s9
  %s12 = scalar_select 0, %s11, %s9
  $region1: #{tpu_custom_call.1} parent=0
    #allocation4 [shape = 'u8[65536]{0}', space=vmem, size = 0x10000, scoped, tag = 'input window, operand 0']
    #allocation5 [shape = 's32[2]{0}', space=sflag, size = 0x8, scoped, tag = 'scoped memory for tpu_custom_call.1']
    #allocation6 [shape = 's32[2]{0}', space=sflag, size = 0x8, scoped, tag = 'scoped memory for tpu_custom_call.1']
    #allocation7 [shape = 'u8[24576]{0}', space=vmem, size = 0x6000, scoped, tag = 'input window, operand 2, single buffered']
    #allocation8 [shape = 's32[1]{0}', space=sflag, size = 0x4, scoped, tag = 'scoped memory for tpu_custom_call.1']
    #allocation9 [shape = 'u8[49152]{0}', space=vmem, size = 0xc000, scoped, tag = 'input window, operand 3, single buffered']
    #allocation10 [shape = 'u8[65536]{0}', space=vmem, size = 0x10000, scoped, tag = 'output window, operand 0']
    %13 = vsyncpa [#allocation5], 0
    %s14 = scalar_lea.sflag [#allocation5], 1
    %15 = vsyncpa %s14, 0
    %16 = vsyncpa [#allocation8], 0
    %17 = vsyncpa [#allocation6], 0
    %s18 = scalar_lea.sflag [#allocation6], 1
    %19 = vsyncpa %s18, 0
    loop: start=0, step=1, limit=4
    $region2: #{tpu_custom_call.1} parent=1 // loop_pre_header
      _
    $region3: #{tpu_custom_call.1} parent=1 // loop_header
      %s21 = sphi 0, %s25
      %p22 = scmp.ge.s32.totalorder %s21, 4
      %s31 = sphi 0, %s33
      %s34 = sphi 0, %s31
      %s35 = sphi 0, %s34
      %s51 = sphi 0, %s35
      %s57 = sphi 0, %s59
      %s60 = sphi 0, %s57
      %s61 = sphi 0, %s60
      %s77 = sphi 0, %s61
      %s81 = sphi 0, %s81
      %s83 = sphi 0, %s81
      %s84 = sphi 0, %s83
      %s98 = sphi 0, %s84
      %s102 = sphi 0, %s102
      %s104 = sphi 0, %s102
      %s105 = sphi 0, %s104
      %s119 = sphi 0, %s105
      %s123 = sphi 0, %s123
      %s125 = sphi 0, %s123
      %s126 = sphi 0, %s125
      %s140 = sphi 0, %s126
      %s144 = sphi 0, %s144
      %s146 = sphi 0, %s144
      %s147 = sphi 0, %s146
      %s161 = sphi 0, %s147
      %s165 = sphi 0, %s165
      %s167 = sphi 0, %s165
      %s168 = sphi 0, %s167
      %s182 = sphi 0, %s168
      %s186 = sphi 0, %s186
      %s188 = sphi 0, %s186
      %s189 = sphi 0, %s188
      %s203 = sphi 0, %s189
      %s209 = sphi 0, %s211
      %s212 = sphi 0, %s209
      %s213 = sphi 0, %s212
      %s229 = sphi 0, %s213
    $region4: #{tpu_custom_call.1} parent=1 // loop_header_branch
      %24 = sbr.rel (%p22) target = $region8
    $region5: #{tpu_custom_call.1} parent=1 // loop_body
      %s26 = ssub.s32 %s21, 1
      %s27 = ssub.s32 %s21, 2
      %s28 = sadd.s32 %s21, 1
      %s29 = ssub.s32 %s21, %s28
      %p30 = scmp.eq.s32.totalorder %s29, 0
      %s32 = sadd.s32 %s31, 1
      %s33 = scalar_select %p30, %s31, %s32
      %p36 = pneg %p30
      %p37 = scmp.eq.s32.totalorder %s21, 1
      %p38 = por %p36, %p37
      %p39 = scmp.ne.s32.totalorder %s31, %s34
      %p40 = scmp.eq.s32.totalorder %s21, 0
      %p41 = por %p39, %p40
      %p42 = scmp.ne.s32.totalorder %s31, %s34
      %p43 = scmp.eq.s32.totalorder %s26, 1
      %p44 = por %p42, %p43
      %p45 = scmp.ne.s32.totalorder %s34, %s35
      %p46 = scmp.eq.s32.totalorder %s26, 0
      %p47 = por %p45, %p46
      %p48 = scmp.ne.s32.totalorder %s34, %s35
      %p49 = scmp.eq.s32.totalorder %s27, 1
      %p50 = por %p48, %p49
      %p52 = scmp.ne.s32.totalorder %s35, %s51
      %p53 = scmp.eq.s32.totalorder %s27, 0
      %p54 = por %p52, %p53
      %s55 = ssub.s32 %s21, %s28
      %p56 = scmp.eq.s32.totalorder %s55, 0
      %s58 = sadd.s32 %s57, 1
      %s59 = scalar_select %p56, %s57, %s58
      %p62 = pneg %p56
      %p63 = scmp.eq.s32.totalorder %s21, 1
      %p64 = por %p62, %p63
      %p65 = scmp.ne.s32.totalorder %s57, %s60
      %p66 = scmp.eq.s32.totalorder %s21, 0
      %p67 = por %p65, %p66
      %p68 = scmp.ne.s32.totalorder %s57, %s60
      %p69 = scmp.eq.s32.totalorder %s26, 1
      %p70 = por %p68, %p69
      %p71 = scmp.ne.s32.totalorder %s60, %s61
      %p72 = scmp.eq.s32.totalorder %s26, 0
      %p73 = por %p71, %p72
      %p74 = scmp.ne.s32.totalorder %s60, %s61
      %p75 = scmp.eq.s32.totalorder %s27, 1
      %p76 = por %p74, %p75
      %p78 = scmp.ne.s32.totalorder %s61, %s77
      %p79 = scmp.eq.s32.totalorder %s27, 0
      %p80 = por %p78, %p79
      %s82 = sadd.s32 %s81, 1
      %p85 = scmp.eq.s32.totalorder %s21, 1
      %p86 = scmp.ne.s32.totalorder %s81, %s83
      %p87 = scmp.eq.s32.totalorder %s21, 0
      %p88 = por %p86, %p87
      %p89 = scmp.ne.s32.totalorder %s81, %s83
      %p90 = scmp.eq.s32.totalorder %s26, 1
      %p91 = por %p89, %p90
      %p92 = scmp.ne.s32.totalorder %s83, %s84
      %p93 = scmp.eq.s32.totalorder %s26, 0
      %p94 = por %p92, %p93
      %p95 = scmp.ne.s32.totalorder %s83, %s84
      %p96 = scmp.eq.s32.totalorder %s27, 1
      %p97 = por %p95, %p96
      %p99 = scmp.ne.s32.totalorder %s84, %s98
      %p100 = scmp.eq.s32.totalorder %s27, 0
      %p101 = por %p99, %p100
      %s103 = sadd.s32 %s102, 1
      %p106 = scmp.eq.s32.totalorder %s21, 1
      %p107 = scmp.ne.s32.totalorder %s102, %s104
      %p108 = scmp.eq.s32.totalorder %s21, 0
      %p109 = por %p107, %p108
      %p110 = scmp.ne.s32.totalorder %s102, %s104
      %p111 = scmp.eq.s32.totalorder %s26, 1
      %p112 = por %p110, %p111
      %p113 = scmp.ne.s32.totalorder %s104, %s105
      %p114 = scmp.eq.s32.totalorder %s26, 0
      %p115 = por %p113, %p114
      %p116 = scmp.ne.s32.totalorder %s104, %s105
      %p117 = scmp.eq.s32.totalorder %s27, 1
      %p118 = por %p116, %p117
      %p120 = scmp.ne.s32.totalorder %s105, %s119
      %p121 = scmp.eq.s32.totalorder %s27, 0
      %p122 = por %p120, %p121
      %s124 = sadd.s32 %s123, 1
      %p127 = scmp.eq.s32.totalorder %s21, 1
      %p128 = scmp.ne.s32.totalorder %s123, %s125
      %p129 = scmp.eq.s32.totalorder %s21, 0
      %p130 = por %p128, %p129
      %p131 = scmp.ne.s32.totalorder %s123, %s125
      %p132 = scmp.eq.s32.totalorder %s26, 1
      %p133 = por %p131, %p132
      %p134 = scmp.ne.s32.totalorder %s125, %s126
      %p135 = scmp.eq.s32.totalorder %s26, 0
      %p136 = por %p134, %p135
      %p137 = scmp.ne.s32.totalorder %s125, %s126
      %p138 = scmp.eq.s32.totalorder %s27, 1
      %p139 = por %p137, %p138
      %p141 = scmp.ne.s32.totalorder %s126, %s140
      %p142 = scmp.eq.s32.totalorder %s27, 0
      %p143 = por %p141, %p142
      %s145 = sadd.s32 %s144, 1
      %p148 = scmp.eq.s32.totalorder %s21, 1
      %p149 = scmp.ne.s32.totalorder %s144, %s146
      %p150 = scmp.eq.s32.totalorder %s21, 0
      %p151 = por %p149, %p150
      %p152 = scmp.ne.s32.totalorder %s144, %s146
      %p153 = scmp.eq.s32.totalorder %s26, 1
      %p154 = por %p152, %p153
      %p155 = scmp.ne.s32.totalorder %s146, %s147
      %p156 = scmp.eq.s32.totalorder %s26, 0
      %p157 = por %p155, %p156
      %p158 = scmp.ne.s32.totalorder %s146, %s147
      %p159 = scmp.eq.s32.totalorder %s27, 1
      %p160 = por %p158, %p159
      %p162 = scmp.ne.s32.totalorder %s147, %s161
      %p163 = scmp.eq.s32.totalorder %s27, 0
      %p164 = por %p162, %p163
      %s166 = sadd.s32 %s165, 1
      %p169 = scmp.eq.s32.totalorder %s21, 1
      %p170 = scmp.ne.s32.totalorder %s165, %s167
      %p171 = scmp.eq.s32.totalorder %s21, 0
      %p172 = por %p170, %p171
      %p173 = scmp.ne.s32.totalorder %s165, %s167
      %p174 = scmp.eq.s32.totalorder %s26, 1
      %p175 = por %p173, %p174
      %p176 = scmp.ne.s32.totalorder %s167, %s168
      %p177 = scmp.eq.s32.totalorder %s26, 0
      %p178 = por %p176, %p177
      %p179 = scmp.ne.s32.totalorder %s167, %s168
      %p180 = scmp.eq.s32.totalorder %s27, 1
      %p181 = por %p179, %p180
      %p183 = scmp.ne.s32.totalorder %s168, %s182
      %p184 = scmp.eq.s32.totalorder %s27, 0
      %p185 = por %p183, %p184
      %s187 = sadd.s32 %s186, 1
      %p190 = scmp.eq.s32.totalorder %s21, 1
      %p191 = scmp.ne.s32.totalorder %s186, %s188
      %p192 = scmp.eq.s32.totalorder %s21, 0
      %p193 = por %p191, %p192
      %p194 = scmp.ne.s32.totalorder %s186, %s188
      %p195 = scmp.eq.s32.totalorder %s26, 1
      %p196 = por %p194, %p195
      %p197 = scmp.ne.s32.totalorder %s188, %s189
      %p198 = scmp.eq.s32.totalorder %s26, 0
      %p199 = por %p197, %p198
      %p200 = scmp.ne.s32.totalorder %s188, %s189
      %p201 = scmp.eq.s32.totalorder %s27, 1
      %p202 = por %p200, %p201
      %p204 = scmp.ne.s32.totalorder %s189, %s203
      %p205 = scmp.eq.s32.totalorder %s27, 0
      %p206 = por %p204, %p205
      %s207 = ssub.s32 %s21, %s28
      %p208 = scmp.eq.s32.totalorder %s207, 0
      %s210 = sadd.s32 %s209, 1
      %s211 = scalar_select %p208, %s209, %s210
      %p214 = pneg %p208
      %p215 = scmp.eq.s32.totalorder %s21, 1
      %p216 = por %p214, %p215
      %p217 = scmp.ne.s32.totalorder %s209, %s212
      %p218 = scmp.eq.s32.totalorder %s21, 0
      %p219 = por %p217, %p218
      %p220 = scmp.ne.s32.totalorder %s209, %s212
      %p221 = scmp.eq.s32.totalorder %s26, 1
      %p222 = por %p220, %p221
      %p223 = scmp.ne.s32.totalorder %s212, %s213
      %p224 = scmp.eq.s32.totalorder %s26, 0
      %p225 = por %p223, %p224
      %p226 = scmp.ne.s32.totalorder %s212, %s213
      %p227 = scmp.eq.s32.totalorder %s27, 1
      %p228 = por %p226, %p227
      %p230 = scmp.ne.s32.totalorder %s213, %s229
      %p231 = scmp.eq.s32.totalorder %s27, 0
      %p232 = por %p230, %p231
      %p233 = scmp.le.s32.totalorder 1, %s21
      %p234 = scmp.lt.s32.totalorder %s21, 3
      %p235 = pnand %p233, %p234
      %p236 = pneg %p235
      // Predicated region
      $region9: #{tpu_custom_call.1} parent=5 // pred_check
        _
      $region10: #{tpu_custom_call.1} parent=5 // pred_check_branch
        %238 = sbr.rel (%p235) target = $region12
      $region11: #{tpu_custom_call.1} parent=5 // pred_region
        %s239 = ssub.s32 %s21, 1
        // Predicated region
        $region13: #{tpu_custom_call.1} parent=11 // pred_check
          %p240 = pneg %p94
        $region14: #{tpu_custom_call.1} parent=11 // pred_check_branch
          %242 = sbr.rel (%p240) target = $region16
        $region15: #{tpu_custom_call.1} parent=11 // pred_region
          %s244 = ssub.s32 768, 768
          %245 = vsyncadd [#allocation8], %s244
          %s246 = sshll.u32 [#allocation7], 4
          %s247 = int_to_ptr.vmem [resolvable:$true] %s246
          %252 = dma.hbm_to_vmem [thread:$0]  %s2, 768, %s247, [#allocation8], 128, 128, 8
        $region16: #{tpu_custom_call.1} parent=11 // pred_fallthru
          _
        // Predicated region
        $region17: #{tpu_custom_call.1} parent=11 // pred_check
          %p253 = pneg %p115
        $region18: #{tpu_custom_call.1} parent=11 // pred_check_branch
          %255 = sbr.rel (%p253) target = $region20
        $region19: #{tpu_custom_call.1} parent=11 // pred_region
          %s257 = ssub.s32 1536, 1536
          %258 = vsyncadd [#allocation8], %s257
          %s259 = sshll.u32 [#allocation9], 4
          %s260 = int_to_ptr.vmem [resolvable:$true] %s259
          %265 = dma.hbm_to_vmem [thread:$0]  %s3, 1536, %s260, [#allocation8], 128, 128, 8
        $region20: #{tpu_custom_call.1} parent=11 // pred_fallthru
          _
        // Predicated region
        $region21: #{tpu_custom_call.1} parent=11 // pred_check
          %p266 = pneg %p136
        $region22: #{tpu_custom_call.1} parent=11 // pred_check_branch
          %268 = sbr.rel (%p266) target = $region24
        $region23: #{tpu_custom_call.1} parent=11 // pred_region
          _
        $region24: #{tpu_custom_call.1} parent=11 // pred_fallthru
          _
        // Predicated region
        $region25: #{tpu_custom_call.1} parent=11 // pred_check
          %p269 = pneg %p157
        $region26: #{tpu_custom_call.1} parent=11 // pred_check_branch
          %271 = sbr.rel (%p269) target = $region28
        $region27: #{tpu_custom_call.1} parent=11 // pred_region
          _
        $region28: #{tpu_custom_call.1} parent=11 // pred_fallthru
          _
        // Predicated region
        $region29: #{tpu_custom_call.1} parent=11 // pred_check
          %p272 = pneg %p178
        $region30: #{tpu_custom_call.1} parent=11 // pred_check_branch
          %274 = sbr.rel (%p272) target = $region32
        $region31: #{tpu_custom_call.1} parent=11 // pred_region
          _
        $region32: #{tpu_custom_call.1} parent=11 // pred_fallthru
          _
        // Predicated region
        $region33: #{tpu_custom_call.1} parent=11 // pred_check
          %p275 = pneg %p199
        $region34: #{tpu_custom_call.1} parent=11 // pred_check_branch
          %277 = sbr.rel (%p275) target = $region36
        $region35: #{tpu_custom_call.1} parent=11 // pred_region
          _
        $region36: #{tpu_custom_call.1} parent=11 // pred_fallthru
          _
      $region12: #{tpu_custom_call.1} parent=5 // pred_fallthru
        _
      %p278 = scmp.lt.s32.totalorder %s21, 2
      // Predicated region
      $region37: #{tpu_custom_call.1} parent=5 // pred_check
        %p279 = pneg %p278
      $region38: #{tpu_custom_call.1} parent=5 // pred_check_branch
        %281 = sbr.rel (%p279) target = $region40
      $region39: #{tpu_custom_call.1} parent=5 // pred_region
        // Predicated region
        $region41: #{tpu_custom_call.1} parent=39 // pred_check
          %p282 = pneg %p41
        $region42: #{tpu_custom_call.1} parent=39 // pred_check_branch
          %284 = sbr.rel (%p282) target = $region44
        $region43: #{tpu_custom_call.1} parent=39 // pred_region
          %s285 = sand.u32 %s31, 1
          %s286 = scalar_lea.sflag [#allocation5], %s285
          %s287 = sand.u32 %s31, 1
          %s288 = smul.addr %s287, 64
          %s289 = scalar_lea.vmem [#allocation4], %s288
          %s290 = smul.u32 4, %s21
          %s292 = ssub.s32 1024, 1024
          %293 = vsyncadd %s286, %s292
          %s294 = smul.addr %s290, 2
          %s295 = smul.addr %s294, 128
          %s296 = scalar_lea.hbm %s0, %s295
          %s297 = sshll.u32 %s289, 4
          %s298 = int_to_ptr.vmem [resolvable:$true] %s297
          %303 = dma.hbm_to_vmem [thread:$0]  %s296, 1024, %s298, %s286, 128, 128, 8
        $region44: #{tpu_custom_call.1} parent=39 // pred_fallthru
          _
        // Predicated region
        $region45: #{tpu_custom_call.1} parent=39 // pred_check
          %p304 = pneg %p67
        $region46: #{tpu_custom_call.1} parent=39 // pred_check_branch
          %306 = sbr.rel (%p304) target = $region48
        $region47: #{tpu_custom_call.1} parent=39 // pred_region
          %s307 = smul.u32 4, %s21
          %p308 = scmp.lt.s32.totalorder %s307, 7
          %s309 = scalar_select %p308, %s307, 7
          %s310 = smul.addr %s309, 2
          %s311 = scalar_lea.vmem %s1, %s310
          %s312 = smul.u32 4, %s21
        $region48: #{tpu_custom_call.1} parent=39 // pred_fallthru
          _
      $region40: #{tpu_custom_call.1} parent=5 // pred_fallthru
        _
      %p313 = scmp.le.s32.totalorder 1, %s21
      %p314 = scmp.lt.s32.totalorder %s21, 3
      %p315 = pnand %p313, %p314
      %p316 = pneg %p315
      // Predicated region
      $region49: #{tpu_custom_call.1} parent=5 // pred_check
        _
      $region50: #{tpu_custom_call.1} parent=5 // pred_check_branch
        %318 = sbr.rel (%p315) target = $region52
      $region51: #{tpu_custom_call.1} parent=5 // pred_region
        %s319 = ssub.s32 %s21, 1
        %s320 = sand.u32 %s34, 1
        %s321 = scalar_lea.sflag [#allocation5], %s320
        %s322 = sand.u32 %s34, 1
        %s323 = smul.addr %s322, 64
        %s324 = scalar_lea.vmem [#allocation4], %s323
        // Predicated region
        $region53: #{tpu_custom_call.1} parent=51 // pred_check
          %p325 = pneg %p47
        $region54: #{tpu_custom_call.1} parent=51 // pred_check_branch
          %327 = sbr.rel (%p325) target = $region56
        $region55: #{tpu_custom_call.1} parent=51 // pred_region
          %328 = dma.done %s321, 1024
        $region56: #{tpu_custom_call.1} parent=51 // pred_fallthru
          _
        // Predicated region
        $region57: #{tpu_custom_call.1} parent=51 // pred_check
          %p329 = pneg %p94
        $region58: #{tpu_custom_call.1} parent=51 // pred_check_branch
          %331 = sbr.rel (%p329) target = $region60
        $region59: #{tpu_custom_call.1} parent=51 // pred_region
          %332 = dma.done [#allocation8], 768
        $region60: #{tpu_custom_call.1} parent=51 // pred_fallthru
          _
        // Predicated region
        $region61: #{tpu_custom_call.1} parent=51 // pred_check
          %p333 = pneg %p115
        $region62: #{tpu_custom_call.1} parent=51 // pred_check_branch
          %335 = sbr.rel (%p333) target = $region64
        $region63: #{tpu_custom_call.1} parent=51 // pred_region
          %336 = dma.done [#allocation8], 1536
        $region64: #{tpu_custom_call.1} parent=51 // pred_fallthru
          _
        %s337 = sand.u32 %s34, 1
        %s338 = scalar_lea.sflag [#allocation5], %s337
        %s339 = sand.u32 %s34, 1
        %s340 = smul.addr %s339, 64
        %s341 = scalar_lea.vmem [#allocation4], %s340
        %p342 = pneg %p47
        %p343 = pneg %p44
        %s344 = smul.u32 4, %s26
        %p345 = scmp.lt.s32.totalorder %s344, 7
        %s346 = scalar_select %p345, %s344, 7
        %s347 = smul.addr %s346, 2
        %s348 = scalar_lea.vmem %s1, %s347
        %p349 = pneg %p73
        %p350 = pneg %p70
        %p351 = pneg %p94
        %p352 = pneg %p91
        %p353 = pneg %p115
        %p354 = pneg %p112
        %p355 = pneg %p136
        %p356 = pneg %p133
        %p357 = pneg %p157
        %p358 = pneg %p154
        %p359 = pneg %p178
        %p360 = pneg %p175
        %p361 = pneg %p199
        %p362 = pneg %p196
        %p363 = pneg %p225
        %p364 = pneg %p222
        %s365 = sand.u32 %s212, 1
        %s366 = scalar_lea.sflag [#allocation6], %s365
        %s367 = sand.u32 %s212, 1
        %s368 = smul.addr %s367, 64
        %s369 = scalar_lea.vmem [#allocation10], %s368
        %s370 = smul.u32 4, %s26
        %s371 = smul.u32 4, %s26
        %p372 = scmp.lt.s32.totalorder %s371, 7
        %s373 = scalar_select %p372, %s371, 7
        %s374 = smul.addr %s373, 2
        %s375 = scalar_lea.vmem %s1, %s374
        %s376 = smul.u32 4, %s26
        %s377 = smul.u32 4, %s26
        %v378 = vld [vmem:[%s5] sm:$0xff]
        %v379 = vld [vmem:[%s6] sm:$0xff]
        %v380 = vld [vmem:[%s6 + $0x8] sm:$0xff]
        %v381 = vld [vmem:[%s6 + $0x10] sm:$0xff]
        %v382 = vld [vmem:[%s6 + $0x18] sm:$0xff]
        %v383 = vld [vmem:[%s7] sm:$0xff]
        %v384 = vld [vmem:[%s324] sm:$0xff]
        %v385 = vld [vmem:[%s324 + $0x8] sm:$0xff]
        %v386 = vld [vmem:[%s324 + $0x10] sm:$0xff]
        %v387 = vld [vmem:[%s324 + $0x18] sm:$0xff]
        %v388 = vld [vmem:[%s324 + $0x20] sm:$0xff]
        %v389 = vld [vmem:[%s324 + $0x28] sm:$0xff]
        %v390 = vld [vmem:[%s324 + $0x30] sm:$0xff]
        %v391 = vld [vmem:[%s324 + $0x38] sm:$0xff]
        %vm392 = vcmask 122880
        %393 = vst.msk [vmem:[#allocation2] sm:$0x1] %vm392, 0.0
        %394 = vst.msk [vmem:[#allocation2 + $0x18] sm:$0x1] %vm392, 0.0
        %395 = vst.msk [vmem:[#allocation2 + $0x30] sm:$0x1] %vm392, 0.0
        %396 = vst.msk [vmem:[#allocation2 + $0x48] sm:$0x1] %vm392, 0.0
        %397 = vst.msk [vmem:[#allocation2 + $0x11] sm:$0x1] %vm392, 0.0
        %398 = vst.msk [vmem:[#allocation2 + $0x29] sm:$0x1] %vm392, 0.0
        %399 = vst.msk [vmem:[#allocation2 + $0x41] sm:$0x1] %vm392, 0.0
        %400 = vst.msk [vmem:[#allocation2 + $0x59] sm:$0x1] %vm392, 0.0
        %vm401 = vcmask 130048
        %402 = vst.msk [vmem:[#allocation2 + $0x1] sm:$0xff] %vm401, %v384
        %403 = vst.msk [vmem:[#allocation2 + $0x9] sm:$0xff] %vm401, %v385
        %404 = vst.msk [vmem:[#allocation2 + $0x19] sm:$0xff] %vm401, %v386
        %405 = vst.msk [vmem:[#allocation2 + $0x21] sm:$0xff] %vm401, %v387
        %406 = vst.msk [vmem:[#allocation2 + $0x31] sm:$0xff] %vm401, %v388
        %407 = vst.msk [vmem:[#allocation2 + $0x39] sm:$0xff] %vm401, %v389
        %408 = vst.msk [vmem:[#allocation2 + $0x49] sm:$0xff] %vm401, %v390
        %409 = vst.msk [vmem:[#allocation2 + $0x51] sm:$0xff] %vm401, %v391
        %v410 = vld [vmem:[#allocation2] sm:$0xff]
        %v411 = vld [vmem:[#allocation2 + $0x8] sm:$0xff]
        %v412 = vld [vmem:[#allocation2 + $0x18] sm:$0xff]
        %v413 = vld [vmem:[#allocation2 + $0x20] sm:$0xff]
        %v414 = vld [vmem:[#allocation2 + $0x30] sm:$0xff]
        %v415 = vld [vmem:[#allocation2 + $0x38] sm:$0xff]
        %v416 = vld [vmem:[#allocation2 + $0x48] sm:$0xff]
        %v417 = vld [vmem:[#allocation2 + $0x50] sm:$0xff]
        %v418 = vld [vmem:[#allocation7] sm:$0xff]
        %v419 = vld [vmem:[#allocation7 + $0x8] sm:$0xff]
        %v420 = vld [vmem:[#allocation2 + $0x1] sm:$0xff]
        %v421 = vld [vmem:[#allocation2 + $0x9] sm:$0xff]
        %v422 = vld [vmem:[#allocation2 + $0x19] sm:$0xff]
        %v423 = vld [vmem:[#allocation2 + $0x21] sm:$0xff]
        %v424 = vld [vmem:[#allocation2 + $0x31] sm:$0xff]
        %v425 = vld [vmem:[#allocation2 + $0x39] sm:$0xff]
        %v426 = vld [vmem:[#allocation2 + $0x49] sm:$0xff]
        %v427 = vld [vmem:[#allocation2 + $0x51] sm:$0xff]
        %s428 = scalar_lea.vmem [#allocation7], 16
        %v429 = vld [vmem:[%s428] sm:$0xff]
        %v430 = vld [vmem:[%s428 + $0x8] sm:$0xff]
        %v432 = vsel %vm401, %v420, 0
        %v435 = vsel %vm401, %v421, 0
        %v438 = vsel %vm401, %v422, 0
        %v441 = vsel %vm401, %v423, 0
        %v444 = vsel %vm401, %v424, 0
        %v447 = vsel %vm401, %v425, 0
        %v450 = vsel %vm401, %v426, 0
        %v453 = vsel %vm401, %v427, 0
        %455 = vmatprep.subr.mxu0 0.0
        %456 = vmatpush1.msra.mxu0 %v429
        %457 = vmatprep.subr.mxu0 0.0
        %458 = vmatpush1.msra.mxu0 %v430
        %459 = vmatprep.subr.mxu0 0.0
        %460 = vmatpush1.msra.mxu0 0.0
        %461 = vmatprep.subr.mxu0 0.0
        %462 = vmatpush1.msra.mxu0 0.0
        %463 = vmatprep.subr.mxu0 0.0
        %464 = vmatpush1.msra.mxu0 0.0
        %465 = vmatprep.subr.mxu0 0.0
        %466 = vmatpush1.msra.mxu0 0.0
        %467 = vmatprep.subr.mxu0 0.0
        %468 = vmatpush1.msra.mxu0 0.0
        %469 = vmatprep.subr.mxu0 0.0
        %470 = vmatpush1.msra.mxu0 0.0
        %471 = vmatprep.subr.mxu0 0.0
        %472 = vmatpush1.msra.mxu0 0.0
        %473 = vmatprep.subr.mxu0 0.0
        %474 = vmatpush1.msra.mxu0 0.0
        %475 = vmatprep.subr.mxu0 0.0
        %476 = vmatpush1.msra.mxu0 0.0
        %477 = vmatprep.subr.mxu0 0.0
        %478 = vmatpush1.msra.mxu0 0.0
        %479 = vmatprep.subr.mxu0 0.0
        %480 = vmatpush1.msra.mxu0 0.0
        %481 = vmatprep.subr.mxu0 0.0
        %482 = vmatpush1.msra.mxu0 0.0
        %483 = vmatprep.subr.mxu0 0.0
        %484 = vmatpush1.msra.mxu0 0.0
        %485 = vmatprep.subr.mxu0 0.0
        %486 = vmatpush1.msra.mxu0 0.0
        %487 = vmatprep.subr.mxu0 0.0
        %488 = vmatpush1.msra.mxu0 0.0
        %489 = vmatprep.subr.mxu0 0.0
        %490 = vmatpush1.msra.mxu0 0.0
        %491 = vmatprep.subr.mxu0 0.0
        %492 = vmatpush1.msra.mxu0 0.0
        %493 = vmatprep.subr.mxu0 0.0
        %494 = vmatpush1.msra.mxu0 0.0
        %495 = vmatprep.subr.mxu0 0.0
        %496 = vmatpush1.msra.mxu0 0.0
        %497 = vmatprep.subr.mxu0 0.0
        %498 = vmatpush1.msra.mxu0 0.0
        %499 = vmatprep.subr.mxu0 0.0
        %500 = vmatpush1.msra.mxu0 0.0
        %501 = vmatprep.subr.mxu0 0.0
        %502 = vmatpush1.msra.mxu0 0.0
        %503 = vmatprep.subr.mxu0 0.0
        %504 = vmatpush1.msra.mxu0 0.0
        %505 = vmatprep.subr.mxu0 0.0
        %506 = vmatpush1.msra.mxu0 0.0
        %507 = vmatprep.subr.mxu0 0.0
        %508 = vmatpush1.msra.mxu0 0.0
        %509 = vmatprep.subr.mxu0 0.0
        %510 = vmatpush1.msra.mxu0 0.0
        %511 = vmatprep.subr.mxu0 0.0
        %512 = vmatpush1.msra.mxu0 0.0
        %513 = vmatprep.subr.mxu0 0.0
        %514 = vmatpush1.msra.mxu0 0.0
        %515 = vmatprep.subr.mxu0 0.0
        %516 = vmatpush1.msra.mxu0 0.0
        %517 = vmatprep.subr.mxu0 0.0
        %518 = vmatpush1.msra.mxu0 0.0
        %519 = vmatprep.mubr.f32.mxu0 0.0
        %520 = vmatmul.mubr.f32.gmra.mrb[0].mxu0 %v432
        %v521 = vpop.f32.mrb[0].mxu0
        %v522 = vadd.f32 0.0, %v521
        %v523 = vpop.f32.mrb[0].mxu0
        %524 = vmatprep.mubr.f32.mxu0 0.0
        %525 = vmatmul.mubr.f32.gmra.mrb[0].mxu0 %v435
        %v526 = vpop.f32.mrb[0].mxu0
        %v527 = vadd.f32 0.0, %v526
        %v528 = vpop.f32.mrb[0].mxu0
        %529 = vmatprep.mubr.f32.mxu0 0.0
        %530 = vmatmul.mubr.f32.gmra.mrb[0].mxu0 %v438
        %v531 = vpop.f32.mrb[0].mxu0
        %v532 = vadd.f32 0.0, %v531
        %v533 = vpop.f32.mrb[0].mxu0
        %534 = vmatprep.mubr.f32.mxu0 0.0
        %535 = vmatmul.mubr.f32.gmra.mrb[0].mxu0 %v441
        %v536 = vpop.f32.mrb[0].mxu0
        %v537 = vadd.f32 0.0, %v536
        %v538 = vpop.f32.mrb[0].mxu0
        %539 = vmatprep.mubr.f32.mxu0 0.0
        %540 = vmatmul.mubr.f32.gmra.mrb[0].mxu0 %v444
        %v541 = vpop.f32.mrb[0].mxu0
        %v542 = vadd.f32 0.0, %v541
        %v543 = vpop.f32.mrb[0].mxu0
        %544 = vmatprep.mubr.f32.mxu0 0.0
        %545 = vmatmul.mubr.f32.gmra.mrb[0].mxu0 %v447
        %v546 = vpop.f32.mrb[0].mxu0
        %v547 = vadd.f32 0.0, %v546
        %v548 = vpop.f32.mrb[0].mxu0
        %549 = vmatprep.mubr.f32.mxu0 0.0
        %550 = vmatmul.mubr.f32.gmra.mrb[0].mxu0 %v450
        %v551 = vpop.f32.mrb[0].mxu0
        %v552 = vadd.f32 0.0, %v551
        %v553 = vpop.f32.mrb[0].mxu0
        %554 = vmatprep.mubr.f32.mxu0 0.0
        %555 = vmatmul.mubr.f32.gmra.mrb[0].mxu0 %v453
        %v556 = vpop.f32.mrb[0].mxu0
        %v557 = vadd.f32 0.0, %v556
        %v558 = vpop.f32.mrb[0].mxu0
        %559 = vdwg.mxu0
        %v561 = vsel %vm401, %v410, 0
        %v564 = vsel %vm401, %v411, 0
        %v567 = vsel %vm401, %v412, 0
        %v570 = vsel %vm401, %v413, 0
        %v573 = vsel %vm401, %v414, 0
        %v576 = vsel %vm401, %v415, 0
        %v579 = vsel %vm401, %v416, 0
        %v582 = vsel %vm401, %v417, 0
        %584 = vmatprep.subr.mxu0 0.0
        %585 = vmatpush1.msra.mxu0 %v418
        %586 = vmatprep.subr.mxu0 0.0
        %587 = vmatpush1.msra.mxu0 %v419
        %588 = vmatprep.subr.mxu0 0.0
        %589 = vmatpush1.msra.mxu0 0.0
        %590 = vmatprep.subr.mxu0 0.0
        %591 = vmatpush1.msra.mxu0 0.0
        %592 = vmatprep.subr.mxu0 0.0
        %593 = vmatpush1.msra.mxu0 0.0
        %594 = vmatprep.subr.mxu0 0.0
        %595 = vmatpush1.msra.mxu0 0.0
        %596 = vmatprep.subr.mxu0 0.0
        %597 = vmatpush1.msra.mxu0 0.0
        %598 = vmatprep.subr.mxu0 0.0
        %599 = vmatpush1.msra.mxu0 0.0
        %600 = vmatprep.subr.mxu0 0.0
        %601 = vmatpush1.msra.mxu0 0.0
        %602 = vmatprep.subr.mxu0 0.0
        %603 = vmatpush1.msra.mxu0 0.0
        %604 = vmatprep.subr.mxu0 0.0
        %605 = vmatpush1.msra.mxu0 0.0
        %606 = vmatprep.subr.mxu0 0.0
        %607 = vmatpush1.msra.mxu0 0.0
        %608 = vmatprep.subr.mxu0 0.0
        %609 = vmatpush1.msra.mxu0 0.0
        %610 = vmatprep.subr.mxu0 0.0
        %611 = vmatpush1.msra.mxu0 0.0
        %612 = vmatprep.subr.mxu0 0.0
        %613 = vmatpush1.msra.mxu0 0.0
        %614 = vmatprep.subr.mxu0 0.0
        %615 = vmatpush1.msra.mxu0 0.0
        %616 = vmatprep.subr.mxu0 0.0
        %617 = vmatpush1.msra.mxu0 0.0
        %618 = vmatprep.subr.mxu0 0.0
        %619 = vmatpush1.msra.mxu0 0.0
        %620 = vmatprep.subr.mxu0 0.0
        %621 = vmatpush1.msra.mxu0 0.0
        %622 = vmatprep.subr.mxu0 0.0
        %623 = vmatpush1.msra.mxu0 0.0
        %624 = vmatprep.subr.mxu0 0.0
        %625 = vmatpush1.msra.mxu0 0.0
        %626 = vmatprep.subr.mxu0 0.0
        %627 = vmatpush1.msra.mxu0 0.0
        %628 = vmatprep.subr.mxu0 0.0
        %629 = vmatpush1.msra.mxu0 0.0
        %630 = vmatprep.subr.mxu0 0.0
        %631 = vmatpush1.msra.mxu0 0.0
        %632 = vmatprep.subr.mxu0 0.0
        %633 = vmatpush1.msra.mxu0 0.0
        %634 = vmatprep.subr.mxu0 0.0
        %635 = vmatpush1.msra.mxu0 0.0
        %636 = vmatprep.subr.mxu0 0.0
        %637 = vmatpush1.msra.mxu0 0.0
        %638 = vmatprep.subr.mxu0 0.0
        %639 = vmatpush1.msra.mxu0 0.0
        %640 = vmatprep.subr.mxu0 0.0
        %641 = vmatpush1.msra.mxu0 0.0
        %642 = vmatprep.subr.mxu0 0.0
        %643 = vmatpush1.msra.mxu0 0.0
        %644 = vmatprep.subr.mxu0 0.0
        %645 = vmatpush1.msra.mxu0 0.0
        %646 = vmatprep.subr.mxu0 0.0
        %647 = vmatpush1.msra.mxu0 0.0
        %648 = vmatprep.mubr.f32.mxu0 0.0
        %649 = vmatmul.mubr.f32.gmra.mrb[0].mxu0 %v561
        %v650 = vpop.f32.mrb[0].mxu0
        %v651 = vadd.f32 %v522, %v650
        %v652 = vpop.f32.mrb[0].mxu0
        %653 = vmatprep.mubr.f32.mxu0 0.0
        %654 = vmatmul.mubr.f32.gmra.mrb[0].mxu0 %v564
        %v655 = vpop.f32.mrb[0].mxu0
        %v656 = vadd.f32 %v527, %v655
        %v657 = vpop.f32.mrb[0].mxu0
        %658 = vmatprep.mubr.f32.mxu0 0.0
        %659 = vmatmul.mubr.f32.gmra.mrb[0].mxu0 %v567
        %v660 = vpop.f32.mrb[0].mxu0
        %v661 = vadd.f32 %v532, %v660
        %v662 = vpop.f32.mrb[0].mxu0
        %663 = vmatprep.mubr.f32.mxu0 0.0
        %664 = vmatmul.mubr.f32.gmra.mrb[0].mxu0 %v570
        %v665 = vpop.f32.mrb[0].mxu0
        %v666 = vadd.f32 %v537, %v665
        %v667 = vpop.f32.mrb[0].mxu0
        %668 = vmatprep.mubr.f32.mxu0 0.0
        %669 = vmatmul.mubr.f32.gmra.mrb[0].mxu0 %v573
        %v670 = vpop.f32.mrb[0].mxu0
        %v671 = vadd.f32 %v542, %v670
        %v672 = vpop.f32.mrb[0].mxu0
        %673 = vmatprep.mubr.f32.mxu0 0.0
        %674 = vmatmul.mubr.f32.gmra.mrb[0].mxu0 %v576
        %v675 = vpop.f32.mrb[0].mxu0
        %v676 = vadd.f32 %v547, %v675
        %v677 = vpop.f32.mrb[0].mxu0
        %678 = vmatprep.mubr.f32.mxu0 0.0
        %679 = vmatmul.mubr.f32.gmra.mrb[0].mxu0 %v579
        %v680 = vpop.f32.mrb[0].mxu0
        %v681 = vadd.f32 %v552, %v680
        %v682 = vpop.f32.mrb[0].mxu0
        %683 = vmatprep.mubr.f32.mxu0 0.0
        %684 = vmatmul.mubr.f32.gmra.mrb[0].mxu0 %v582
        %v685 = vpop.f32.mrb[0].mxu0
        %v686 = vadd.f32 %v557, %v685
        %v687 = vpop.f32.mrb[0].mxu0
        %688 = vdwg.mxu0
        %v689 = vld [vmem:[#allocation2 + $0x2] sm:$0xff]
        %v690 = vld [vmem:[#allocation2 + $0xa] sm:$0xff]
        %v691 = vld [vmem:[#allocation2 + $0x1a] sm:$0xff]
        %v692 = vld [vmem:[#allocation2 + $0x22] sm:$0xff]
        %v693 = vld [vmem:[#allocation2 + $0x32] sm:$0xff]
        %v694 = vld [vmem:[#allocation2 + $0x3a] sm:$0xff]
        %v695 = vld [vmem:[#allocation2 + $0x4a] sm:$0xff]
        %v696 = vld [vmem:[#allocation2 + $0x52] sm:$0xff]
        %s697 = scalar_lea.vmem [#allocation7], 32
        %v698 = vld [vmem:[%s697] sm:$0xff]
        %v699 = vld [vmem:[%s697 + $0x8] sm:$0xff]
        %v701 = vsel %vm401, %v689, 0
        %v704 = vsel %vm401, %v690, 0
        %v707 = vsel %vm401, %v691, 0
        %v710 = vsel %vm401, %v692, 0
        %v713 = vsel %vm401, %v693, 0
        %v716 = vsel %vm401, %v694, 0
        %v719 = vsel %vm401, %v695, 0
        %v722 = vsel %vm401, %v696, 0
        %724 = vmatprep.subr.mxu0 0.0
        %725 = vmatpush1.msra.mxu0 %v698
        %726 = vmatprep.subr.mxu0 0.0
        %727 = vmatpush1.msra.mxu0 %v699
        %728 = vmatprep.subr.mxu0 0.0
        %729 = vmatpush1.msra.mxu0 0.0
        %730 = vmatprep.subr.mxu0 0.0
        %731 = vmatpush1.msra.mxu0 0.0
        %732 = vmatprep.subr.mxu0 0.0
        %733 = vmatpush1.msra.mxu0 0.0
        %734 = vmatprep.subr.mxu0 0.0
        %735 = vmatpush1.msra.mxu0 0.0
        %736 = vmatprep.subr.mxu0 0.0
        %737 = vmatpush1.msra.mxu0 0.0
        %738 = vmatprep.subr.mxu0 0.0
        %739 = vmatpush1.msra.mxu0 0.0
        %740 = vmatprep.subr.mxu0 0.0
        %741 = vmatpush1.msra.mxu0 0.0
        %742 = vmatprep.subr.mxu0 0.0
        %743 = vmatpush1.msra.mxu0 0.0
        %744 = vmatprep.subr.mxu0 0.0
        %745 = vmatpush1.msra.mxu0 0.0
        %746 = vmatprep.subr.mxu0 0.0
        %747 = vmatpush1.msra.mxu0 0.0
        %748 = vmatprep.subr.mxu0 0.0
        %749 = vmatpush1.msra.mxu0 0.0
        %750 = vmatprep.subr.mxu0 0.0
        %751 = vmatpush1.msra.mxu0 0.0
        %752 = vmatprep.subr.mxu0 0.0
        %753 = vmatpush1.msra.mxu0 0.0
        %754 = vmatprep.subr.mxu0 0.0
        %755 = vmatpush1.msra.mxu0 0.0
        %756 = vmatprep.subr.mxu0 0.0
        %757 = vmatpush1.msra.mxu0 0.0
        %758 = vmatprep.subr.mxu0 0.0
        %759 = vmatpush1.msra.mxu0 0.0
        %760 = vmatprep.subr.mxu0 0.0
        %761 = vmatpush1.msra.mxu0 0.0
        %762 = vmatprep.subr.mxu0 0.0
        %763 = vmatpush1.msra.mxu0 0.0
        %764 = vmatprep.subr.mxu0 0.0
        %765 = vmatpush1.msra.mxu0 0.0
        %766 = vmatprep.subr.mxu0 0.0
        %767 = vmatpush1.msra.mxu0 0.0
        %768 = vmatprep.subr.mxu0 0.0
        %769 = vmatpush1.msra.mxu0 0.0
        %770 = vmatprep.subr.mxu0 0.0
        %771 = vmatpush1.msra.mxu0 0.0
        %772 = vmatprep.subr.mxu0 0.0
        %773 = vmatpush1.msra.mxu0 0.0
        %774 = vmatprep.subr.mxu0 0.0
        %775 = vmatpush1.msra.mxu0 0.0
        %776 = vmatprep.subr.mxu0 0.0
        %777 = vmatpush1.msra.mxu0 0.0
        %778 = vmatprep.subr.mxu0 0.0
        %779 = vmatpush1.msra.mxu0 0.0
        %780 = vmatprep.subr.mxu0 0.0
        %781 = vmatpush1.msra.mxu0 0.0
        %782 = vmatprep.subr.mxu0 0.0
        %783 = vmatpush1.msra.mxu0 0.0
        %784 = vmatprep.subr.mxu0 0.0
        %785 = vmatpush1.msra.mxu0 0.0
        %786 = vmatprep.subr.mxu0 0.0
        %787 = vmatpush1.msra.mxu0 0.0
        %788 = vmatprep.mubr.f32.mxu0 0.0
        %789 = vmatmul.mubr.f32.gmra.mrb[0].mxu0 %v701
        %v790 = vpop.f32.mrb[0].mxu0
        %v791 = vadd.f32 0.0, %v790
        %v792 = vpop.f32.mrb[0].mxu0
        %793 = vmatprep.mubr.f32.mxu0 0.0
        %794 = vmatmul.mubr.f32.gmra.mrb[0].mxu0 %v704
        %v795 = vpop.f32.mrb[0].mxu0
        %v796 = vadd.f32 0.0, %v795
        %v797 = vpop.f32.mrb[0].mxu0
        %798 = vmatprep.mubr.f32.mxu0 0.0
        %799 = vmatmul.mubr.f32.gmra.mrb[0].mxu0 %v707
        %v800 = vpop.f32.mrb[0].mxu0
        %v801 = vadd.f32 0.0, %v800
        %v802 = vpop.f32.mrb[0].mxu0
        %803 = vmatprep.mubr.f32.mxu0 0.0
        %804 = vmatmul.mubr.f32.gmra.mrb[0].mxu0 %v710
        %v805 = vpop.f32.mrb[0].mxu0
        %v806 = vadd.f32 0.0, %v805
        %v807 = vpop.f32.mrb[0].mxu0
        %808 = vmatprep.mubr.f32.mxu0 0.0
        %809 = vmatmul.mubr.f32.gmra.mrb[0].mxu0 %v713
        %v810 = vpop.f32.mrb[0].mxu0
        %v811 = vadd.f32 0.0, %v810
        %v812 = vpop.f32.mrb[0].mxu0
        %813 = vmatprep.mubr.f32.mxu0 0.0
        %814 = vmatmul.mubr.f32.gmra.mrb[0].mxu0 %v716
        %v815 = vpop.f32.mrb[0].mxu0
        %v816 = vadd.f32 0.0, %v815
        %v817 = vpop.f32.mrb[0].mxu0
        %818 = vmatprep.mubr.f32.mxu0 0.0
        %819 = vmatmul.mubr.f32.gmra.mrb[0].mxu0 %v719
        %v820 = vpop.f32.mrb[0].mxu0
        %v821 = vadd.f32 0.0, %v820
        %v822 = vpop.f32.mrb[0].mxu0
        %823 = vmatprep.mubr.f32.mxu0 0.0
        %824 = vmatmul.mubr.f32.gmra.mrb[0].mxu0 %v722
        %v825 = vpop.f32.mrb[0].mxu0
        %v826 = vadd.f32 0.0, %v825
        %v827 = vpop.f32.mrb[0].mxu0
        %828 = vdwg.mxu0
        %v829 = vadd.f32 %v651, %v791
        %v830 = vadd.f32 %v656, %v796
        %v831 = vadd.f32 %v661, %v801
        %v832 = vadd.f32 %v666, %v806
        %v833 = vadd.f32 %v671, %v811
        %v834 = vadd.f32 %v676, %v816
        %v835 = vadd.f32 %v681, %v821
        %v836 = vadd.f32 %v686, %v826
        %v837 = vlaneseq
        %v838 = vshrl.u32 %v837, 7
        %v839 = vsub.s32 0, %v838
        %v840 = vrot.slane %v378, %v839
        %v841 = vadd.f32 %v829, %v840
        %v842 = vadd.f32 %v830, %v840
        %v843 = vadd.f32 %v831, %v840
        %v844 = vadd.f32 %v832, %v840
        %v845 = vadd.f32 %v833, %v840
        %v846 = vadd.f32 %v834, %v840
        %v847 = vadd.f32 %v835, %v840
        %v848 = vadd.f32 %v836, %v840
        %vm849 = vcmask 261120
        %v850 = vsel %vm849, %v841, 0.0
        %v851 = vsel %vm849, %v842, 0.0
        %v852 = vadd.f32 %v850, %v851
        %v853 = vrot.slane %v852, 4
        %v854 = vadd.f32 %v852, %v853
        %v855 = vrot.slane %v854, 2
        %v856 = vadd.f32 %v854, %v855
        %v857 = vrot.slane %v856, 1
        %v858 = vadd.f32 %v856, %v857
        %v859 = vsel %vm849, %v843, 0.0
        %v860 = vsel %vm849, %v844, 0.0
        %v861 = vadd.f32 %v859, %v860
        %v862 = vrot.slane %v861, 4
        %v863 = vadd.f32 %v861, %v862
        %v864 = vrot.slane %v863, 2
        %v865 = vadd.f32 %v863, %v864
        %v866 = vrot.slane %v865, 1
        %v867 = vadd.f32 %v865, %v866
        %v868 = vsel %vm849, %v845, 0.0
        %v869 = vsel %vm849, %v846, 0.0
        %v870 = vadd.f32 %v868, %v869
        %v871 = vrot.slane %v870, 4
        %v872 = vadd.f32 %v870, %v871
        %v873 = vrot.slane %v872, 2
        %v874 = vadd.f32 %v872, %v873
        %v875 = vrot.slane %v874, 1
        %v876 = vadd.f32 %v874, %v875
        %v877 = vsel %vm849, %v847, 0.0
        %v878 = vsel %vm849, %v848, 0.0
        %v879 = vadd.f32 %v877, %v878
        %v880 = vrot.slane %v879, 4
        %v881 = vadd.f32 %v879, %v880
        %v882 = vrot.slane %v881, 2
        %v883 = vadd.f32 %v881, %v882
        %v884 = vrot.slane %v883, 1
        %v885 = vadd.f32 %v883, %v884
        %vm890 = vcmask 1041409
        %v891 = vsel %vm890, %v867, %v858
        %vm892 = vcmask 1042434
        %v893 = vsel %vm892, %v876, %v891
        %vm894 = vcmask 1043459
        %v895 = vsel %vm894, %v885, %v893
        %v896 = vsel %vm849, %v895, 0
        %898 = vmatprep.subr.mxu0 0.0
        %899 = vmatpush1.msra.mxu0 %v379
        %900 = vmatprep.subr.mxu0 0.0
        %901 = vmatpush1.msra.mxu0 %v380
        %902 = vmatprep.subr.mxu0 0.0
        %903 = vmatpush1.msra.mxu0 %v381
        %904 = vmatprep.subr.mxu0 0.0
        %905 = vmatpush1.msra.mxu0 %v382
        %906 = vmatprep.subr.mxu0 0.0
        %907 = vmatpush1.msra.mxu0 0.0
        %908 = vmatprep.subr.mxu0 0.0
        %909 = vmatpush1.msra.mxu0 0.0
        %910 = vmatprep.subr.mxu0 0.0
        %911 = vmatpush1.msra.mxu0 0.0
        %912 = vmatprep.subr.mxu0 0.0
        %913 = vmatpush1.msra.mxu0 0.0
        %914 = vmatprep.subr.mxu0 0.0
        %915 = vmatpush1.msra.mxu0 0.0
        %916 = vmatprep.subr.mxu0 0.0
        %917 = vmatpush1.msra.mxu0 0.0
        %918 = vmatprep.subr.mxu0 0.0
        %919 = vmatpush1.msra.mxu0 0.0
        %920 = vmatprep.subr.mxu0 0.0
        %921 = vmatpush1.msra.mxu0 0.0
        %922 = vmatprep.subr.mxu0 0.0
        %923 = vmatpush1.msra.mxu0 0.0
        %924 = vmatprep.subr.mxu0 0.0
        %925 = vmatpush1.msra.mxu0 0.0
        %926 = vmatprep.subr.mxu0 0.0
        %927 = vmatpush1.msra.mxu0 0.0
        %928 = vmatprep.subr.mxu0 0.0
        %929 = vmatpush1.msra.mxu0 0.0
        %930 = vmatprep.subr.mxu0 0.0
        %931 = vmatpush1.msra.mxu0 0.0
        %932 = vmatprep.subr.mxu0 0.0
        %933 = vmatpush1.msra.mxu0 0.0
        %934 = vmatprep.subr.mxu0 0.0
        %935 = vmatpush1.msra.mxu0 0.0
        %936 = vmatprep.subr.mxu0 0.0
        %937 = vmatpush1.msra.mxu0 0.0
        %938 = vmatprep.subr.mxu0 0.0
        %939 = vmatpush1.msra.mxu0 0.0
        %940 = vmatprep.subr.mxu0 0.0
        %941 = vmatpush1.msra.mxu0 0.0
        %942 = vmatprep.subr.mxu0 0.0
        %943 = vmatpush1.msra.mxu0 0.0
        %944 = vmatprep.subr.mxu0 0.0
        %945 = vmatpush1.msra.mxu0 0.0
        %946 = vmatprep.subr.mxu0 0.0
        %947 = vmatpush1.msra.mxu0 0.0
        %948 = vmatprep.subr.mxu0 0.0
        %949 = vmatpush1.msra.mxu0 0.0
        %950 = vmatprep.subr.mxu0 0.0
        %951 = vmatpush1.msra.mxu0 0.0
        %952 = vmatprep.subr.mxu0 0.0
        %953 = vmatpush1.msra.mxu0 0.0
        %954 = vmatprep.subr.mxu0 0.0
        %955 = vmatpush1.msra.mxu0 0.0
        %956 = vmatprep.subr.mxu0 0.0
        %957 = vmatpush1.msra.mxu0 0.0
        %958 = vmatprep.subr.mxu0 0.0
        %959 = vmatpush1.msra.mxu0 0.0
        %960 = vmatprep.subr.mxu0 0.0
        %961 = vmatpush1.msra.mxu0 0.0
        %962 = vmatprep.mubr.f32.mxu0 0.0
        %963 = vmatmul.mubr.f32.gmra.mrb[0].mxu0 %v896
        %v964 = vpop.f32.mrb[0].mxu0
        %v965 = vadd.f32 0.0, %v964
        %v966 = vpop.f32.mrb[0].mxu0
        %967 = vdwg.mxu0
        %v968 = vmul.f32 %v965, 0.015625
        %vm969 = vcmask 64512
        %v971 = vsel %vm969, %v968, 0
        %973 = vmatprep.subr.mxu0 0.0
        %974 = vmatpush1.msra.mxu0 %v383
        %975 = vmatprep.subr.mxu0 0.0
        %976 = vmatpush1.msra.mxu0 0.0
        %977 = vmatprep.subr.mxu0 0.0
        %978 = vmatpush1.msra.mxu0 0.0
        %979 = vmatprep.subr.mxu0 0.0
        %980 = vmatpush1.msra.mxu0 0.0
        %981 = vmatprep.subr.mxu0 0.0
        %982 = vmatpush1.msra.mxu0 0.0
        %983 = vmatprep.subr.mxu0 0.0
        %984 = vmatpush1.msra.mxu0 0.0
        %985 = vmatprep.subr.mxu0 0.0
        %986 = vmatpush1.msra.mxu0 0.0
        %987 = vmatprep.subr.mxu0 0.0
        %988 = vmatpush1.msra.mxu0 0.0
        %989 = vmatprep.subr.mxu0 0.0
        %990 = vmatpush1.msra.mxu0 0.0
        %991 = vmatprep.subr.mxu0 0.0
        %992 = vmatpush1.msra.mxu0 0.0
        %993 = vmatprep.subr.mxu0 0.0
        %994 = vmatpush1.msra.mxu0 0.0
        %995 = vmatprep.subr.mxu0 0.0
        %996 = vmatpush1.msra.mxu0 0.0
        %997 = vmatprep.subr.mxu0 0.0
        %998 = vmatpush1.msra.mxu0 0.0
        %999 = vmatprep.subr.mxu0 0.0
        %1000 = vmatpush1.msra.mxu0 0.0
        %1001 = vmatprep.subr.mxu0 0.0
        %1002 = vmatpush1.msra.mxu0 0.0
        %1003 = vmatprep.subr.mxu0 0.0
        %1004 = vmatpush1.msra.mxu0 0.0
        %1005 = vmatprep.subr.mxu0 0.0
        %1006 = vmatpush1.msra.mxu0 0.0
        %1007 = vmatprep.subr.mxu0 0.0
        %1008 = vmatpush1.msra.mxu0 0.0
        %1009 = vmatprep.subr.mxu0 0.0
        %1010 = vmatpush1.msra.mxu0 0.0
        %1011 = vmatprep.subr.mxu0 0.0
        %1012 = vmatpush1.msra.mxu0 0.0
        %1013 = vmatprep.subr.mxu0 0.0
        %1014 = vmatpush1.msra.mxu0 0.0
        %1015 = vmatprep.subr.mxu0 0.0
        %1016 = vmatpush1.msra.mxu0 0.0
        %1017 = vmatprep.subr.mxu0 0.0
        %1018 = vmatpush1.msra.mxu0 0.0
        %1019 = vmatprep.subr.mxu0 0.0
        %1020 = vmatpush1.msra.mxu0 0.0
        %1021 = vmatprep.subr.mxu0 0.0
        %1022 = vmatpush1.msra.mxu0 0.0
        %1023 = vmatprep.subr.mxu0 0.0
        %1024 = vmatpush1.msra.mxu0 0.0
        %1025 = vmatprep.subr.mxu0 0.0
        %1026 = vmatpush1.msra.mxu0 0.0
        %1027 = vmatprep.subr.mxu0 0.0
        %1028 = vmatpush1.msra.mxu0 0.0
        %1029 = vmatprep.subr.mxu0 0.0
        %1030 = vmatpush1.msra.mxu0 0.0
        %1031 = vmatprep.subr.mxu0 0.0
        %1032 = vmatpush1.msra.mxu0 0.0
        %1033 = vmatprep.subr.mxu0 0.0
        %1034 = vmatpush1.msra.mxu0 0.0
        %1035 = vmatprep.subr.mxu0 0.0
        %1036 = vmatpush1.msra.mxu0 0.0
        %1037 = vmatprep.mubr.f32.mxu0 0.0
        %1038 = vmatmul.mubr.f32.gmra.mrb[0].mxu0 %v971
        %v1039 = vpop.f32.mrb[0].mxu0
        %v1040 = vadd.f32 0.0, %v1039
        %v1041 = vpop.f32.mrb[0].mxu0
        %1042 = vdwg.mxu0
        %v1045 = vunpack.c.l.s4 1966171168
        %v1046 = vunpack.c.0.s8 %v1045
        %v1047 = vlaneseq
        %v1048 = vshrl.u32 %v1047, 7
        %v1049 = vsub.s32 %v1046, %v1048
        %v1050 = vrot.slane %v1040, %v1049
        %v1051 = vcombine.high %v1050, %v1050
        %v1053 = vunpack.c.l.s4 1966171168
        %v1054 = vunpack.c.0.s8 %v1053
        %v1055 = vlaneseq
        %v1056 = vshrl.u32 %v1055, 7
        %v1057 = vsub.s32 %v1054, %v1056
        %v1058 = vrot.slane %v1050, %v1057
        %v1060 = vunpack.c.l.s4 1966171168
        %v1061 = vunpack.c.0.s8 %v1060
        %v1062 = vlaneseq
        %v1063 = vshrl.u32 %v1062, 7
        %v1064 = vsub.s32 %v1061, %v1063
        %v1065 = vrot.slane %v1051, %v1064
        %v1066 = vcombine.high %v1058, %v1058
        %v1067 = vcombine.high %v1065, %v1065
        %v1068 = vlaneseq
        %v1069 = vshrl.u32 %v1068, 7
        %v1070 = vsub.s32 0, %v1069
        %v1071 = vrot.slane %v1058, %v1070
        %v1072 = vlaneseq
        %v1073 = vshrl.u32 %v1072, 7
        %v1074 = vsub.s32 0, %v1073
        %v1075 = vrot.slane %v1065, %v1074
        %v1076 = vlaneseq
        %v1077 = vshrl.u32 %v1076, 7
        %v1078 = vsub.s32 0, %v1077
        %v1079 = vrot.slane %v1066, %v1078
        %v1080 = vlaneseq
        %v1081 = vshrl.u32 %v1080, 7
        %v1082 = vsub.s32 0, %v1081
        %v1083 = vrot.slane %v1067, %v1082
        %v1088 = vsub.f32 %v841, %v1071
        %v1089 = vsub.f32 %v842, %v1071
        %v1090 = vsub.f32 %v843, %v1075
        %v1091 = vsub.f32 %v844, %v1075
        %v1092 = vsub.f32 %v845, %v1079
        %v1093 = vsub.f32 %v846, %v1079
        %v1094 = vsub.f32 %v847, %v1083
        %v1095 = vsub.f32 %v848, %v1083
        %v1096 = vmul.f32 %v1088, %v1088
        %v1097 = vmul.f32 %v1089, %v1089
        %v1098 = vmul.f32 %v1090, %v1090
        %v1099 = vmul.f32 %v1091, %v1091
        %v1100 = vmul.f32 %v1092, %v1092
        %v1101 = vmul.f32 %v1093, %v1093
        %v1102 = vmul.f32 %v1094, %v1094
        %v1103 = vmul.f32 %v1095, %v1095
        %v1104 = vsel %vm849, %v1096, 0.0
        %v1105 = vsel %vm849, %v1097, 0.0
        %v1106 = vadd.f32 %v1104, %v1105
        %v1107 = vrot.slane %v1106, 4
        %v1108 = vadd.f32 %v1106, %v1107
        %v1109 = vrot.slane %v1108, 2
        %v1110 = vadd.f32 %v1108, %v1109
        %v1111 = vrot.slane %v1110, 1
        %v1112 = vadd.f32 %v1110, %v1111
        %v1113 = vsel %vm849, %v1098, 0.0
        %v1114 = vsel %vm849, %v1099, 0.0
        %v1115 = vadd.f32 %v1113, %v1114
        %v1116 = vrot.slane %v1115, 4
        %v1117 = vadd.f32 %v1115, %v1116
        %v1118 = vrot.slane %v1117, 2
        %v1119 = vadd.f32 %v1117, %v1118
        %v1120 = vrot.slane %v1119, 1
        %v1121 = vadd.f32 %v1119, %v1120
        %v1122 = vsel %vm849, %v1100, 0.0
        %v1123 = vsel %vm849, %v1101, 0.0
        %v1124 = vadd.f32 %v1122, %v1123
        %v1125 = vrot.slane %v1124, 4
        %v1126 = vadd.f32 %v1124, %v1125
        %v1127 = vrot.slane %v1126, 2
        %v1128 = vadd.f32 %v1126, %v1127
        %v1129 = vrot.slane %v1128, 1
        %v1130 = vadd.f32 %v1128, %v1129
        %v1131 = vsel %vm849, %v1102, 0.0
        %v1132 = vsel %vm849, %v1103, 0.0
        %v1133 = vadd.f32 %v1131, %v1132
        %v1134 = vrot.slane %v1133, 4
        %v1135 = vadd.f32 %v1133, %v1134
        %v1136 = vrot.slane %v1135, 2
        %v1137 = vadd.f32 %v1135, %v1136
        %v1138 = vrot.slane %v1137, 1
        %v1139 = vadd.f32 %v1137, %v1138
        %v1144 = vsel %vm890, %v1121, %v1112
        %v1145 = vsel %vm892, %v1130, %v1144
        %v1146 = vsel %vm894, %v1139, %v1145
        %v1147 = vsel %vm849, %v1146, 0
        %1149 = vmatprep.subr.mxu0 0.0
        %1150 = vmatpush1.msra.mxu0 %v379
        %1151 = vmatprep.subr.mxu0 0.0
        %1152 = vmatpush1.msra.mxu0 %v380
        %1153 = vmatprep.subr.mxu0 0.0
        %1154 = vmatpush1.msra.mxu0 %v381
        %1155 = vmatprep.subr.mxu0 0.0
        %1156 = vmatpush1.msra.mxu0 %v382
        %1157 = vmatprep.subr.mxu0 0.0
        %1158 = vmatpush1.msra.mxu0 0.0
        %1159 = vmatprep.subr.mxu0 0.0
        %1160 = vmatpush1.msra.mxu0 0.0
        %1161 = vmatprep.subr.mxu0 0.0
        %1162 = vmatpush1.msra.mxu0 0.0
        %1163 = vmatprep.subr.mxu0 0.0
        %1164 = vmatpush1.msra.mxu0 0.0
        %1165 = vmatprep.subr.mxu0 0.0
        %1166 = vmatpush1.msra.mxu0 0.0
        %1167 = vmatprep.subr.mxu0 0.0
        %1168 = vmatpush1.msra.mxu0 0.0
        %1169 = vmatprep.subr.mxu0 0.0
        %1170 = vmatpush1.msra.mxu0 0.0
        %1171 = vmatprep.subr.mxu0 0.0
        %1172 = vmatpush1.msra.mxu0 0.0
        %1173 = vmatprep.subr.mxu0 0.0
        %1174 = vmatpush1.msra.mxu0 0.0
        %1175 = vmatprep.subr.mxu0 0.0
        %1176 = vmatpush1.msra.mxu0 0.0
        %1177 = vmatprep.subr.mxu0 0.0
        %1178 = vmatpush1.msra.mxu0 0.0
        %1179 = vmatprep.subr.mxu0 0.0
        %1180 = vmatpush1.msra.mxu0 0.0
        %1181 = vmatprep.subr.mxu0 0.0
        %1182 = vmatpush1.msra.mxu0 0.0
        %1183 = vmatprep.subr.mxu0 0.0
        %1184 = vmatpush1.msra.mxu0 0.0
        %1185 = vmatprep.subr.mxu0 0.0
        %1186 = vmatpush1.msra.mxu0 0.0
        %1187 = vmatprep.subr.mxu0 0.0
        %1188 = vmatpush1.msra.mxu0 0.0
        %1189 = vmatprep.subr.mxu0 0.0
        %1190 = vmatpush1.msra.mxu0 0.0
        %1191 = vmatprep.subr.mxu0 0.0
        %1192 = vmatpush1.msra.mxu0 0.0
        %1193 = vmatprep.subr.mxu0 0.0
        %1194 = vmatpush1.msra.mxu0 0.0
        %1195 = vmatprep.subr.mxu0 0.0
        %1196 = vmatpush1.msra.mxu0 0.0
        %1197 = vmatprep.subr.mxu0 0.0
        %1198 = vmatpush1.msra.mxu0 0.0
        %1199 = vmatprep.subr.mxu0 0.0
        %1200 = vmatpush1.msra.mxu0 0.0
        %1201 = vmatprep.subr.mxu0 0.0
        %1202 = vmatpush1.msra.mxu0 0.0
        %1203 = vmatprep.subr.mxu0 0.0
        %1204 = vmatpush1.msra.mxu0 0.0
        %1205 = vmatprep.subr.mxu0 0.0
        %1206 = vmatpush1.msra.mxu0 0.0
        %1207 = vmatprep.subr.mxu0 0.0
        %1208 = vmatpush1.msra.mxu0 0.0
        %1209 = vmatprep.subr.mxu0 0.0
        %1210 = vmatpush1.msra.mxu0 0.0
        %1211 = vmatprep.subr.mxu0 0.0
        %1212 = vmatpush1.msra.mxu0 0.0
        %1213 = vmatprep.mubr.f32.mxu0 0.0
        %1214 = vmatmul.mubr.f32.gmra.mrb[0].mxu0 %v1147
        %v1215 = vpop.f32.mrb[0].mxu0
        %v1216 = vadd.f32 0.0, %v1215
        %v1217 = vpop.f32.mrb[0].mxu0
        %1218 = vdwg.mxu0
        %v1219 = vmul.f32 %v1216, 0.015625
        %v1220 = vadd.f32 %v1219, 1e-05
        %v1221 = vrsqrt.pop %v1220
        %v1223 = vsel %vm969, %v1221, 0
        %1225 = vmatprep.subr.mxu0 0.0
        %1226 = vmatpush1.msra.mxu0 %v383
        %1227 = vmatprep.subr.mxu0 0.0
        %1228 = vmatpush1.msra.mxu0 0.0
        %1229 = vmatprep.subr.mxu0 0.0
        %1230 = vmatpush1.msra.mxu0 0.0
        %1231 = vmatprep.subr.mxu0 0.0
        %1232 = vmatpush1.msra.mxu0 0.0
        %1233 = vmatprep.subr.mxu0 0.0
        %1234 = vmatpush1.msra.mxu0 0.0
        %1235 = vmatprep.subr.mxu0 0.0
        %1236 = vmatpush1.msra.mxu0 0.0
        %1237 = vmatprep.subr.mxu0 0.0
        %1238 = vmatpush1.msra.mxu0 0.0
        %1239 = vmatprep.subr.mxu0 0.0
        %1240 = vmatpush1.msra.mxu0 0.0
        %1241 = vmatprep.subr.mxu0 0.0
        %1242 = vmatpush1.msra.mxu0 0.0
        %1243 = vmatprep.subr.mxu0 0.0
        %1244 = vmatpush1.msra.mxu0 0.0
        %1245 = vmatprep.subr.mxu0 0.0
        %1246 = vmatpush1.msra.mxu0 0.0
        %1247 = vmatprep.subr.mxu0 0.0
        %1248 = vmatpush1.msra.mxu0 0.0
        %1249 = vmatprep.subr.mxu0 0.0
        %1250 = vmatpush1.msra.mxu0 0.0
        %1251 = vmatprep.subr.mxu0 0.0
        %1252 = vmatpush1.msra.mxu0 0.0
        %1253 = vmatprep.subr.mxu0 0.0
        %1254 = vmatpush1.msra.mxu0 0.0
        %1255 = vmatprep.subr.mxu0 0.0
        %1256 = vmatpush1.msra.mxu0 0.0
        %1257 = vmatprep.subr.mxu0 0.0
        %1258 = vmatpush1.msra.mxu0 0.0
        %1259 = vmatprep.subr.mxu0 0.0
        %1260 = vmatpush1.msra.mxu0 0.0
        %1261 = vmatprep.subr.mxu0 0.0
        %1262 = vmatpush1.msra.mxu0 0.0
        %1263 = vmatprep.subr.mxu0 0.0
        %1264 = vmatpush1.msra.mxu0 0.0
        %1265 = vmatprep.subr.mxu0 0.0
        %1266 = vmatpush1.msra.mxu0 0.0
        %1267 = vmatprep.subr.mxu0 0.0
        %1268 = vmatpush1.msra.mxu0 0.0
        %1269 = vmatprep.subr.mxu0 0.0
        %1270 = vmatpush1.msra.mxu0 0.0
        %1271 = vmatprep.subr.mxu0 0.0
        %1272 = vmatpush1.msra.mxu0 0.0
        %1273 = vmatprep.subr.mxu0 0.0
        %1274 = vmatpush1.msra.mxu0 0.0
        %1275 = vmatprep.subr.mxu0 0.0
        %1276 = vmatpush1.msra.mxu0 0.0
        %1277 = vmatprep.subr.mxu0 0.0
        %1278 = vmatpush1.msra.mxu0 0.0
        %1279 = vmatprep.subr.mxu0 0.0
        %1280 = vmatpush1.msra.mxu0 0.0
        %1281 = vmatprep.subr.mxu0 0.0
        %1282 = vmatpush1.msra.mxu0 0.0
        %1283 = vmatprep.subr.mxu0 0.0
        %1284 = vmatpush1.msra.mxu0 0.0
        %1285 = vmatprep.subr.mxu0 0.0
        %1286 = vmatpush1.msra.mxu0 0.0
        %1287 = vmatprep.subr.mxu0 0.0
        %1288 = vmatpush1.msra.mxu0 0.0
        %1289 = vmatprep.mubr.f32.mxu0 0.0
        %1290 = vmatmul.mubr.f32.gmra.mrb[0].mxu0 %v1223
        %v1291 = vpop.f32.mrb[0].mxu0
        %v1292 = vadd.f32 0.0, %v1291
        %v1293 = vpop.f32.mrb[0].mxu0
        %1294 = vdwg.mxu0
        %v1295 = vlaneseq
        %v1296 = vshrl.u32 %v1295, 7
        %v1297 = vsub.s32 1, %v1296
        %v1298 = vrot.slane %v378, %v1297
        %v1299 = vmul.f32 %v1292, %v1298
        %v1302 = vunpack.c.l.s4 1966171168
        %v1303 = vunpack.c.0.s8 %v1302
        %v1304 = vlaneseq
        %v1305 = vshrl.u32 %v1304, 7
        %v1306 = vsub.s32 %v1303, %v1305
        %v1307 = vrot.slane %v1299, %v1306
        %v1308 = vcombine.high %v1307, %v1307
        %v1310 = vunpack.c.l.s4 1966171168
        %v1311 = vunpack.c.0.s8 %v1310
        %v1312 = vlaneseq
        %v1313 = vshrl.u32 %v1312, 7
        %v1314 = vsub.s32 %v1311, %v1313
        %v1315 = vrot.slane %v1307, %v1314
        %v1317 = vunpack.c.l.s4 1966171168
        %v1318 = vunpack.c.0.s8 %v1317
        %v1319 = vlaneseq
        %v1320 = vshrl.u32 %v1319, 7
        %v1321 = vsub.s32 %v1318, %v1320
        %v1322 = vrot.slane %v1308, %v1321
        %v1323 = vcombine.high %v1315, %v1315
        %v1324 = vcombine.high %v1322, %v1322
        %v1325 = vlaneseq
        %v1326 = vshrl.u32 %v1325, 7
        %v1327 = vsub.s32 0, %v1326
        %v1328 = vrot.slane %v1315, %v1327
        %v1329 = vlaneseq
        %v1330 = vshrl.u32 %v1329, 7
        %v1331 = vsub.s32 0, %v1330
        %v1332 = vrot.slane %v1322, %v1331
        %v1333 = vlaneseq
        %v1334 = vshrl.u32 %v1333, 7
        %v1335 = vsub.s32 0, %v1334
        %v1336 = vrot.slane %v1323, %v1335
        %v1337 = vlaneseq
        %v1338 = vshrl.u32 %v1337, 7
        %v1339 = vsub.s32 0, %v1338
        %v1340 = vrot.slane %v1324, %v1339
        %v1345 = vmul.f32 %v1088, %v1328
        %v1346 = vmul.f32 %v1089, %v1328
        %v1347 = vmul.f32 %v1090, %v1332
        %v1348 = vmul.f32 %v1091, %v1332
        %v1349 = vmul.f32 %v1092, %v1336
        %v1350 = vmul.f32 %v1093, %v1336
        %v1351 = vmul.f32 %v1094, %v1340
        %v1352 = vmul.f32 %v1095, %v1340
        %v1353 = vlaneseq
        %v1354 = vshrl.u32 %v1353, 7
        %v1355 = vsub.s32 2, %v1354
        %v1356 = vrot.slane %v378, %v1355
        %v1357 = vadd.f32 %v1345, %v1356
        %v1358 = vadd.f32 %v1346, %v1356
        %v1359 = vadd.f32 %v1347, %v1356
        %v1360 = vadd.f32 %v1348, %v1356
        %v1361 = vadd.f32 %v1349, %v1356
        %v1362 = vadd.f32 %v1350, %v1356
        %v1363 = vadd.f32 %v1351, %v1356
        %v1364 = vadd.f32 %v1352, %v1356
        %v1365 = vmin.f32 %v1357, 20.0
        %v1366 = vmin.f32 %v1358, 20.0
        %v1367 = vmin.f32 %v1359, 20.0
        %v1368 = vmin.f32 %v1360, 20.0
        %v1369 = vmin.f32 %v1361, 20.0
        %v1370 = vmin.f32 %v1362, 20.0
        %v1371 = vmin.f32 %v1363, 20.0
        %v1372 = vmin.f32 %v1364, 20.0
        %v1373 = vmul.f32 %v1365, 1.442695
        %v1374 = vpow.pop %v1373
        %v1375 = vmul.f32 %v1366, 1.442695
        %v1376 = vpow.pop %v1375
        %v1377 = vmul.f32 %v1367, 1.442695
        %v1378 = vpow.pop %v1377
        %v1379 = vmul.f32 %v1368, 1.442695
        %v1380 = vpow.pop %v1379
        %v1381 = vmul.f32 %v1369, 1.442695
        %v1382 = vpow.pop %v1381
        %v1383 = vmul.f32 %v1370, 1.442695
        %v1384 = vpow.pop %v1383
        %v1385 = vmul.f32 %v1371, 1.442695
        %v1386 = vpow.pop %v1385
        %v1387 = vmul.f32 %v1372, 1.442695
        %v1388 = vpow.pop %v1387
        %v1389 = vadd.f32 %v1374, 1.0
        %v1390 = vadd.f32 %v1376, 1.0
        %v1391 = vadd.f32 %v1378, 1.0
        %v1392 = vadd.f32 %v1380, 1.0
        %v1393 = vadd.f32 %v1382, 1.0
        %v1394 = vadd.f32 %v1384, 1.0
        %v1395 = vadd.f32 %v1386, 1.0
        %v1396 = vadd.f32 %v1388, 1.0
        %v1397 = vmul.f32 %v1389, %v1389
        %v1398 = vmul.f32 %v1390, %v1390
        %v1399 = vmul.f32 %v1391, %v1391
        %v1400 = vmul.f32 %v1392, %v1392
        %v1401 = vmul.f32 %v1393, %v1393
        %v1402 = vmul.f32 %v1394, %v1394
        %v1403 = vmul.f32 %v1395, %v1395
        %v1404 = vmul.f32 %v1396, %v1396
        %v1405 = vsub.f32 %v1397, 1.0
        %v1406 = vsub.f32 %v1398, 1.0
        %v1407 = vsub.f32 %v1399, 1.0
        %v1408 = vsub.f32 %v1400, 1.0
        %v1409 = vsub.f32 %v1401, 1.0
        %v1410 = vsub.f32 %v1402, 1.0
        %v1411 = vsub.f32 %v1403, 1.0
        %v1412 = vsub.f32 %v1404, 1.0
        %v1413 = vmul.f32 %v1357, %v1405
        %v1414 = vmul.f32 %v1358, %v1406
        %v1415 = vmul.f32 %v1359, %v1407
        %v1416 = vmul.f32 %v1360, %v1408
        %v1417 = vmul.f32 %v1361, %v1409
        %v1418 = vmul.f32 %v1362, %v1410
        %v1419 = vmul.f32 %v1363, %v1411
        %v1420 = vmul.f32 %v1364, %v1412
        %v1421 = vadd.f32 %v1397, 1.0
        %v1422 = vadd.f32 %v1398, 1.0
        %v1423 = vadd.f32 %v1399, 1.0
        %v1424 = vadd.f32 %v1400, 1.0
        %v1425 = vadd.f32 %v1401, 1.0
        %v1426 = vadd.f32 %v1402, 1.0
        %v1427 = vadd.f32 %v1403, 1.0
        %v1428 = vadd.f32 %v1404, 1.0
        %v1429 = vrcp.pop %v1421
        %v1430 = vrcp.pop %v1422
        %v1431 = vrcp.pop %v1423
        %v1432 = vrcp.pop %v1424
        %v1433 = vrcp.pop %v1425
        %v1434 = vrcp.pop %v1426
        %v1435 = vrcp.pop %v1427
        %v1436 = vrcp.pop %v1428
        %v1437 = vmul.f32 %v1413, %v1429
        %v1438 = vmul.f32 %v1414, %v1430
        %v1439 = vmul.f32 %v1415, %v1431
        %v1440 = vmul.f32 %v1416, %v1432
        %v1441 = vmul.f32 %v1417, %v1433
        %v1442 = vmul.f32 %v1418, %v1434
        %v1443 = vmul.f32 %v1419, %v1435
        %v1444 = vmul.f32 %v1420, %v1436
        %v1445 = vld [vmem:[%s375] sm:$0x3]
        %v1446 = vld [vmem:[%s375 + $0x2] sm:$0x3]
        %v1447 = vld [vmem:[%s375 + $0x4] sm:$0x3]
        %v1448 = vld [vmem:[%s375 + $0x6] sm:$0x3]
        %v1449 = vlaneseq
        %v1450 = vshrl.u32 %v1449, 7
        %v1451 = vsub.s32 0, %v1450
        %v1452 = vrot.slane %v1445, %v1451
        %v1453 = vlaneseq
        %v1454 = vshrl.u32 %v1453, 7
        %v1455 = vsub.s32 0, %v1454
        %v1456 = vrot.slane %v1446, %v1455
        %v1457 = vlaneseq
        %v1458 = vshrl.u32 %v1457, 7
        %v1459 = vsub.s32 0, %v1458
        %v1460 = vrot.slane %v1447, %v1459
        %v1461 = vlaneseq
        %v1462 = vshrl.u32 %v1461, 7
        %v1463 = vsub.s32 0, %v1462
        %v1464 = vrot.slane %v1448, %v1463
        %v1465 = vmul.f32 %v1452, %v1437
        %v1466 = vmul.f32 %v1452, %v1438
        %v1467 = vmul.f32 %v1456, %v1439
        %v1468 = vmul.f32 %v1456, %v1440
        %v1469 = vmul.f32 %v1460, %v1441
        %v1470 = vmul.f32 %v1460, %v1442
        %v1471 = vmul.f32 %v1464, %v1443
        %v1472 = vmul.f32 %v1464, %v1444
        %v1473 = vlaneseq
        %v1474 = vshrl.u32 %v1473, 7
        %v1475 = vsub.s32 1, %v1474
        %v1476 = vrot.slane %v1445, %v1475
        %v1477 = vlaneseq
        %v1478 = vshrl.u32 %v1477, 7
        %v1479 = vsub.s32 1, %v1478
        %v1480 = vrot.slane %v1446, %v1479
        %v1481 = vlaneseq
        %v1482 = vshrl.u32 %v1481, 7
        %v1483 = vsub.s32 1, %v1482
        %v1484 = vrot.slane %v1447, %v1483
        %v1485 = vlaneseq
        %v1486 = vshrl.u32 %v1485, 7
        %v1487 = vsub.s32 1, %v1486
        %v1488 = vrot.slane %v1448, %v1487
        %v1489 = vadd.f32 %v1465, %v1476
        %v1490 = vadd.f32 %v1466, %v1476
        %v1491 = vadd.f32 %v1467, %v1480
        %v1492 = vadd.f32 %v1468, %v1480
        %v1493 = vadd.f32 %v1469, %v1484
        %v1494 = vadd.f32 %v1470, %v1484
        %v1495 = vadd.f32 %v1471, %v1488
        %v1496 = vadd.f32 %v1472, %v1488
        %vm1497 = vcmask 253952
        %1498 = vst.msk [vmem:[#allocation3] sm:$0x1] %vm1497, 0.0
        %1499 = vst.msk [vmem:[#allocation3 + $0x18] sm:$0x1] %vm1497, 0.0
        %1500 = vst.msk [vmem:[#allocation3 + $0x30] sm:$0x1] %vm1497, 0.0
        %1501 = vst.msk [vmem:[#allocation3 + $0x48] sm:$0x1] %vm1497, 0.0
        %1502 = vst.msk [vmem:[#allocation3 + $0x11] sm:$0x1] %vm1497, 0.0
        %1503 = vst.msk [vmem:[#allocation3 + $0x29] sm:$0x1] %vm1497, 0.0
        %1504 = vst.msk [vmem:[#allocation3 + $0x41] sm:$0x1] %vm1497, 0.0
        %1505 = vst.msk [vmem:[#allocation3 + $0x59] sm:$0x1] %vm1497, 0.0
        %1506 = vst.msk [vmem:[#allocation3 + $0x1] sm:$0xff] %vm849, %v1489
        %1507 = vst.msk [vmem:[#allocation3 + $0x9] sm:$0xff] %vm849, %v1490
        %1508 = vst.msk [vmem:[#allocation3 + $0x19] sm:$0xff] %vm849, %v1491
        %1509 = vst.msk [vmem:[#allocation3 + $0x21] sm:$0xff] %vm849, %v1492
        %1510 = vst.msk [vmem:[#allocation3 + $0x31] sm:$0xff] %vm849, %v1493
        %1511 = vst.msk [vmem:[#allocation3 + $0x39] sm:$0xff] %vm849, %v1494
        %1512 = vst.msk [vmem:[#allocation3 + $0x49] sm:$0xff] %vm849, %v1495
        %1513 = vst.msk [vmem:[#allocation3 + $0x51] sm:$0xff] %vm849, %v1496
        %v1514 = vld [vmem:[#allocation3] sm:$0xff]
        %v1515 = vld [vmem:[#allocation3 + $0x8] sm:$0xff]
        %v1516 = vld [vmem:[#allocation3 + $0x18] sm:$0xff]
        %v1517 = vld [vmem:[#allocation3 + $0x20] sm:$0xff]
        %v1518 = vld [vmem:[#allocation3 + $0x30] sm:$0xff]
        %v1519 = vld [vmem:[#allocation3 + $0x38] sm:$0xff]
        %v1520 = vld [vmem:[#allocation3 + $0x48] sm:$0xff]
        %v1521 = vld [vmem:[#allocation3 + $0x50] sm:$0xff]
        %v1522 = vld [vmem:[#allocation9] sm:$0xff]
        %v1523 = vld [vmem:[#allocation9 + $0x8] sm:$0xff]
        %v1524 = vld [vmem:[#allocation9 + $0x10] sm:$0xff]
        %v1525 = vld [vmem:[#allocation9 + $0x18] sm:$0xff]
        %v1526 = vld [vmem:[#allocation3 + $0x1] sm:$0xff]
        %v1527 = vld [vmem:[#allocation3 + $0x9] sm:$0xff]
        %v1528 = vld [vmem:[#allocation3 + $0x19] sm:$0xff]
        %v1529 = vld [vmem:[#allocation3 + $0x21] sm:$0xff]
        %v1530 = vld [vmem:[#allocation3 + $0x31] sm:$0xff]
        %v1531 = vld [vmem:[#allocation3 + $0x39] sm:$0xff]
        %v1532 = vld [vmem:[#allocation3 + $0x49] sm:$0xff]
        %v1533 = vld [vmem:[#allocation3 + $0x51] sm:$0xff]
        %s1534 = scalar_lea.vmem [#allocation9], 32
        %v1535 = vld [vmem:[%s1534] sm:$0xff]
        %v1536 = vld [vmem:[%s1534 + $0x8] sm:$0xff]
        %v1537 = vld [vmem:[%s1534 + $0x10] sm:$0xff]
        %v1538 = vld [vmem:[%s1534 + $0x18] sm:$0xff]
        %v1540 = vsel %vm849, %v1526, 0
        %v1543 = vsel %vm849, %v1527, 0
        %v1546 = vsel %vm849, %v1528, 0
        %v1549 = vsel %vm849, %v1529, 0
        %v1552 = vsel %vm849, %v1530, 0
        %v1555 = vsel %vm849, %v1531, 0
        %v1558 = vsel %vm849, %v1532, 0
        %v1561 = vsel %vm849, %v1533, 0
        %1563 = vmatprep.subr.mxu0 0.0
        %1564 = vmatpush1.msra.mxu0 %v1535
        %1565 = vmatprep.subr.mxu0 0.0
        %1566 = vmatpush1.msra.mxu0 %v1536
        %1567 = vmatprep.subr.mxu0 0.0
        %1568 = vmatpush1.msra.mxu0 %v1537
        %1569 = vmatprep.subr.mxu0 0.0
        %1570 = vmatpush1.msra.mxu0 %v1538
        %1571 = vmatprep.subr.mxu0 0.0
        %1572 = vmatpush1.msra.mxu0 0.0
        %1573 = vmatprep.subr.mxu0 0.0
        %1574 = vmatpush1.msra.mxu0 0.0
        %1575 = vmatprep.subr.mxu0 0.0
        %1576 = vmatpush1.msra.mxu0 0.0
        %1577 = vmatprep.subr.mxu0 0.0
        %1578 = vmatpush1.msra.mxu0 0.0
        %1579 = vmatprep.subr.mxu0 0.0
        %1580 = vmatpush1.msra.mxu0 0.0
        %1581 = vmatprep.subr.mxu0 0.0
        %1582 = vmatpush1.msra.mxu0 0.0
        %1583 = vmatprep.subr.mxu0 0.0
        %1584 = vmatpush1.msra.mxu0 0.0
        %1585 = vmatprep.subr.mxu0 0.0
        %1586 = vmatpush1.msra.mxu0 0.0
        %1587 = vmatprep.subr.mxu0 0.0
        %1588 = vmatpush1.msra.mxu0 0.0
        %1589 = vmatprep.subr.mxu0 0.0
        %1590 = vmatpush1.msra.mxu0 0.0
        %1591 = vmatprep.subr.mxu0 0.0
        %1592 = vmatpush1.msra.mxu0 0.0
        %1593 = vmatprep.subr.mxu0 0.0
        %1594 = vmatpush1.msra.mxu0 0.0
        %1595 = vmatprep.subr.mxu0 0.0
        %1596 = vmatpush1.msra.mxu0 0.0
        %1597 = vmatprep.subr.mxu0 0.0
        %1598 = vmatpush1.msra.mxu0 0.0
        %1599 = vmatprep.subr.mxu0 0.0
        %1600 = vmatpush1.msra.mxu0 0.0
        %1601 = vmatprep.subr.mxu0 0.0
        %1602 = vmatpush1.msra.mxu0 0.0
        %1603 = vmatprep.subr.mxu0 0.0
        %1604 = vmatpush1.msra.mxu0 0.0
        %1605 = vmatprep.subr.mxu0 0.0
        %1606 = vmatpush1.msra.mxu0 0.0
        %1607 = vmatprep.subr.mxu0 0.0
        %1608 = vmatpush1.msra.mxu0 0.0
        %1609 = vmatprep.subr.mxu0 0.0
        %1610 = vmatpush1.msra.mxu0 0.0
        %1611 = vmatprep.subr.mxu0 0.0
        %1612 = vmatpush1.msra.mxu0 0.0
        %1613 = vmatprep.subr.mxu0 0.0
        %1614 = vmatpush1.msra.mxu0 0.0
        %1615 = vmatprep.subr.mxu0 0.0
        %1616 = vmatpush1.msra.mxu0 0.0
        %1617 = vmatprep.subr.mxu0 0.0
        %1618 = vmatpush1.msra.mxu0 0.0
        %1619 = vmatprep.subr.mxu0 0.0
        %1620 = vmatpush1.msra.mxu0 0.0
        %1621 = vmatprep.subr.mxu0 0.0
        %1622 = vmatpush1.msra.mxu0 0.0
        %1623 = vmatprep.subr.mxu0 0.0
        %1624 = vmatpush1.msra.mxu0 0.0
        %1625 = vmatprep.subr.mxu0 0.0
        %1626 = vmatpush1.msra.mxu0 0.0
        %1627 = vmatprep.mubr.f32.mxu0 0.0
        %1628 = vmatmul.mubr.f32.gmra.mrb[0].mxu0 %v1540
        %v1629 = vpop.f32.mrb[0].mxu0
        %v1630 = vadd.f32 0.0, %v1629
        %v1631 = vpop.f32.mrb[0].mxu0
        %1632 = vmatprep.mubr.f32.mxu0 0.0
        %1633 = vmatmul.mubr.f32.gmra.mrb[0].mxu0 %v1543
        %v1634 = vpop.f32.mrb[0].mxu0
        %v1635 = vadd.f32 0.0, %v1634
        %v1636 = vpop.f32.mrb[0].mxu0
        %1637 = vmatprep.mubr.f32.mxu0 0.0
        %1638 = vmatmul.mubr.f32.gmra.mrb[0].mxu0 %v1546
        %v1639 = vpop.f32.mrb[0].mxu0
        %v1640 = vadd.f32 0.0, %v1639
        %v1641 = vpop.f32.mrb[0].mxu0
        %1642 = vmatprep.mubr.f32.mxu0 0.0
        %1643 = vmatmul.mubr.f32.gmra.mrb[0].mxu0 %v1549
        %v1644 = vpop.f32.mrb[0].mxu0
        %v1645 = vadd.f32 0.0, %v1644
        %v1646 = vpop.f32.mrb[0].mxu0
        %1647 = vmatprep.mubr.f32.mxu0 0.0
        %1648 = vmatmul.mubr.f32.gmra.mrb[0].mxu0 %v1552
        %v1649 = vpop.f32.mrb[0].mxu0
        %v1650 = vadd.f32 0.0, %v1649
        %v1651 = vpop.f32.mrb[0].mxu0
        %1652 = vmatprep.mubr.f32.mxu0 0.0
        %1653 = vmatmul.mubr.f32.gmra.mrb[0].mxu0 %v1555
        %v1654 = vpop.f32.mrb[0].mxu0
        %v1655 = vadd.f32 0.0, %v1654
        %v1656 = vpop.f32.mrb[0].mxu0
        %1657 = vmatprep.mubr.f32.mxu0 0.0
        %1658 = vmatmul.mubr.f32.gmra.mrb[0].mxu0 %v1558
        %v1659 = vpop.f32.mrb[0].mxu0
        %v1660 = vadd.f32 0.0, %v1659
        %v1661 = vpop.f32.mrb[0].mxu0
        %1662 = vmatprep.mubr.f32.mxu0 0.0
        %1663 = vmatmul.mubr.f32.gmra.mrb[0].mxu0 %v1561
        %v1664 = vpop.f32.mrb[0].mxu0
        %v1665 = vadd.f32 0.0, %v1664
        %v1666 = vpop.f32.mrb[0].mxu0
        %1667 = vdwg.mxu0
        %v1669 = vsel %vm849, %v1514, 0
        %v1672 = vsel %vm849, %v1515, 0
        %v1675 = vsel %vm849, %v1516, 0
        %v1678 = vsel %vm849, %v1517, 0
        %v1681 = vsel %vm849, %v1518, 0
        %v1684 = vsel %vm849, %v1519, 0
        %v1687 = vsel %vm849, %v1520, 0
        %v1690 = vsel %vm849, %v1521, 0
        %1692 = vmatprep.subr.mxu0 0.0
        %1693 = vmatpush1.msra.mxu0 %v1522
        %1694 = vmatprep.subr.mxu0 0.0
        %1695 = vmatpush1.msra.mxu0 %v1523
        %1696 = vmatprep.subr.mxu0 0.0
        %1697 = vmatpush1.msra.mxu0 %v1524
        %1698 = vmatprep.subr.mxu0 0.0
        %1699 = vmatpush1.msra.mxu0 %v1525
        %1700 = vmatprep.subr.mxu0 0.0
        %1701 = vmatpush1.msra.mxu0 0.0
        %1702 = vmatprep.subr.mxu0 0.0
        %1703 = vmatpush1.msra.mxu0 0.0
        %1704 = vmatprep.subr.mxu0 0.0
        %1705 = vmatpush1.msra.mxu0 0.0
        %1706 = vmatprep.subr.mxu0 0.0
        %1707 = vmatpush1.msra.mxu0 0.0
        %1708 = vmatprep.subr.mxu0 0.0
        %1709 = vmatpush1.msra.mxu0 0.0
        %1710 = vmatprep.subr.mxu0 0.0
        %1711 = vmatpush1.msra.mxu0 0.0
        %1712 = vmatprep.subr.mxu0 0.0
        %1713 = vmatpush1.msra.mxu0 0.0
        %1714 = vmatprep.subr.mxu0 0.0
        %1715 = vmatpush1.msra.mxu0 0.0
        %1716 = vmatprep.subr.mxu0 0.0
        %1717 = vmatpush1.msra.mxu0 0.0
        %1718 = vmatprep.subr.mxu0 0.0
        %1719 = vmatpush1.msra.mxu0 0.0
        %1720 = vmatprep.subr.mxu0 0.0
        %1721 = vmatpush1.msra.mxu0 0.0
        %1722 = vmatprep.subr.mxu0 0.0
        %1723 = vmatpush1.msra.mxu0 0.0
        %1724 = vmatprep.subr.mxu0 0.0
        %1725 = vmatpush1.msra.mxu0 0.0
        %1726 = vmatprep.subr.mxu0 0.0
        %1727 = vmatpush1.msra.mxu0 0.0
        %1728 = vmatprep.subr.mxu0 0.0
        %1729 = vmatpush1.msra.mxu0 0.0
        %1730 = vmatprep.subr.mxu0 0.0
        %1731 = vmatpush1.msra.mxu0 0.0
        %1732 = vmatprep.subr.mxu0 0.0
        %1733 = vmatpush1.msra.mxu0 0.0
        %1734 = vmatprep.subr.mxu0 0.0
        %1735 = vmatpush1.msra.mxu0 0.0
        %1736 = vmatprep.subr.mxu0 0.0
        %1737 = vmatpush1.msra.mxu0 0.0
        %1738 = vmatprep.subr.mxu0 0.0
        %1739 = vmatpush1.msra.mxu0 0.0
        %1740 = vmatprep.subr.mxu0 0.0
        %1741 = vmatpush1.msra.mxu0 0.0
        %1742 = vmatprep.subr.mxu0 0.0
        %1743 = vmatpush1.msra.mxu0 0.0
        %1744 = vmatprep.subr.mxu0 0.0
        %1745 = vmatpush1.msra.mxu0 0.0
        %1746 = vmatprep.subr.mxu0 0.0
        %1747 = vmatpush1.msra.mxu0 0.0
        %1748 = vmatprep.subr.mxu0 0.0
        %1749 = vmatpush1.msra.mxu0 0.0
        %1750 = vmatprep.subr.mxu0 0.0
        %1751 = vmatpush1.msra.mxu0 0.0
        %1752 = vmatprep.subr.mxu0 0.0
        %1753 = vmatpush1.msra.mxu0 0.0
        %1754 = vmatprep.subr.mxu0 0.0
        %1755 = vmatpush1.msra.mxu0 0.0
        %1756 = vmatprep.mubr.f32.mxu0 0.0
        %1757 = vmatmul.mubr.f32.gmra.mrb[0].mxu0 %v1669
        %v1758 = vpop.f32.mrb[0].mxu0
        %v1759 = vadd.f32 %v1630, %v1758
        %v1760 = vpop.f32.mrb[0].mxu0
        %1761 = vmatprep.mubr.f32.mxu0 0.0
        %1762 = vmatmul.mubr.f32.gmra.mrb[0].mxu0 %v1672
        %v1763 = vpop.f32.mrb[0].mxu0
        %v1764 = vadd.f32 %v1635, %v1763
        %v1765 = vpop.f32.mrb[0].mxu0
        %1766 = vmatprep.mubr.f32.mxu0 0.0
        %1767 = vmatmul.mubr.f32.gmra.mrb[0].mxu0 %v1675
        %v1768 = vpop.f32.mrb[0].mxu0
        %v1769 = vadd.f32 %v1640, %v1768
        %v1770 = vpop.f32.mrb[0].mxu0
        %1771 = vmatprep.mubr.f32.mxu0 0.0
        %1772 = vmatmul.mubr.f32.gmra.mrb[0].mxu0 %v1678
        %v1773 = vpop.f32.mrb[0].mxu0
        %v1774 = vadd.f32 %v1645, %v1773
        %v1775 = vpop.f32.mrb[0].mxu0
        %1776 = vmatprep.mubr.f32.mxu0 0.0
        %1777 = vmatmul.mubr.f32.gmra.mrb[0].mxu0 %v1681
        %v1778 = vpop.f32.mrb[0].mxu0
        %v1779 = vadd.f32 %v1650, %v1778
        %v1780 = vpop.f32.mrb[0].mxu0
        %1781 = vmatprep.mubr.f32.mxu0 0.0
        %1782 = vmatmul.mubr.f32.gmra.mrb[0].mxu0 %v1684
        %v1783 = vpop.f32.mrb[0].mxu0
        %v1784 = vadd.f32 %v1655, %v1783
        %v1785 = vpop.f32.mrb[0].mxu0
        %1786 = vmatprep.mubr.f32.mxu0 0.0
        %1787 = vmatmul.mubr.f32.gmra.mrb[0].mxu0 %v1687
        %v1788 = vpop.f32.mrb[0].mxu0
        %v1789 = vadd.f32 %v1660, %v1788
        %v1790 = vpop.f32.mrb[0].mxu0
        %1791 = vmatprep.mubr.f32.mxu0 0.0
        %1792 = vmatmul.mubr.f32.gmra.mrb[0].mxu0 %v1690
        %v1793 = vpop.f32.mrb[0].mxu0
        %v1794 = vadd.f32 %v1665, %v1793
        %v1795 = vpop.f32.mrb[0].mxu0
        %1796 = vdwg.mxu0
        %v1797 = vld [vmem:[#allocation3 + $0x2] sm:$0xff]
        %v1798 = vld [vmem:[#allocation3 + $0xa] sm:$0xff]
        %v1799 = vld [vmem:[#allocation3 + $0x1a] sm:$0xff]
        %v1800 = vld [vmem:[#allocation3 + $0x22] sm:$0xff]
        %v1801 = vld [vmem:[#allocation3 + $0x32] sm:$0xff]
        %v1802 = vld [vmem:[#allocation3 + $0x3a] sm:$0xff]
        %v1803 = vld [vmem:[#allocation3 + $0x4a] sm:$0xff]
        %v1804 = vld [vmem:[#allocation3 + $0x52] sm:$0xff]
        %s1805 = scalar_lea.vmem [#allocation9], 64
        %v1806 = vld [vmem:[%s1805] sm:$0xff]
        %v1807 = vld [vmem:[%s1805 + $0x8] sm:$0xff]
        %v1808 = vld [vmem:[%s1805 + $0x10] sm:$0xff]
        %v1809 = vld [vmem:[%s1805 + $0x18] sm:$0xff]
        %v1811 = vsel %vm849, %v1797, 0
        %v1814 = vsel %vm849, %v1798, 0
        %v1817 = vsel %vm849, %v1799, 0
        %v1820 = vsel %vm849, %v1800, 0
        %v1823 = vsel %vm849, %v1801, 0
        %v1826 = vsel %vm849, %v1802, 0
        %v1829 = vsel %vm849, %v1803, 0
        %v1832 = vsel %vm849, %v1804, 0
        %1834 = vmatprep.subr.mxu0 0.0
        %1835 = vmatpush1.msra.mxu0 %v1806
        %1836 = vmatprep.subr.mxu0 0.0
        %1837 = vmatpush1.msra.mxu0 %v1807
        %1838 = vmatprep.subr.mxu0 0.0
        %1839 = vmatpush1.msra.mxu0 %v1808
        %1840 = vmatprep.subr.mxu0 0.0
        %1841 = vmatpush1.msra.mxu0 %v1809
        %1842 = vmatprep.subr.mxu0 0.0
        %1843 = vmatpush1.msra.mxu0 0.0
        %1844 = vmatprep.subr.mxu0 0.0
        %1845 = vmatpush1.msra.mxu0 0.0
        %1846 = vmatprep.subr.mxu0 0.0
        %1847 = vmatpush1.msra.mxu0 0.0
        %1848 = vmatprep.subr.mxu0 0.0
        %1849 = vmatpush1.msra.mxu0 0.0
        %1850 = vmatprep.subr.mxu0 0.0
        %1851 = vmatpush1.msra.mxu0 0.0
        %1852 = vmatprep.subr.mxu0 0.0
        %1853 = vmatpush1.msra.mxu0 0.0
        %1854 = vmatprep.subr.mxu0 0.0
        %1855 = vmatpush1.msra.mxu0 0.0
        %1856 = vmatprep.subr.mxu0 0.0
        %1857 = vmatpush1.msra.mxu0 0.0
        %1858 = vmatprep.subr.mxu0 0.0
        %1859 = vmatpush1.msra.mxu0 0.0
        %1860 = vmatprep.subr.mxu0 0.0
        %1861 = vmatpush1.msra.mxu0 0.0
        %1862 = vmatprep.subr.mxu0 0.0
        %1863 = vmatpush1.msra.mxu0 0.0
        %1864 = vmatprep.subr.mxu0 0.0
        %1865 = vmatpush1.msra.mxu0 0.0
        %1866 = vmatprep.subr.mxu0 0.0
        %1867 = vmatpush1.msra.mxu0 0.0
        %1868 = vmatprep.subr.mxu0 0.0
        %1869 = vmatpush1.msra.mxu0 0.0
        %1870 = vmatprep.subr.mxu0 0.0
        %1871 = vmatpush1.msra.mxu0 0.0
        %1872 = vmatprep.subr.mxu0 0.0
        %1873 = vmatpush1.msra.mxu0 0.0
        %1874 = vmatprep.subr.mxu0 0.0
        %1875 = vmatpush1.msra.mxu0 0.0
        %1876 = vmatprep.subr.mxu0 0.0
        %1877 = vmatpush1.msra.mxu0 0.0
        %1878 = vmatprep.subr.mxu0 0.0
        %1879 = vmatpush1.msra.mxu0 0.0
        %1880 = vmatprep.subr.mxu0 0.0
        %1881 = vmatpush1.msra.mxu0 0.0
        %1882 = vmatprep.subr.mxu0 0.0
        %1883 = vmatpush1.msra.mxu0 0.0
        %1884 = vmatprep.subr.mxu0 0.0
        %1885 = vmatpush1.msra.mxu0 0.0
        %1886 = vmatprep.subr.mxu0 0.0
        %1887 = vmatpush1.msra.mxu0 0.0
        %1888 = vmatprep.subr.mxu0 0.0
        %1889 = vmatpush1.msra.mxu0 0.0
        %1890 = vmatprep.subr.mxu0 0.0
        %1891 = vmatpush1.msra.mxu0 0.0
        %1892 = vmatprep.subr.mxu0 0.0
        %1893 = vmatpush1.msra.mxu0 0.0
        %1894 = vmatprep.subr.mxu0 0.0
        %1895 = vmatpush1.msra.mxu0 0.0
        %1896 = vmatprep.subr.mxu0 0.0
        %1897 = vmatpush1.msra.mxu0 0.0
        %1898 = vmatprep.mubr.f32.mxu0 0.0
        %1899 = vmatmul.mubr.f32.gmra.mrb[0].mxu0 %v1811
        %v1900 = vpop.f32.mrb[0].mxu0
        %v1901 = vadd.f32 0.0, %v1900
        %v1902 = vpop.f32.mrb[0].mxu0
        %1903 = vmatprep.mubr.f32.mxu0 0.0
        %1904 = vmatmul.mubr.f32.gmra.mrb[0].mxu0 %v1814
        %v1905 = vpop.f32.mrb[0].mxu0
        %v1906 = vadd.f32 0.0, %v1905
        %v1907 = vpop.f32.mrb[0].mxu0
        %1908 = vmatprep.mubr.f32.mxu0 0.0
        %1909 = vmatmul.mubr.f32.gmra.mrb[0].mxu0 %v1817
        %v1910 = vpop.f32.mrb[0].mxu0
        %v1911 = vadd.f32 0.0, %v1910
        %v1912 = vpop.f32.mrb[0].mxu0
        %1913 = vmatprep.mubr.f32.mxu0 0.0
        %1914 = vmatmul.mubr.f32.gmra.mrb[0].mxu0 %v1820
        %v1915 = vpop.f32.mrb[0].mxu0
        %v1916 = vadd.f32 0.0, %v1915
        %v1917 = vpop.f32.mrb[0].mxu0
        %1918 = vmatprep.mubr.f32.mxu0 0.0
        %1919 = vmatmul.mubr.f32.gmra.mrb[0].mxu0 %v1823
        %v1920 = vpop.f32.mrb[0].mxu0
        %v1921 = vadd.f32 0.0, %v1920
        %v1922 = vpop.f32.mrb[0].mxu0
        %1923 = vmatprep.mubr.f32.mxu0 0.0
        %1924 = vmatmul.mubr.f32.gmra.mrb[0].mxu0 %v1826
        %v1925 = vpop.f32.mrb[0].mxu0
        %v1926 = vadd.f32 0.0, %v1925
        %v1927 = vpop.f32.mrb[0].mxu0
        %1928 = vmatprep.mubr.f32.mxu0 0.0
        %1929 = vmatmul.mubr.f32.gmra.mrb[0].mxu0 %v1829
        %v1930 = vpop.f32.mrb[0].mxu0
        %v1931 = vadd.f32 0.0, %v1930
        %v1932 = vpop.f32.mrb[0].mxu0
        %1933 = vmatprep.mubr.f32.mxu0 0.0
        %1934 = vmatmul.mubr.f32.gmra.mrb[0].mxu0 %v1832
        %v1935 = vpop.f32.mrb[0].mxu0
        %v1936 = vadd.f32 0.0, %v1935
        %v1937 = vpop.f32.mrb[0].mxu0
        %1938 = vdwg.mxu0
        %v1939 = vadd.f32 %v1759, %v1901
        %v1940 = vadd.f32 %v1764, %v1906
        %v1941 = vadd.f32 %v1769, %v1911
        %v1942 = vadd.f32 %v1774, %v1916
        %v1943 = vadd.f32 %v1779, %v1921
        %v1944 = vadd.f32 %v1784, %v1926
        %v1945 = vadd.f32 %v1789, %v1931
        %v1946 = vadd.f32 %v1794, %v1936
        %v1947 = vlaneseq
        %v1948 = vshrl.u32 %v1947, 7
        %v1949 = vsub.s32 3, %v1948
        %v1950 = vrot.slane %v378, %v1949
        %v1951 = vadd.f32 %v1939, %v1950
        %v1952 = vadd.f32 %v1940, %v1950
        %v1953 = vadd.f32 %v1941, %v1950
        %v1954 = vadd.f32 %v1942, %v1950
        %v1955 = vadd.f32 %v1943, %v1950
        %v1956 = vadd.f32 %v1944, %v1950
        %v1957 = vadd.f32 %v1945, %v1950
        %v1958 = vadd.f32 %v1946, %v1950
        %v1959 = vsel %vm849, %v1951, 0.0
        %v1960 = vsel %vm849, %v1952, 0.0
        %v1961 = vadd.f32 %v1959, %v1960
        %v1962 = vrot.slane %v1961, 4
        %v1963 = vadd.f32 %v1961, %v1962
        %v1964 = vrot.slane %v1963, 2
        %v1965 = vadd.f32 %v1963, %v1964
        %v1966 = vrot.slane %v1965, 1
        %v1967 = vadd.f32 %v1965, %v1966
        %v1968 = vsel %vm849, %v1953, 0.0
        %v1969 = vsel %vm849, %v1954, 0.0
        %v1970 = vadd.f32 %v1968, %v1969
        %v1971 = vrot.slane %v1970, 4
        %v1972 = vadd.f32 %v1970, %v1971
        %v1973 = vrot.slane %v1972, 2
        %v1974 = vadd.f32 %v1972, %v1973
        %v1975 = vrot.slane %v1974, 1
        %v1976 = vadd.f32 %v1974, %v1975
        %v1977 = vsel %vm849, %v1955, 0.0
        %v1978 = vsel %vm849, %v1956, 0.0
        %v1979 = vadd.f32 %v1977, %v1978
        %v1980 = vrot.slane %v1979, 4
        %v1981 = vadd.f32 %v1979, %v1980
        %v1982 = vrot.slane %v1981, 2
        %v1983 = vadd.f32 %v1981, %v1982
        %v1984 = vrot.slane %v1983, 1
        %v1985 = vadd.f32 %v1983, %v1984
        %v1986 = vsel %vm849, %v1957, 0.0
        %v1987 = vsel %vm849, %v1958, 0.0
        %v1988 = vadd.f32 %v1986, %v1987
        %v1989 = vrot.slane %v1988, 4
        %v1990 = vadd.f32 %v1988, %v1989
        %v1991 = vrot.slane %v1990, 2
        %v1992 = vadd.f32 %v1990, %v1991
        %v1993 = vrot.slane %v1992, 1
        %v1994 = vadd.f32 %v1992, %v1993
        %v1999 = vsel %vm890, %v1976, %v1967
        %v2000 = vsel %vm892, %v1985, %v1999
        %v2001 = vsel %vm894, %v1994, %v2000
        %v2002 = vsel %vm849, %v2001, 0
        %2004 = vmatprep.subr.mxu0 0.0
        %2005 = vmatpush1.msra.mxu0 %v379
        %2006 = vmatprep.subr.mxu0 0.0
        %2007 = vmatpush1.msra.mxu0 %v380
        %2008 = vmatprep.subr.mxu0 0.0
        %2009 = vmatpush1.msra.mxu0 %v381
        %2010 = vmatprep.subr.mxu0 0.0
        %2011 = vmatpush1.msra.mxu0 %v382
        %2012 = vmatprep.subr.mxu0 0.0
        %2013 = vmatpush1.msra.mxu0 0.0
        %2014 = vmatprep.subr.mxu0 0.0
        %2015 = vmatpush1.msra.mxu0 0.0
        %2016 = vmatprep.subr.mxu0 0.0
        %2017 = vmatpush1.msra.mxu0 0.0
        %2018 = vmatprep.subr.mxu0 0.0
        %2019 = vmatpush1.msra.mxu0 0.0
        %2020 = vmatprep.subr.mxu0 0.0
        %2021 = vmatpush1.msra.mxu0 0.0
        %2022 = vmatprep.subr.mxu0 0.0
        %2023 = vmatpush1.msra.mxu0 0.0
        %2024 = vmatprep.subr.mxu0 0.0
        %2025 = vmatpush1.msra.mxu0 0.0
        %2026 = vmatprep.subr.mxu0 0.0
        %2027 = vmatpush1.msra.mxu0 0.0
        %2028 = vmatprep.subr.mxu0 0.0
        %2029 = vmatpush1.msra.mxu0 0.0
        %2030 = vmatprep.subr.mxu0 0.0
        %2031 = vmatpush1.msra.mxu0 0.0
        %2032 = vmatprep.subr.mxu0 0.0
        %2033 = vmatpush1.msra.mxu0 0.0
        %2034 = vmatprep.subr.mxu0 0.0
        %2035 = vmatpush1.msra.mxu0 0.0
        %2036 = vmatprep.subr.mxu0 0.0
        %2037 = vmatpush1.msra.mxu0 0.0
        %2038 = vmatprep.subr.mxu0 0.0
        %2039 = vmatpush1.msra.mxu0 0.0
        %2040 = vmatprep.subr.mxu0 0.0
        %2041 = vmatpush1.msra.mxu0 0.0
        %2042 = vmatprep.subr.mxu0 0.0
        %2043 = vmatpush1.msra.mxu0 0.0
        %2044 = vmatprep.subr.mxu0 0.0
        %2045 = vmatpush1.msra.mxu0 0.0
        %2046 = vmatprep.subr.mxu0 0.0
        %2047 = vmatpush1.msra.mxu0 0.0
        %2048 = vmatprep.subr.mxu0 0.0
        %2049 = vmatpush1.msra.mxu0 0.0
        %2050 = vmatprep.subr.mxu0 0.0
        %2051 = vmatpush1.msra.mxu0 0.0
        %2052 = vmatprep.subr.mxu0 0.0
        %2053 = vmatpush1.msra.mxu0 0.0
        %2054 = vmatprep.subr.mxu0 0.0
        %2055 = vmatpush1.msra.mxu0 0.0
        %2056 = vmatprep.subr.mxu0 0.0
        %2057 = vmatpush1.msra.mxu0 0.0
        %2058 = vmatprep.subr.mxu0 0.0
        %2059 = vmatpush1.msra.mxu0 0.0
        %2060 = vmatprep.subr.mxu0 0.0
        %2061 = vmatpush1.msra.mxu0 0.0
        %2062 = vmatprep.subr.mxu0 0.0
        %2063 = vmatpush1.msra.mxu0 0.0
        %2064 = vmatprep.subr.mxu0 0.0
        %2065 = vmatpush1.msra.mxu0 0.0
        %2066 = vmatprep.subr.mxu0 0.0
        %2067 = vmatpush1.msra.mxu0 0.0
        %2068 = vmatprep.mubr.f32.mxu0 0.0
        %2069 = vmatmul.mubr.f32.gmra.mrb[0].mxu0 %v2002
        %v2070 = vpop.f32.mrb[0].mxu0
        %v2071 = vadd.f32 0.0, %v2070
        %v2072 = vpop.f32.mrb[0].mxu0
        %2073 = vdwg.mxu0
        %v2074 = vmul.f32 %v2071, 0.015625
        %v2076 = vsel %vm969, %v2074, 0
        %2078 = vmatprep.subr.mxu0 0.0
        %2079 = vmatpush1.msra.mxu0 %v383
        %2080 = vmatprep.subr.mxu0 0.0
        %2081 = vmatpush1.msra.mxu0 0.0
        %2082 = vmatprep.subr.mxu0 0.0
        %2083 = vmatpush1.msra.mxu0 0.0
        %2084 = vmatprep.subr.mxu0 0.0
        %2085 = vmatpush1.msra.mxu0 0.0
        %2086 = vmatprep.subr.mxu0 0.0
        %2087 = vmatpush1.msra.mxu0 0.0
        %2088 = vmatprep.subr.mxu0 0.0
        %2089 = vmatpush1.msra.mxu0 0.0
        %2090 = vmatprep.subr.mxu0 0.0
        %2091 = vmatpush1.msra.mxu0 0.0
        %2092 = vmatprep.subr.mxu0 0.0
        %2093 = vmatpush1.msra.mxu0 0.0
        %2094 = vmatprep.subr.mxu0 0.0
        %2095 = vmatpush1.msra.mxu0 0.0
        %2096 = vmatprep.subr.mxu0 0.0
        %2097 = vmatpush1.msra.mxu0 0.0
        %2098 = vmatprep.subr.mxu0 0.0
        %2099 = vmatpush1.msra.mxu0 0.0
        %2100 = vmatprep.subr.mxu0 0.0
        %2101 = vmatpush1.msra.mxu0 0.0
        %2102 = vmatprep.subr.mxu0 0.0
        %2103 = vmatpush1.msra.mxu0 0.0
        %2104 = vmatprep.subr.mxu0 0.0
        %2105 = vmatpush1.msra.mxu0 0.0
        %2106 = vmatprep.subr.mxu0 0.0
        %2107 = vmatpush1.msra.mxu0 0.0
        %2108 = vmatprep.subr.mxu0 0.0
        %2109 = vmatpush1.msra.mxu0 0.0
        %2110 = vmatprep.subr.mxu0 0.0
        %2111 = vmatpush1.msra.mxu0 0.0
        %2112 = vmatprep.subr.mxu0 0.0
        %2113 = vmatpush1.msra.mxu0 0.0
        %2114 = vmatprep.subr.mxu0 0.0
        %2115 = vmatpush1.msra.mxu0 0.0
        %2116 = vmatprep.subr.mxu0 0.0
        %2117 = vmatpush1.msra.mxu0 0.0
        %2118 = vmatprep.subr.mxu0 0.0
        %2119 = vmatpush1.msra.mxu0 0.0
        %2120 = vmatprep.subr.mxu0 0.0
        %2121 = vmatpush1.msra.mxu0 0.0
        %2122 = vmatprep.subr.mxu0 0.0
        %2123 = vmatpush1.msra.mxu0 0.0
        %2124 = vmatprep.subr.mxu0 0.0
        %2125 = vmatpush1.msra.mxu0 0.0
        %2126 = vmatprep.subr.mxu0 0.0
        %2127 = vmatpush1.msra.mxu0 0.0
        %2128 = vmatprep.subr.mxu0 0.0
        %2129 = vmatpush1.msra.mxu0 0.0
        %2130 = vmatprep.subr.mxu0 0.0
        %2131 = vmatpush1.msra.mxu0 0.0
        %2132 = vmatprep.subr.mxu0 0.0
        %2133 = vmatpush1.msra.mxu0 0.0
        %2134 = vmatprep.subr.mxu0 0.0
        %2135 = vmatpush1.msra.mxu0 0.0
        %2136 = vmatprep.subr.mxu0 0.0
        %2137 = vmatpush1.msra.mxu0 0.0
        %2138 = vmatprep.subr.mxu0 0.0
        %2139 = vmatpush1.msra.mxu0 0.0
        %2140 = vmatprep.subr.mxu0 0.0
        %2141 = vmatpush1.msra.mxu0 0.0
        %2142 = vmatprep.mubr.f32.mxu0 0.0
        %2143 = vmatmul.mubr.f32.gmra.mrb[0].mxu0 %v2076
        %v2144 = vpop.f32.mrb[0].mxu0
        %v2145 = vadd.f32 0.0, %v2144
        %v2146 = vpop.f32.mrb[0].mxu0
        %2147 = vdwg.mxu0
        %v2150 = vunpack.c.l.s4 1966171168
        %v2151 = vunpack.c.0.s8 %v2150
        %v2152 = vlaneseq
        %v2153 = vshrl.u32 %v2152, 7
        %v2154 = vsub.s32 %v2151, %v2153
        %v2155 = vrot.slane %v2145, %v2154
        %v2156 = vcombine.high %v2155, %v2155
        %v2158 = vunpack.c.l.s4 1966171168
        %v2159 = vunpack.c.0.s8 %v2158
        %v2160 = vlaneseq
        %v2161 = vshrl.u32 %v2160, 7
        %v2162 = vsub.s32 %v2159, %v2161
        %v2163 = vrot.slane %v2155, %v2162
        %v2165 = vunpack.c.l.s4 1966171168
        %v2166 = vunpack.c.0.s8 %v2165
        %v2167 = vlaneseq
        %v2168 = vshrl.u32 %v2167, 7
        %v2169 = vsub.s32 %v2166, %v2168
        %v2170 = vrot.slane %v2156, %v2169
        %v2171 = vcombine.high %v2163, %v2163
        %v2172 = vcombine.high %v2170, %v2170
        %v2173 = vlaneseq
        %v2174 = vshrl.u32 %v2173, 7
        %v2175 = vsub.s32 0, %v2174
        %v2176 = vrot.slane %v2163, %v2175
        %v2177 = vlaneseq
        %v2178 = vshrl.u32 %v2177, 7
        %v2179 = vsub.s32 0, %v2178
        %v2180 = vrot.slane %v2170, %v2179
        %v2181 = vlaneseq
        %v2182 = vshrl.u32 %v2181, 7
        %v2183 = vsub.s32 0, %v2182
        %v2184 = vrot.slane %v2171, %v2183
        %v2185 = vlaneseq
        %v2186 = vshrl.u32 %v2185, 7
        %v2187 = vsub.s32 0, %v2186
        %v2188 = vrot.slane %v2172, %v2187
        %v2193 = vsub.f32 %v1951, %v2176
        %v2194 = vsub.f32 %v1952, %v2176
        %v2195 = vsub.f32 %v1953, %v2180
        %v2196 = vsub.f32 %v1954, %v2180
        %v2197 = vsub.f32 %v1955, %v2184
        %v2198 = vsub.f32 %v1956, %v2184
        %v2199 = vsub.f32 %v1957, %v2188
        %v2200 = vsub.f32 %v1958, %v2188
        %v2201 = vmul.f32 %v2193, %v2193
        %v2202 = vmul.f32 %v2194, %v2194
        %v2203 = vmul.f32 %v2195, %v2195
        %v2204 = vmul.f32 %v2196, %v2196
        %v2205 = vmul.f32 %v2197, %v2197
        %v2206 = vmul.f32 %v2198, %v2198
        %v2207 = vmul.f32 %v2199, %v2199
        %v2208 = vmul.f32 %v2200, %v2200
        %v2209 = vsel %vm849, %v2201, 0.0
        %v2210 = vsel %vm849, %v2202, 0.0
        %v2211 = vadd.f32 %v2209, %v2210
        %v2212 = vrot.slane %v2211, 4
        %v2213 = vadd.f32 %v2211, %v2212
        %v2214 = vrot.slane %v2213, 2
        %v2215 = vadd.f32 %v2213, %v2214
        %v2216 = vrot.slane %v2215, 1
        %v2217 = vadd.f32 %v2215, %v2216
        %v2218 = vsel %vm849, %v2203, 0.0
        %v2219 = vsel %vm849, %v2204, 0.0
        %v2220 = vadd.f32 %v2218, %v2219
        %v2221 = vrot.slane %v2220, 4
        %v2222 = vadd.f32 %v2220, %v2221
        %v2223 = vrot.slane %v2222, 2
        %v2224 = vadd.f32 %v2222, %v2223
        %v2225 = vrot.slane %v2224, 1
        %v2226 = vadd.f32 %v2224, %v2225
        %v2227 = vsel %vm849, %v2205, 0.0
        %v2228 = vsel %vm849, %v2206, 0.0
        %v2229 = vadd.f32 %v2227, %v2228
        %v2230 = vrot.slane %v2229, 4
        %v2231 = vadd.f32 %v2229, %v2230
        %v2232 = vrot.slane %v2231, 2
        %v2233 = vadd.f32 %v2231, %v2232
        %v2234 = vrot.slane %v2233, 1
        %v2235 = vadd.f32 %v2233, %v2234
        %v2236 = vsel %vm849, %v2207, 0.0
        %v2237 = vsel %vm849, %v2208, 0.0
        %v2238 = vadd.f32 %v2236, %v2237
        %v2239 = vrot.slane %v2238, 4
        %v2240 = vadd.f32 %v2238, %v2239
        %v2241 = vrot.slane %v2240, 2
        %v2242 = vadd.f32 %v2240, %v2241
        %v2243 = vrot.slane %v2242, 1
        %v2244 = vadd.f32 %v2242, %v2243
        %v2249 = vsel %vm890, %v2226, %v2217
        %v2250 = vsel %vm892, %v2235, %v2249
        %v2251 = vsel %vm894, %v2244, %v2250
        %v2252 = vsel %vm849, %v2251, 0
        %2254 = vmatprep.subr.mxu0 0.0
        %2255 = vmatpush1.msra.mxu0 %v379
        %2256 = vmatprep.subr.mxu0 0.0
        %2257 = vmatpush1.msra.mxu0 %v380
        %2258 = vmatprep.subr.mxu0 0.0
        %2259 = vmatpush1.msra.mxu0 %v381
        %2260 = vmatprep.subr.mxu0 0.0
        %2261 = vmatpush1.msra.mxu0 %v382
        %2262 = vmatprep.subr.mxu0 0.0
        %2263 = vmatpush1.msra.mxu0 0.0
        %2264 = vmatprep.subr.mxu0 0.0
        %2265 = vmatpush1.msra.mxu0 0.0
        %2266 = vmatprep.subr.mxu0 0.0
        %2267 = vmatpush1.msra.mxu0 0.0
        %2268 = vmatprep.subr.mxu0 0.0
        %2269 = vmatpush1.msra.mxu0 0.0
        %2270 = vmatprep.subr.mxu0 0.0
        %2271 = vmatpush1.msra.mxu0 0.0
        %2272 = vmatprep.subr.mxu0 0.0
        %2273 = vmatpush1.msra.mxu0 0.0
        %2274 = vmatprep.subr.mxu0 0.0
        %2275 = vmatpush1.msra.mxu0 0.0
        %2276 = vmatprep.subr.mxu0 0.0
        %2277 = vmatpush1.msra.mxu0 0.0
        %2278 = vmatprep.subr.mxu0 0.0
        %2279 = vmatpush1.msra.mxu0 0.0
        %2280 = vmatprep.subr.mxu0 0.0
        %2281 = vmatpush1.msra.mxu0 0.0
        %2282 = vmatprep.subr.mxu0 0.0
        %2283 = vmatpush1.msra.mxu0 0.0
        %2284 = vmatprep.subr.mxu0 0.0
        %2285 = vmatpush1.msra.mxu0 0.0
        %2286 = vmatprep.subr.mxu0 0.0
        %2287 = vmatpush1.msra.mxu0 0.0
        %2288 = vmatprep.subr.mxu0 0.0
        %2289 = vmatpush1.msra.mxu0 0.0
        %2290 = vmatprep.subr.mxu0 0.0
        %2291 = vmatpush1.msra.mxu0 0.0
        %2292 = vmatprep.subr.mxu0 0.0
        %2293 = vmatpush1.msra.mxu0 0.0
        %2294 = vmatprep.subr.mxu0 0.0
        %2295 = vmatpush1.msra.mxu0 0.0
        %2296 = vmatprep.subr.mxu0 0.0
        %2297 = vmatpush1.msra.mxu0 0.0
        %2298 = vmatprep.subr.mxu0 0.0
        %2299 = vmatpush1.msra.mxu0 0.0
        %2300 = vmatprep.subr.mxu0 0.0
        %2301 = vmatpush1.msra.mxu0 0.0
        %2302 = vmatprep.subr.mxu0 0.0
        %2303 = vmatpush1.msra.mxu0 0.0
        %2304 = vmatprep.subr.mxu0 0.0
        %2305 = vmatpush1.msra.mxu0 0.0
        %2306 = vmatprep.subr.mxu0 0.0
        %2307 = vmatpush1.msra.mxu0 0.0
        %2308 = vmatprep.subr.mxu0 0.0
        %2309 = vmatpush1.msra.mxu0 0.0
        %2310 = vmatprep.subr.mxu0 0.0
        %2311 = vmatpush1.msra.mxu0 0.0
        %2312 = vmatprep.subr.mxu0 0.0
        %2313 = vmatpush1.msra.mxu0 0.0
        %2314 = vmatprep.subr.mxu0 0.0
        %2315 = vmatpush1.msra.mxu0 0.0
        %2316 = vmatprep.subr.mxu0 0.0
        %2317 = vmatpush1.msra.mxu0 0.0
        %2318 = vmatprep.mubr.f32.mxu0 0.0
        %2319 = vmatmul.mubr.f32.gmra.mrb[0].mxu0 %v2252
        %v2320 = vpop.f32.mrb[0].mxu0
        %v2321 = vadd.f32 0.0, %v2320
        %v2322 = vpop.f32.mrb[0].mxu0
        %2323 = vdwg.mxu0
        %v2324 = vmul.f32 %v2321, 0.015625
        %v2325 = vadd.f32 %v2324, 1e-05
        %v2326 = vrsqrt.pop %v2325
        %v2328 = vsel %vm969, %v2326, 0
        %2330 = vmatprep.subr.mxu0 0.0
        %2331 = vmatpush1.msra.mxu0 %v383
        %2332 = vmatprep.subr.mxu0 0.0
        %2333 = vmatpush1.msra.mxu0 0.0
        %2334 = vmatprep.subr.mxu0 0.0
        %2335 = vmatpush1.msra.mxu0 0.0
        %2336 = vmatprep.subr.mxu0 0.0
        %2337 = vmatpush1.msra.mxu0 0.0
        %2338 = vmatprep.subr.mxu0 0.0
        %2339 = vmatpush1.msra.mxu0 0.0
        %2340 = vmatprep.subr.mxu0 0.0
        %2341 = vmatpush1.msra.mxu0 0.0
        %2342 = vmatprep.subr.mxu0 0.0
        %2343 = vmatpush1.msra.mxu0 0.0
        %2344 = vmatprep.subr.mxu0 0.0
        %2345 = vmatpush1.msra.mxu0 0.0
        %2346 = vmatprep.subr.mxu0 0.0
        %2347 = vmatpush1.msra.mxu0 0.0
        %2348 = vmatprep.subr.mxu0 0.0
        %2349 = vmatpush1.msra.mxu0 0.0
        %2350 = vmatprep.subr.mxu0 0.0
        %2351 = vmatpush1.msra.mxu0 0.0
        %2352 = vmatprep.subr.mxu0 0.0
        %2353 = vmatpush1.msra.mxu0 0.0
        %2354 = vmatprep.subr.mxu0 0.0
        %2355 = vmatpush1.msra.mxu0 0.0
        %2356 = vmatprep.subr.mxu0 0.0
        %2357 = vmatpush1.msra.mxu0 0.0
        %2358 = vmatprep.subr.mxu0 0.0
        %2359 = vmatpush1.msra.mxu0 0.0
        %2360 = vmatprep.subr.mxu0 0.0
        %2361 = vmatpush1.msra.mxu0 0.0
        %2362 = vmatprep.subr.mxu0 0.0
        %2363 = vmatpush1.msra.mxu0 0.0
        %2364 = vmatprep.subr.mxu0 0.0
        %2365 = vmatpush1.msra.mxu0 0.0
        %2366 = vmatprep.subr.mxu0 0.0
        %2367 = vmatpush1.msra.mxu0 0.0
        %2368 = vmatprep.subr.mxu0 0.0
        %2369 = vmatpush1.msra.mxu0 0.0
        %2370 = vmatprep.subr.mxu0 0.0
        %2371 = vmatpush1.msra.mxu0 0.0
        %2372 = vmatprep.subr.mxu0 0.0
        %2373 = vmatpush1.msra.mxu0 0.0
        %2374 = vmatprep.subr.mxu0 0.0
        %2375 = vmatpush1.msra.mxu0 0.0
        %2376 = vmatprep.subr.mxu0 0.0
        %2377 = vmatpush1.msra.mxu0 0.0
        %2378 = vmatprep.subr.mxu0 0.0
        %2379 = vmatpush1.msra.mxu0 0.0
        %2380 = vmatprep.subr.mxu0 0.0
        %2381 = vmatpush1.msra.mxu0 0.0
        %2382 = vmatprep.subr.mxu0 0.0
        %2383 = vmatpush1.msra.mxu0 0.0
        %2384 = vmatprep.subr.mxu0 0.0
        %2385 = vmatpush1.msra.mxu0 0.0
        %2386 = vmatprep.subr.mxu0 0.0
        %2387 = vmatpush1.msra.mxu0 0.0
        %2388 = vmatprep.subr.mxu0 0.0
        %2389 = vmatpush1.msra.mxu0 0.0
        %2390 = vmatprep.subr.mxu0 0.0
        %2391 = vmatpush1.msra.mxu0 0.0
        %2392 = vmatprep.subr.mxu0 0.0
        %2393 = vmatpush1.msra.mxu0 0.0
        %2394 = vmatprep.mubr.f32.mxu0 0.0
        %2395 = vmatmul.mubr.f32.gmra.mrb[0].mxu0 %v2328
        %v2396 = vpop.f32.mrb[0].mxu0
        %v2397 = vadd.f32 0.0, %v2396
        %v2398 = vpop.f32.mrb[0].mxu0
        %2399 = vdwg.mxu0
        %v2400 = vlaneseq
        %v2401 = vshrl.u32 %v2400, 7
        %v2402 = vsub.s32 4, %v2401
        %v2403 = vrot.slane %v378, %v2402
        %v2404 = vmul.f32 %v2397, %v2403
        %v2407 = vunpack.c.l.s4 1966171168
        %v2408 = vunpack.c.0.s8 %v2407
        %v2409 = vlaneseq
        %v2410 = vshrl.u32 %v2409, 7
        %v2411 = vsub.s32 %v2408, %v2410
        %v2412 = vrot.slane %v2404, %v2411
        %v2413 = vcombine.high %v2412, %v2412
        %v2415 = vunpack.c.l.s4 1966171168
        %v2416 = vunpack.c.0.s8 %v2415
        %v2417 = vlaneseq
        %v2418 = vshrl.u32 %v2417, 7
        %v2419 = vsub.s32 %v2416, %v2418
        %v2420 = vrot.slane %v2412, %v2419
        %v2422 = vunpack.c.l.s4 1966171168
        %v2423 = vunpack.c.0.s8 %v2422
        %v2424 = vlaneseq
        %v2425 = vshrl.u32 %v2424, 7
        %v2426 = vsub.s32 %v2423, %v2425
        %v2427 = vrot.slane %v2413, %v2426
        %v2428 = vcombine.high %v2420, %v2420
        %v2429 = vcombine.high %v2427, %v2427
        %v2430 = vlaneseq
        %v2431 = vshrl.u32 %v2430, 7
        %v2432 = vsub.s32 0, %v2431
        %v2433 = vrot.slane %v2420, %v2432
        %v2434 = vlaneseq
        %v2435 = vshrl.u32 %v2434, 7
        %v2436 = vsub.s32 0, %v2435
        %v2437 = vrot.slane %v2427, %v2436
        %v2438 = vlaneseq
        %v2439 = vshrl.u32 %v2438, 7
        %v2440 = vsub.s32 0, %v2439
        %v2441 = vrot.slane %v2428, %v2440
        %v2442 = vlaneseq
        %v2443 = vshrl.u32 %v2442, 7
        %v2444 = vsub.s32 0, %v2443
        %v2445 = vrot.slane %v2429, %v2444
        %v2450 = vmul.f32 %v2193, %v2433
        %v2451 = vmul.f32 %v2194, %v2433
        %v2452 = vmul.f32 %v2195, %v2437
        %v2453 = vmul.f32 %v2196, %v2437
        %v2454 = vmul.f32 %v2197, %v2441
        %v2455 = vmul.f32 %v2198, %v2441
        %v2456 = vmul.f32 %v2199, %v2445
        %v2457 = vmul.f32 %v2200, %v2445
        %v2458 = vlaneseq
        %v2459 = vshrl.u32 %v2458, 7
        %v2460 = vsub.s32 5, %v2459
        %v2461 = vrot.slane %v378, %v2460
        %v2462 = vadd.f32 %v2450, %v2461
        %v2463 = vadd.f32 %v2451, %v2461
        %v2464 = vadd.f32 %v2452, %v2461
        %v2465 = vadd.f32 %v2453, %v2461
        %v2466 = vadd.f32 %v2454, %v2461
        %v2467 = vadd.f32 %v2455, %v2461
        %v2468 = vadd.f32 %v2456, %v2461
        %v2469 = vadd.f32 %v2457, %v2461
        %v2470 = vmin.f32 %v2462, 20.0
        %v2471 = vmin.f32 %v2463, 20.0
        %v2472 = vmin.f32 %v2464, 20.0
        %v2473 = vmin.f32 %v2465, 20.0
        %v2474 = vmin.f32 %v2466, 20.0
        %v2475 = vmin.f32 %v2467, 20.0
        %v2476 = vmin.f32 %v2468, 20.0
        %v2477 = vmin.f32 %v2469, 20.0
        %v2478 = vmul.f32 %v2470, 1.442695
        %v2479 = vpow.pop %v2478
        %v2480 = vmul.f32 %v2471, 1.442695
        %v2481 = vpow.pop %v2480
        %v2482 = vmul.f32 %v2472, 1.442695
        %v2483 = vpow.pop %v2482
        %v2484 = vmul.f32 %v2473, 1.442695
        %v2485 = vpow.pop %v2484
        %v2486 = vmul.f32 %v2474, 1.442695
        %v2487 = vpow.pop %v2486
        %v2488 = vmul.f32 %v2475, 1.442695
        %v2489 = vpow.pop %v2488
        %v2490 = vmul.f32 %v2476, 1.442695
        %v2491 = vpow.pop %v2490
        %v2492 = vmul.f32 %v2477, 1.442695
        %v2493 = vpow.pop %v2492
        %v2494 = vadd.f32 %v2479, 1.0
        %v2495 = vadd.f32 %v2481, 1.0
        %v2496 = vadd.f32 %v2483, 1.0
        %v2497 = vadd.f32 %v2485, 1.0
        %v2498 = vadd.f32 %v2487, 1.0
        %v2499 = vadd.f32 %v2489, 1.0
        %v2500 = vadd.f32 %v2491, 1.0
        %v2501 = vadd.f32 %v2493, 1.0
        %v2502 = vmul.f32 %v2494, %v2494
        %v2503 = vmul.f32 %v2495, %v2495
        %v2504 = vmul.f32 %v2496, %v2496
        %v2505 = vmul.f32 %v2497, %v2497
        %v2506 = vmul.f32 %v2498, %v2498
        %v2507 = vmul.f32 %v2499, %v2499
        %v2508 = vmul.f32 %v2500, %v2500
        %v2509 = vmul.f32 %v2501, %v2501
        %v2510 = vsub.f32 %v2502, 1.0
        %v2511 = vsub.f32 %v2503, 1.0
        %v2512 = vsub.f32 %v2504, 1.0
        %v2513 = vsub.f32 %v2505, 1.0
        %v2514 = vsub.f32 %v2506, 1.0
        %v2515 = vsub.f32 %v2507, 1.0
        %v2516 = vsub.f32 %v2508, 1.0
        %v2517 = vsub.f32 %v2509, 1.0
        %v2518 = vmul.f32 %v2462, %v2510
        %v2519 = vmul.f32 %v2463, %v2511
        %v2520 = vmul.f32 %v2464, %v2512
        %v2521 = vmul.f32 %v2465, %v2513
        %v2522 = vmul.f32 %v2466, %v2514
        %v2523 = vmul.f32 %v2467, %v2515
        %v2524 = vmul.f32 %v2468, %v2516
        %v2525 = vmul.f32 %v2469, %v2517
        %v2526 = vadd.f32 %v2502, 1.0
        %v2527 = vadd.f32 %v2503, 1.0
        %v2528 = vadd.f32 %v2504, 1.0
        %v2529 = vadd.f32 %v2505, 1.0
        %v2530 = vadd.f32 %v2506, 1.0
        %v2531 = vadd.f32 %v2507, 1.0
        %v2532 = vadd.f32 %v2508, 1.0
        %v2533 = vadd.f32 %v2509, 1.0
        %v2534 = vrcp.pop %v2526
        %v2535 = vrcp.pop %v2527
        %v2536 = vrcp.pop %v2528
        %v2537 = vrcp.pop %v2529
        %v2538 = vrcp.pop %v2530
        %v2539 = vrcp.pop %v2531
        %v2540 = vrcp.pop %v2532
        %v2541 = vrcp.pop %v2533
        %v2542 = vmul.f32 %v2518, %v2534
        %v2543 = vmul.f32 %v2519, %v2535
        %v2544 = vmul.f32 %v2520, %v2536
        %v2545 = vmul.f32 %v2521, %v2537
        %v2546 = vmul.f32 %v2522, %v2538
        %v2547 = vmul.f32 %v2523, %v2539
        %v2548 = vmul.f32 %v2524, %v2540
        %v2549 = vmul.f32 %v2525, %v2541
        %v2550 = vld [vmem:[%s4] sm:$0xff]
        %v2551 = vld [vmem:[%s4 + $0x8] sm:$0xff]
        %v2553 = vsel %vm401, %v384, 0
        %v2556 = vsel %vm401, %v385, 0
        %v2559 = vsel %vm401, %v386, 0
        %v2562 = vsel %vm401, %v387, 0
        %v2565 = vsel %vm401, %v388, 0
        %v2568 = vsel %vm401, %v389, 0
        %v2571 = vsel %vm401, %v390, 0
        %v2574 = vsel %vm401, %v391, 0
        %2576 = vmatprep.subr.mxu0 0.0
        %2577 = vmatpush1.msra.mxu0 %v2550
        %2578 = vmatprep.subr.mxu0 0.0
        %2579 = vmatpush1.msra.mxu0 %v2551
        %2580 = vmatprep.subr.mxu0 0.0
        %2581 = vmatpush1.msra.mxu0 0.0
        %2582 = vmatprep.subr.mxu0 0.0
        %2583 = vmatpush1.msra.mxu0 0.0
        %2584 = vmatprep.subr.mxu0 0.0
        %2585 = vmatpush1.msra.mxu0 0.0
        %2586 = vmatprep.subr.mxu0 0.0
        %2587 = vmatpush1.msra.mxu0 0.0
        %2588 = vmatprep.subr.mxu0 0.0
        %2589 = vmatpush1.msra.mxu0 0.0
        %2590 = vmatprep.subr.mxu0 0.0
        %2591 = vmatpush1.msra.mxu0 0.0
        %2592 = vmatprep.subr.mxu0 0.0
        %2593 = vmatpush1.msra.mxu0 0.0
        %2594 = vmatprep.subr.mxu0 0.0
        %2595 = vmatpush1.msra.mxu0 0.0
        %2596 = vmatprep.subr.mxu0 0.0
        %2597 = vmatpush1.msra.mxu0 0.0
        %2598 = vmatprep.subr.mxu0 0.0
        %2599 = vmatpush1.msra.mxu0 0.0
        %2600 = vmatprep.subr.mxu0 0.0
        %2601 = vmatpush1.msra.mxu0 0.0
        %2602 = vmatprep.subr.mxu0 0.0
        %2603 = vmatpush1.msra.mxu0 0.0
        %2604 = vmatprep.subr.mxu0 0.0
        %2605 = vmatpush1.msra.mxu0 0.0
        %2606 = vmatprep.subr.mxu0 0.0
        %2607 = vmatpush1.msra.mxu0 0.0
        %2608 = vmatprep.subr.mxu0 0.0
        %2609 = vmatpush1.msra.mxu0 0.0
        %2610 = vmatprep.subr.mxu0 0.0
        %2611 = vmatpush1.msra.mxu0 0.0
        %2612 = vmatprep.subr.mxu0 0.0
        %2613 = vmatpush1.msra.mxu0 0.0
        %2614 = vmatprep.subr.mxu0 0.0
        %2615 = vmatpush1.msra.mxu0 0.0
        %2616 = vmatprep.subr.mxu0 0.0
        %2617 = vmatpush1.msra.mxu0 0.0
        %2618 = vmatprep.subr.mxu0 0.0
        %2619 = vmatpush1.msra.mxu0 0.0
        %2620 = vmatprep.subr.mxu0 0.0
        %2621 = vmatpush1.msra.mxu0 0.0
        %2622 = vmatprep.subr.mxu0 0.0
        %2623 = vmatpush1.msra.mxu0 0.0
        %2624 = vmatprep.subr.mxu0 0.0
        %2625 = vmatpush1.msra.mxu0 0.0
        %2626 = vmatprep.subr.mxu0 0.0
        %2627 = vmatpush1.msra.mxu0 0.0
        %2628 = vmatprep.subr.mxu0 0.0
        %2629 = vmatpush1.msra.mxu0 0.0
        %2630 = vmatprep.subr.mxu0 0.0
        %2631 = vmatpush1.msra.mxu0 0.0
        %2632 = vmatprep.subr.mxu0 0.0
        %2633 = vmatpush1.msra.mxu0 0.0
        %2634 = vmatprep.subr.mxu0 0.0
        %2635 = vmatpush1.msra.mxu0 0.0
        %2636 = vmatprep.subr.mxu0 0.0
        %2637 = vmatpush1.msra.mxu0 0.0
        %2638 = vmatprep.subr.mxu0 0.0
        %2639 = vmatpush1.msra.mxu0 0.0
        %2640 = vmatprep.mubr.f32.mxu0 0.0
        %2641 = vmatmul.mubr.f32.gmra.mrb[0].mxu0 %v2553
        %v2642 = vpop.f32.mrb[0].mxu0
        %v2643 = vadd.f32 0.0, %v2642
        %v2644 = vpop.f32.mrb[0].mxu0
        %2645 = vmatprep.mubr.f32.mxu0 0.0
        %2646 = vmatmul.mubr.f32.gmra.mrb[0].mxu0 %v2556
        %v2647 = vpop.f32.mrb[0].mxu0
        %v2648 = vadd.f32 0.0, %v2647
        %v2649 = vpop.f32.mrb[0].mxu0
        %2650 = vmatprep.mubr.f32.mxu0 0.0
        %2651 = vmatmul.mubr.f32.gmra.mrb[0].mxu0 %v2559
        %v2652 = vpop.f32.mrb[0].mxu0
        %v2653 = vadd.f32 0.0, %v2652
        %v2654 = vpop.f32.mrb[0].mxu0
        %2655 = vmatprep.mubr.f32.mxu0 0.0
        %2656 = vmatmul.mubr.f32.gmra.mrb[0].mxu0 %v2562
        %v2657 = vpop.f32.mrb[0].mxu0
        %v2658 = vadd.f32 0.0, %v2657
        %v2659 = vpop.f32.mrb[0].mxu0
        %2660 = vmatprep.mubr.f32.mxu0 0.0
        %2661 = vmatmul.mubr.f32.gmra.mrb[0].mxu0 %v2565
        %v2662 = vpop.f32.mrb[0].mxu0
        %v2663 = vadd.f32 0.0, %v2662
        %v2664 = vpop.f32.mrb[0].mxu0
        %2665 = vmatprep.mubr.f32.mxu0 0.0
        %2666 = vmatmul.mubr.f32.gmra.mrb[0].mxu0 %v2568
        %v2667 = vpop.f32.mrb[0].mxu0
        %v2668 = vadd.f32 0.0, %v2667
        %v2669 = vpop.f32.mrb[0].mxu0
        %2670 = vmatprep.mubr.f32.mxu0 0.0
        %2671 = vmatmul.mubr.f32.gmra.mrb[0].mxu0 %v2571
        %v2672 = vpop.f32.mrb[0].mxu0
        %v2673 = vadd.f32 0.0, %v2672
        %v2674 = vpop.f32.mrb[0].mxu0
        %2675 = vmatprep.mubr.f32.mxu0 0.0
        %2676 = vmatmul.mubr.f32.gmra.mrb[0].mxu0 %v2574
        %v2677 = vpop.f32.mrb[0].mxu0
        %v2678 = vadd.f32 0.0, %v2677
        %v2679 = vpop.f32.mrb[0].mxu0
        %2680 = vdwg.mxu0
        %v2681 = vlaneseq
        %v2682 = vshrl.u32 %v2681, 7
        %v2683 = vsub.s32 6, %v2682
        %v2684 = vrot.slane %v378, %v2683
        %v2685 = vadd.f32 %v2643, %v2684
        %v2686 = vadd.f32 %v2648, %v2684
        %v2687 = vadd.f32 %v2653, %v2684
        %v2688 = vadd.f32 %v2658, %v2684
        %v2689 = vadd.f32 %v2663, %v2684
        %v2690 = vadd.f32 %v2668, %v2684
        %v2691 = vadd.f32 %v2673, %v2684
        %v2692 = vadd.f32 %v2678, %v2684
        %v2693 = vadd.f32 %v2542, %v2685
        %v2694 = vadd.f32 %v2543, %v2686
        %v2695 = vadd.f32 %v2544, %v2687
        %v2696 = vadd.f32 %v2545, %v2688
        %v2697 = vadd.f32 %v2546, %v2689
        %v2698 = vadd.f32 %v2547, %v2690
        %v2699 = vadd.f32 %v2548, %v2691
        %v2700 = vadd.f32 %v2549, %v2692
        %2701 = vst.msk [vmem:[%s369] sm:$0xff] %vm849, %v2693
        %2702 = vst.msk [vmem:[%s369 + $0x8] sm:$0xff] %vm849, %v2694
        %2703 = vst.msk [vmem:[%s369 + $0x10] sm:$0xff] %vm849, %v2695
        %2704 = vst.msk [vmem:[%s369 + $0x18] sm:$0xff] %vm849, %v2696
        %2705 = vst.msk [vmem:[%s369 + $0x20] sm:$0xff] %vm849, %v2697
        %2706 = vst.msk [vmem:[%s369 + $0x28] sm:$0xff] %vm849, %v2698
        %2707 = vst.msk [vmem:[%s369 + $0x30] sm:$0xff] %vm849, %v2699
        %2708 = vst.msk [vmem:[%s369 + $0x38] sm:$0xff] %vm849, %v2700
        %s2709 = sand.u32 %s212, 1
        %s2710 = scalar_lea.sflag [#allocation6], %s2709
        %s2711 = sand.u32 %s212, 1
        %s2712 = smul.addr %s2711, 64
        %s2713 = scalar_lea.vmem [#allocation10], %s2712
        // Predicated region
        $region65: #{tpu_custom_call.1} parent=51 // pred_check
          %p2714 = pneg %p222
        $region66: #{tpu_custom_call.1} parent=51 // pred_check_branch
          %2716 = sbr.rel (%p2714) target = $region68
        $region67: #{tpu_custom_call.1} parent=51 // pred_region
          %s2717 = smul.u32 4, %s26
          %s2719 = ssub.s32 1024, 1024
          %2720 = vsyncadd %s2710, %s2719
          %s2721 = smul.addr %s2717, 2
          %s2722 = smul.addr %s2721, 128
          %s2723 = scalar_lea.hbm %s8, %s2722
          %s2724 = sshll.u32 %s2713, 4
          %s2725 = int_to_ptr.vmem [resolvable:$true] %s2724
          %2730 = dma.vmem_to_hbm [thread:$0]  %s2725, 1024, %s2723, %s2710, 128, 128, 8
        $region68: #{tpu_custom_call.1} parent=51 // pred_fallthru
          _
      $region52: #{tpu_custom_call.1} parent=5 // pred_fallthru
        _
      %p2731 = scmp.le.s32.totalorder 2, %s21
      // Predicated region
      $region69: #{tpu_custom_call.1} parent=5 // pred_check
        %p2732 = pneg %p2731
      $region70: #{tpu_custom_call.1} parent=5 // pred_check_branch
        %2734 = sbr.rel (%p2732) target = $region72
      $region71: #{tpu_custom_call.1} parent=5 // pred_region
        %s2735 = ssub.s32 %s21, 2
        // Predicated region
        $region73: #{tpu_custom_call.1} parent=71 // pred_check
          %p2736 = pneg %p228
        $region74: #{tpu_custom_call.1} parent=71 // pred_check_branch
          %2738 = sbr.rel (%p2736) target = $region76
        $region75: #{tpu_custom_call.1} parent=71 // pred_region
          %s2739 = sand.u32 %s213, 1
          %s2740 = scalar_lea.sflag [#allocation6], %s2739
          %s2741 = sand.u32 %s213, 1
          %s2742 = smul.addr %s2741, 64
          %s2743 = scalar_lea.vmem [#allocation10], %s2742
          %2744 = dma.done %s2740, 1024
        $region76: #{tpu_custom_call.1} parent=71 // pred_fallthru
          _
      $region72: #{tpu_custom_call.1} parent=5 // pred_fallthru
        _
    $region6: #{tpu_custom_call.1} parent=1 // loop_footer
      %s25 = sadd.s32 1, %s21
    $region7: #{tpu_custom_call.1} parent=1 // loop_footer_branch
      %20 = sbr.rel target = $region3
    $region8: #{tpu_custom_call.1} parent=1 // loop_exit
      _
    %2745 = vsyncpa [#allocation5], 1
    %s2746 = scalar_lea.sflag [#allocation5], 1
    %2747 = vsyncpa %s2746, 1
    %2748 = vsyncpa [#allocation8], 1
    %2749 = vsyncpa [#allocation6], 1
    %s2750 = scalar_lea.sflag [#allocation6], 1
    %2751 = vsyncpa %s2750, 1

</llo_original>
